<compile_context>
chip_gen: v7x
topology: tpu7x:2x2x1
jax: 0.10.0
libtpu: 0.0.40
codegen_flags: <defaults>
</compile_context>

<pallas_src>
import functools
import math

import jax
import jax.numpy as jnp
from jax.experimental import pallas as pl
from jax.experimental.pallas import tpu as pltpu  # noqa: F401  (TPU backend assumed)

# ------------------------- config (small synthetic CLIP) -------------------------
IMG_RES   = 32                      # self.img_resolution
PATCH     = 8
N_PATCH   = (IMG_RES // PATCH) ** 2 # 16
V_SEQ     = N_PATCH + 1             # 17 (cls token)
V_SEQ_PAD = 24                      # padded to a multiple of 8 sublanes
V_WIDTH   = 64                      # vision transformer width
T_CTX     = 16                      # text context length (77 in real CLIP)
T_WIDTH   = 64                      # text transformer width (== ln_final dim)
VOCAB     = 64
N_HEADS   = 4
N_LAYERS  = 2
MLP_RATIO = 4
EMBED     = 32                      # joint embedding dim
MAX_SEG_CHARS = 77                  # per-segment char limit from encode_text()

OPENAI_CLIP_MEAN = jnp.array([0.48145466, 0.4578275, 0.40821073], jnp.float32)
OPENAI_CLIP_STD  = jnp.array([0.26862954, 0.26130258, 0.27577711], jnp.float32)


# ------------------------------- kernel helpers -------------------------------
def _layernorm(x, w, b, eps=1e-5):
    mu = jnp.mean(x, axis=-1, keepdims=True)
    var = jnp.mean(jnp.square(x - mu), axis=-1, keepdims=True)
    return (x - mu) * jax.lax.rsqrt(var + eps) * w + b


# ------------------------- fused encoder kernel (1 call) -------------------------
def encoder_kernel(*refs, n_heads, n_layers, fuse_embed):
    """[patch embed] -> n_layers transformer -> pool -> LN -> proj -> combine."""
    if fuse_embed:
        (x_ref, in_w_ref, in_add_ref, mask_ref, pool_ref, comb_ref,
         ln1w, ln1b, wqkv, bqkv, wo, bo, ln2w, ln2b, w1, b1, w2, b2,
         lnf_w, lnf_b, proj, o_ref) = refs
    else:
        (x_ref, mask_ref, pool_ref, comb_ref,
         ln1w, ln1b, wqkv, bqkv, wo, bo, ln2w, ln2b, w1, b1, w2, b2,
         lnf_w, lnf_b, proj, o_ref) = refs

    D = ln1w.shape[-1]
    dh = D // n_heads
    scale = 1.0 / math.sqrt(dh)
    B, S = x_ref.shape[0], x_ref.shape[1]
    mask = mask_ref[...]                                    # (S, S) additive, read once

    if fuse_embed:
        # patch embedding fused into the encoder: (B*S, CPP) @ (CPP, D) + add
        xin = x_ref[...]                                    # (B, S, CPP)
        cpp = xin.shape[-1]
        e = jnp.dot(xin.reshape(B * S, cpp).astype(jnp.bfloat16), in_w_ref[...],
                    preferred_element_type=jnp.float32)
        x = (e.reshape(B, S, D) + in_add_ref[...][None]).reshape(B * S, D)
    else:
        x = x_ref[...].reshape(B * S, D)                    # (B*S, D) f32

    for layer in range(n_layers):                           # unrolled (N_LAYERS small)
        # ---- attention: fused QKV matmul, heads batched along a leading axis ----
        h = _layernorm(x, ln1w[layer], ln1b[layer])
        qkv = jnp.dot(h.astype(jnp.bfloat16), wqkv[layer],
                      preferred_element_type=jnp.float32) + bqkv[layer]   # (B*S, 3D)

        def split_heads(off):
            # (H*B, S, dh), group index g = head*B + batch
            return jnp.concatenate(
                [qkv[:, off + hh * dh: off + (hh + 1) * dh].reshape(B, S, dh)
                 for hh in range(n_heads)], axis=0)

        q_g = split_heads(0) * scale        # scale folded into Q (smaller than scores)
        k_g = split_heads(D)
        v_g = split_heads(2 * D)

        s = jnp.einsum('gqd,gkd->gqk', q_g.astype(jnp.bfloat16),
                       k_g.astype(jnp.bfloat16),
                       preferred_element_type=jnp.float32)                # (H*B, S, S)
        s = s + mask[None]
        s = s - jnp.max(s, axis=-1, keepdims=True)
        p = jnp.exp(s)
        p = p * pl.reciprocal(jnp.sum(p, axis=-1, keepdims=True), approx=True)
        o_g = jnp.einsum('gqk,gkd->gqd', p.astype(jnp.bfloat16),
                         v_g.astype(jnp.bfloat16),
                         preferred_element_type=jnp.float32)              # (H*B, S, dh)
        attn = jnp.concatenate(
            [o_g[hh * B:(hh + 1) * B].reshape(B * S, dh) for hh in range(n_heads)],
            axis=-1)                                                      # (B*S, D)
        x = x + jnp.dot(attn.astype(jnp.bfloat16), wo[layer],
                        preferred_element_type=jnp.float32) + bo[layer]

        # ---- MLP (QuickGELU, as in OpenAI CLIP) ----
        h = _layernorm(x, ln2w[layer], ln2b[layer])
        h = jnp.dot(h.astype(jnp.bfloat16), w1[layer],
                    preferred_element_type=jnp.float32) + b1[layer]
        h = h * jax.nn.sigmoid(1.702 * h)
        x = x + jnp.dot(h.astype(jnp.bfloat16), w2[layer],
                        preferred_element_type=jnp.float32) + b2[layer]

    # ---- pooling (one-hot weighted sum) + final LN + projection ----
    pooled = jnp.sum(x.reshape(B, S, D) * pool_ref[...], axis=1)          # (B, D)
    hf = _layernorm(pooled, lnf_w[...], lnf_b[...])
    emb = jnp.dot(hf.astype(jnp.bfloat16), proj[...],
                  preferred_element_type=jnp.float32)                     # (B, E)
    # segment-combine: identity for vision, masked segment-mean for text (f32)
    comb = comb_ref[...]                                                  # (Bo, B)
    o_ref[...] = jnp.sum(comb[:, :, None] * emb[None, :, :], axis=1)      # (Bo, E)


def run_encoder(x_in, mask, pool, combine, layer_w, lnf_w, lnf_b, proj, n_heads,
                in_w=None, in_add=None):
    """One pallas_call for a full encoder; everything resident in VMEM.

    TODO(synk): for v7x (2 TensorCores) or large batches, add a leading
    'parallel' grid axis over batch chunks so both cores get work.
    """
    fuse_embed = in_w is not None
    n_layers = layer_w[0].shape[0]
    B_out = combine.shape[0]
    E = proj.shape[1]
    kernel = functools.partial(encoder_kernel, n_heads=n_heads,
                               n_layers=n_layers, fuse_embed=fuse_embed)
    args = [x_in]
    if fuse_embed:
        args += [in_w, in_add]
    args += [mask, pool, combine] + list(layer_w) + [lnf_w, lnf_b, proj]
    return pl.pallas_call(
        kernel,
        out_shape=jax.ShapeDtypeStruct((B_out, E), jnp.float32),
    )(*args)


# ------------------------- L2-normalize + concat kernel -------------------------
def norm_concat_kernel(img_ref, txt_ref, o_ref):
    xi = img_ref[...]
    xt = txt_ref[...]
    # F.normalize(x, dim=-1): x / max(||x||_2, 1e-12)  (rsqrt -> EUP)
    xi = xi * jax.lax.rsqrt(jnp.maximum(jnp.sum(xi * xi, -1, keepdims=True), 1e-24))
    xt = xt * jax.lax.rsqrt(jnp.maximum(jnp.sum(xt * xt, -1, keepdims=True), 1e-24))
    o_ref[...] = jnp.concatenate([xi, xt], axis=-1)   # single lane-dense store


def norm_concat(img_emb, txt_emb):
    B, E = img_emb.shape
    return pl.pallas_call(
        norm_concat_kernel,
        out_shape=jax.ShapeDtypeStruct((B, 2 * E), jnp.float32),
    )(img_emb, txt_emb)


# ------------------------------- parameter init -------------------------------
def _init_layers(keys, width, n_layers):
    D, H = width, MLP_RATIO * width

    def w(shape, scale=0.05):
        return scale * jax.random.normal(next(keys), shape, jnp.float32)

    ones = lambda s: jnp.ones(s, jnp.float32)
    zeros = lambda s: jnp.zeros(s, jnp.float32)
    return (ones((n_layers, 1, D)), zeros((n_layers, 1, D)),                            # ln1
            w((n_layers, D, 3 * D)).astype(jnp.bfloat16), zeros((n_layers, 1, 3 * D)),  # qkv
            w((n_layers, D, D)).astype(jnp.bfloat16), zeros((n_layers, 1, D)),          # out proj
            ones((n_layers, 1, D)), zeros((n_layers, 1, D)),                            # ln2
            w((n_layers, D, H)).astype(jnp.bfloat16), zeros((n_layers, 1, H)),          # fc1
            w((n_layers, H, D)).astype(jnp.bfloat16), zeros((n_layers, 1, D)))          # fc2


def init_params(seed=0):
    # TODO(synk): no pretrained checkpoint load — deterministic random weights.
    keys = iter(jax.random.split(jax.random.PRNGKey(seed), 256))

    def w(shape, scale=0.05):
        return scale * jax.random.normal(next(keys), shape, jnp.float32)

    return {
        "patch_w": w((3 * PATCH * PATCH, V_WIDTH)).astype(jnp.bfloat16),
        "patch_b": jnp.zeros((1, V_WIDTH), jnp.float32),
        "cls":     w((1, V_WIDTH), 0.02),
        "v_pos":   w((V_SEQ, V_WIDTH), 0.02),
        "v_layers": _init_layers(keys, V_WIDTH, N_LAYERS),
        "v_lnf_w": jnp.ones((1, V_WIDTH), jnp.float32),
        "v_lnf_b": jnp.zeros((1, V_WIDTH), jnp.float32),
        "v_proj":  w((V_WIDTH, EMBED)).astype(jnp.bfloat16),
        "tok_emb": w((VOCAB, T_WIDTH), 0.02),
        "t_pos":   w((T_CTX, T_WIDTH), 0.02),
        "t_layers": _init_layers(keys, T_WIDTH, N_LAYERS),
        "t_lnf_w": jnp.ones((1, T_WIDTH), jnp.float32),
        "t_lnf_b": jnp.zeros((1, T_WIDTH), jnp.float32),
        "t_proj":  w((T_WIDTH, EMBED)).astype(jnp.bfloat16),
    }


# ---------------------------------- encoders ----------------------------------
def encode_image(images, params, div255=False):
    if div255:
        images = images.astype(jnp.float32) / 255.0
    B = images.shape[0]
    # TODO(synk): jax.image.resize bicubic coefficients differ slightly from torch bicubic.
    images = jax.image.resize(images.astype(jnp.float32),
                              (B, 3, IMG_RES, IMG_RES), method="bicubic")
    images = (images - OPENAI_CLIP_MEAN[None, :, None, None]) \
             / OPENAI_CLIP_STD[None, :, None, None]
    # patchify: stride-P, kernel-P conv == matmul over flattened (C,P,P) patches
    g = IMG_RES // PATCH
    cpp = 3 * PATCH * PATCH
    patches = images.reshape(B, 3, g, PATCH, g, PATCH).transpose(0, 2, 4, 1, 3, 5)
    patches = patches.reshape(B, N_PATCH, cpp)

    # row 0 = cls slot (zeros), rows 1..16 = patches, rows 17..23 = seq padding
    x_in = jnp.concatenate([jnp.zeros((B, 1, cpp), jnp.float32), patches,
                            jnp.zeros((B, V_SEQ_PAD - V_SEQ, cpp), jnp.float32)],
                           axis=1)                                   # (B, 24, cpp)
    # additive term folding cls token, positional embedding and patch bias
    in_add = jnp.concatenate(
        [params["cls"] + params["v_pos"][0:1],
         params["v_pos"][1:] + params["patch_b"],
         jnp.zeros((V_SEQ_PAD - V_SEQ, V_WIDTH), jnp.float32)], axis=0)   # (24, D)

    key_ok = jnp.arange(V_SEQ_PAD) < V_SEQ
    mask = jnp.broadcast_to(
        jnp.where(key_ok, 0.0, -1e9).astype(jnp.float32)[None, :],
        (V_SEQ_PAD, V_SEQ_PAD))                                       # pad-key mask
    pool = jnp.zeros((B, V_SEQ_PAD, 1), jnp.float32).at[:, 0, 0].set(1.0)  # cls pool
    combine = jnp.eye(B, dtype=jnp.float32)                          # identity combine

    return run_encoder(x_in, mask, pool, combine, params["v_layers"],
                       params["v_lnf_w"], params["v_lnf_b"], params["v_proj"],
                       N_HEADS, in_w=params["patch_w"], in_add=in_add)   # (B, EMBED)


def tokenize_batch(texts):
    # TODO(synk): open_clip BPE tokenizer replaced with a deterministic char-level tokenizer.
    sot, eot = VOCAB - 2, VOCAB - 1
    per_text = []
    for text in texts:
        t = text.rstrip()
        segments = [t[i:i + MAX_SEG_CHARS]
                    for i in range(0, len(t), MAX_SEG_CHARS)] or [""]
        ids_list = []
        for seg in segments:
            ids = [sot] + [(ord(c) % (VOCAB - 3)) + 1 for c in seg][:T_CTX - 2] + [eot]
            ids = ids + [0] * (T_CTX - len(ids))
            ids_list.append(ids)
        per_text.append(ids_list)
    n_max = max(len(p) for p in per_text)
    dummy = [sot, eot] + [0] * (T_CTX - 2)
    tokens, seg_mask = [], []
    for p in per_text:
        n = len(p)
        tokens.append(p + [dummy] * (n_max - n))
        seg_mask.append([1.0] * n + [0.0] * (n_max - n))
    return (jnp.array(tokens, jnp.int32),        # (B, n_max, T_CTX)
            jnp.array(seg_mask, jnp.float32))    # (B, n_max)


def encode_text(texts, params):
    tokens, seg_mask = tokenize_batch(texts)
    B, n_max, _ = tokens.shape
    flat = tokens.reshape(B * n_max, T_CTX)                  # all segments batched
    x = jnp.take(params["tok_emb"], flat, axis=0) + params["t_pos"][None]
    causal = jnp.where(jnp.tril(jnp.ones((T_CTX, T_CTX), bool)),
                       0.0, -1e9).astype(jnp.float32)
    eot_idx = jnp.argmax(flat, axis=-1)                      # EOT has max id
    pool = jax.nn.one_hot(eot_idx, T_CTX, dtype=jnp.float32)[:, :, None]

    # segment-mean combine matrix (B, B*n_max), fused into the encoder kernel
    counts = jnp.sum(seg_mask, axis=1, keepdims=True)
    w = seg_mask / counts                                    # (B, n_max)
    combine = (jnp.eye(B, dtype=jnp.float32)[:, :, None]
               * w[None, :, :]).reshape(B, B * n_max)

    return run_encoder(x, causal, pool, combine, params["t_layers"],
                       params["t_lnf_w"], params["t_lnf_b"], params["t_proj"],
                       N_HEADS)                              # (B, EMBED)


def clip_forward(images, texts, params, div255=False):
    assert images.shape[0] == len(texts)
    image_features = encode_image(images, params, div255=div255)   # (B, EMBED)
    text_features = encode_text(texts, params)                     # (B, EMBED)
    # F.normalize both, then concat along dim 1  ->  (B, 2*EMBED)
    return norm_concat(image_features, text_features)


# ------------------------------------ main -------------------------------------
if __name__ == "__main__":
    key = jax.random.PRNGKey(0)
    B = 2
    images = jax.random.uniform(key, (B, 3, 16, 16), jnp.float32)  # NCHW, like PyTorch
    texts = [
        "a photo of a cat sitting on a mat",
        "a very long diagram caption " * 5,   # > 77 chars → exercises segment averaging
    ]

    params = init_params(seed=0)
    out = clip_forward(images, texts, params, div255=False)
    out = jax.block_until_ready(out)

    assert out.shape == (B, 2 * EMBED), out.shape
    assert jnp.all(jnp.isfinite(out))
    print("KERNEL_OK")
</pallas_src>

<mosaic_0001>
module attributes {stable_mosaic.version = 11 : i64} {
  func.func @encoder_kernel(%arg0: memref<2x24x192xf32, #tpu.memory_space<vmem>>, %arg1: memref<192x64xbf16, #tpu.memory_space<vmem>>, %arg2: memref<24x64xf32, #tpu.memory_space<vmem>>, %arg3: memref<24x24xf32, #tpu.memory_space<vmem>>, %arg4: memref<2x24x1xf32, #tpu.memory_space<vmem>>, %arg5: memref<2x2xf32, #tpu.memory_space<vmem>>, %arg6: memref<2x1x64xf32, #tpu.memory_space<vmem>>, %arg7: memref<2x1x64xf32, #tpu.memory_space<vmem>>, %arg8: memref<2x64x192xbf16, #tpu.memory_space<vmem>>, %arg9: memref<2x1x192xf32, #tpu.memory_space<vmem>>, %arg10: memref<2x64x64xbf16, #tpu.memory_space<vmem>>, %arg11: memref<2x1x64xf32, #tpu.memory_space<vmem>>, %arg12: memref<2x1x64xf32, #tpu.memory_space<vmem>>, %arg13: memref<2x1x64xf32, #tpu.memory_space<vmem>>, %arg14: memref<2x64x256xbf16, #tpu.memory_space<vmem>>, %arg15: memref<2x1x256xf32, #tpu.memory_space<vmem>>, %arg16: memref<2x256x64xbf16, #tpu.memory_space<vmem>>, %arg17: memref<2x1x64xf32, #tpu.memory_space<vmem>>, %arg18: memref<1x64xf32, #tpu.memory_space<vmem>>, %arg19: memref<1x64xf32, #tpu.memory_space<vmem>>, %arg20: memref<64x32xbf16, #tpu.memory_space<vmem>>, %arg21: memref<2x32xf32, #tpu.memory_space<vmem>>) attributes {dimension_semantics = [], scalar_prefetch = 0 : i64, scratch_operands = 0 : i64, tpu.core_type = #tpu.core_type<tc>} {
    %c0 = arith.constant 0 : index
    %c0_0 = arith.constant 0 : index
    %0 = vector.load %arg3[%c0, %c0_0] : memref<24x24xf32, #tpu.memory_space<vmem>>, vector<24x24xf32>
    %c0_1 = arith.constant 0 : index
    %c0_2 = arith.constant 0 : index
    %c0_3 = arith.constant 0 : index
    %1 = vector.load %arg0[%c0_1, %c0_2, %c0_3] : memref<2x24x192xf32, #tpu.memory_space<vmem>>, vector<2x24x192xf32>
    %2 = vector.shape_cast %1 : vector<2x24x192xf32> to vector<48x192xf32>
    %3 = arith.truncf %2 : vector<48x192xf32> to vector<48x192xbf16>
    %c0_4 = arith.constant 0 : index
    %c0_5 = arith.constant 0 : index
    %4 = vector.load %arg1[%c0_4, %c0_5] : memref<192x64xbf16, #tpu.memory_space<vmem>>, vector<192x64xbf16>
    %cst = arith.constant dense<0.000000e+00> : vector<48x64xf32>
    %5 = tpu.matmul %3, %4, %cst {dimension_numbers = #tpu.dot_dimension_numbers<[1], [0], [0], [1], [0, 0, 1, 1], [], []>} : vector<48x192xbf16>, vector<192x64xbf16>, vector<48x64xf32> -> vector<48x64xf32>
    %6 = vector.shape_cast %5 : vector<48x64xf32> to vector<2x24x64xf32>
    %c0_6 = arith.constant 0 : index
    %c0_7 = arith.constant 0 : index
    %7 = vector.load %arg2[%c0_6, %c0_7] : memref<24x64xf32, #tpu.memory_space<vmem>>, vector<24x64xf32>
    %8 = vector.shape_cast %7 : vector<24x64xf32> to vector<1x24x64xf32>
    %9 = vector.broadcast %8 : vector<1x24x64xf32> to vector<2x24x64xf32>
    %10 = arith.addf %6, %9 : vector<2x24x64xf32>
    %11 = vector.shape_cast %10 : vector<2x24x64xf32> to vector<48x64xf32>
    %c0_8 = arith.constant 0 : index
    %c0_9 = arith.constant 0 : index
    %c0_10 = arith.constant 0 : index
    %12 = vector.load %arg6[%c0_8, %c0_9, %c0_10] : memref<2x1x64xf32, #tpu.memory_space<vmem>>, vector<1x1x64xf32>
    %13 = vector.shape_cast %12 : vector<1x1x64xf32> to vector<1x64xf32>
    %c0_11 = arith.constant 0 : index
    %c0_12 = arith.constant 0 : index
    %c0_13 = arith.constant 0 : index
    %14 = vector.load %arg7[%c0_11, %c0_12, %c0_13] : memref<2x1x64xf32, #tpu.memory_space<vmem>>, vector<1x1x64xf32>
    %15 = vector.shape_cast %14 : vector<1x1x64xf32> to vector<1x64xf32>
    %cst_14 = arith.constant dense<0.000000e+00> : vector<48xf32>
    %16 = vector.multi_reduction <add>, %11, %cst_14 [1] : vector<48x64xf32> to vector<48xf32>
    %17 = vector.shape_cast %16 : vector<48xf32> to vector<48x1xf32>
    %cst_15 = arith.constant 6.400000e+01 : f32
    %18 = vector.broadcast %cst_15 : f32 to vector<48x1xf32>
    %19 = arith.divf %17, %18 : vector<48x1xf32>
    %20 = vector.broadcast %19 : vector<48x1xf32> to vector<48x64xf32>
    %21 = arith.subf %11, %20 : vector<48x64xf32>
    %22 = arith.mulf %21, %21 : vector<48x64xf32>
    %cst_16 = arith.constant dense<0.000000e+00> : vector<48xf32>
    %23 = vector.multi_reduction <add>, %22, %cst_16 [1] : vector<48x64xf32> to vector<48xf32>
    %24 = vector.shape_cast %23 : vector<48xf32> to vector<48x1xf32>
    %cst_17 = arith.constant 6.400000e+01 : f32
    %25 = vector.broadcast %cst_17 : f32 to vector<48x1xf32>
    %26 = arith.divf %24, %25 : vector<48x1xf32>
    %27 = vector.broadcast %19 : vector<48x1xf32> to vector<48x64xf32>
    %28 = arith.subf %11, %27 : vector<48x64xf32>
    %cst_18 = arith.constant 9.99999974E-6 : f32
    %29 = vector.broadcast %cst_18 : f32 to vector<48x1xf32>
    %30 = arith.addf %26, %29 : vector<48x1xf32>
    %31 = math.rsqrt %30 : vector<48x1xf32>
    %32 = vector.broadcast %31 : vector<48x1xf32> to vector<48x64xf32>
    %33 = arith.mulf %28, %32 : vector<48x64xf32>
    %34 = vector.broadcast %13 : vector<1x64xf32> to vector<48x64xf32>
    %35 = arith.mulf %33, %34 : vector<48x64xf32>
    %36 = vector.broadcast %15 : vector<1x64xf32> to vector<48x64xf32>
    %37 = arith.addf %35, %36 : vector<48x64xf32>
    %38 = arith.truncf %37 : vector<48x64xf32> to vector<48x64xbf16>
    %c0_19 = arith.constant 0 : index
    %c0_20 = arith.constant 0 : index
    %c0_21 = arith.constant 0 : index
    %39 = vector.load %arg8[%c0_19, %c0_20, %c0_21] : memref<2x64x192xbf16, #tpu.memory_space<vmem>>, vector<1x64x192xbf16>
    %40 = vector.shape_cast %39 : vector<1x64x192xbf16> to vector<64x192xbf16>
    %cst_22 = arith.constant dense<0.000000e+00> : vector<48x192xf32>
    %41 = tpu.matmul %38, %40, %cst_22 {dimension_numbers = #tpu.dot_dimension_numbers<[1], [0], [0], [1], [0, 0, 1, 1], [], []>} : vector<48x64xbf16>, vector<64x192xbf16>, vector<48x192xf32> -> vector<48x192xf32>
    %c0_23 = arith.constant 0 : index
    %c0_24 = arith.constant 0 : index
    %c0_25 = arith.constant 0 : index
    %42 = vector.load %arg9[%c0_23, %c0_24, %c0_25] : memref<2x1x192xf32, #tpu.memory_space<vmem>>, vector<1x1x192xf32>
    %43 = vector.shape_cast %42 : vector<1x1x192xf32> to vector<1x192xf32>
    %44 = vector.broadcast %43 : vector<1x192xf32> to vector<48x192xf32>
    %45 = arith.addf %41, %44 : vector<48x192xf32>
    %46 = vector.extract_strided_slice %45 {offsets = [0, 0], sizes = [48, 16], strides = [1, 1]} : vector<48x192xf32> to vector<48x16xf32>
    %47 = vector.shape_cast %46 : vector<48x16xf32> to vector<2x24x16xf32>
    %48 = vector.extract_strided_slice %45 {offsets = [0, 16], sizes = [48, 16], strides = [1, 1]} : vector<48x192xf32> to vector<48x16xf32>
    %49 = vector.shape_cast %48 : vector<48x16xf32> to vector<2x24x16xf32>
    %50 = vector.extract_strided_slice %45 {offsets = [0, 32], sizes = [48, 16], strides = [1, 1]} : vector<48x192xf32> to vector<48x16xf32>
    %51 = vector.shape_cast %50 : vector<48x16xf32> to vector<2x24x16xf32>
    %52 = vector.extract_strided_slice %45 {offsets = [0, 48], sizes = [48, 16], strides = [1, 1]} : vector<48x192xf32> to vector<48x16xf32>
    %53 = vector.shape_cast %52 : vector<48x16xf32> to vector<2x24x16xf32>
    %54 = tpu.concatenate %47, %49, %51, %53 in 0 : vector<2x24x16xf32>, vector<2x24x16xf32>, vector<2x24x16xf32>, vector<2x24x16xf32> -> vector<8x24x16xf32>
    %cst_26 = arith.constant 2.500000e-01 : f32
    %55 = vector.broadcast %cst_26 : f32 to vector<8x24x16xf32>
    %56 = arith.mulf %54, %55 : vector<8x24x16xf32>
    %57 = vector.extract_strided_slice %45 {offsets = [0, 64], sizes = [48, 16], strides = [1, 1]} : vector<48x192xf32> to vector<48x16xf32>
    %58 = vector.shape_cast %57 : vector<48x16xf32> to vector<2x24x16xf32>
    %59 = vector.extract_strided_slice %45 {offsets = [0, 80], sizes = [48, 16], strides = [1, 1]} : vector<48x192xf32> to vector<48x16xf32>
    %60 = vector.shape_cast %59 : vector<48x16xf32> to vector<2x24x16xf32>
    %61 = vector.extract_strided_slice %45 {offsets = [0, 96], sizes = [48, 16], strides = [1, 1]} : vector<48x192xf32> to vector<48x16xf32>
    %62 = vector.shape_cast %61 : vector<48x16xf32> to vector<2x24x16xf32>
    %63 = vector.extract_strided_slice %45 {offsets = [0, 112], sizes = [48, 16], strides = [1, 1]} : vector<48x192xf32> to vector<48x16xf32>
    %64 = vector.shape_cast %63 : vector<48x16xf32> to vector<2x24x16xf32>
    %65 = tpu.concatenate %58, %60, %62, %64 in 0 : vector<2x24x16xf32>, vector<2x24x16xf32>, vector<2x24x16xf32>, vector<2x24x16xf32> -> vector<8x24x16xf32>
    %66 = vector.extract_strided_slice %45 {offsets = [0, 128], sizes = [48, 16], strides = [1, 1]} : vector<48x192xf32> to vector<48x16xf32>
    %67 = vector.shape_cast %66 : vector<48x16xf32> to vector<2x24x16xf32>
    %68 = vector.extract_strided_slice %45 {offsets = [0, 144], sizes = [48, 16], strides = [1, 1]} : vector<48x192xf32> to vector<48x16xf32>
    %69 = vector.shape_cast %68 : vector<48x16xf32> to vector<2x24x16xf32>
    %70 = vector.extract_strided_slice %45 {offsets = [0, 160], sizes = [48, 16], strides = [1, 1]} : vector<48x192xf32> to vector<48x16xf32>
    %71 = vector.shape_cast %70 : vector<48x16xf32> to vector<2x24x16xf32>
    %72 = vector.extract_strided_slice %45 {offsets = [0, 176], sizes = [48, 16], strides = [1, 1]} : vector<48x192xf32> to vector<48x16xf32>
    %73 = vector.shape_cast %72 : vector<48x16xf32> to vector<2x24x16xf32>
    %74 = tpu.concatenate %67, %69, %71, %73 in 0 : vector<2x24x16xf32>, vector<2x24x16xf32>, vector<2x24x16xf32>, vector<2x24x16xf32> -> vector<8x24x16xf32>
    %75 = arith.truncf %56 : vector<8x24x16xf32> to vector<8x24x16xbf16>
    %76 = arith.truncf %65 : vector<8x24x16xf32> to vector<8x24x16xbf16>
    "tpu.trace_start"() <{level = 10 : i32, message = "gqd,gkd->gqk"}> : () -> ()
    %cst_27 = arith.constant dense<0.000000e+00> : vector<8x24x24xf32>
    %77 = tpu.matmul %75, %76, %cst_27 {dimension_numbers = #tpu.dot_dimension_numbers<[2], [2], [1], [1], [0, 0, 0, 1, 1, 1], [0], [0]>} : vector<8x24x16xbf16>, vector<8x24x16xbf16>, vector<8x24x24xf32> -> vector<8x24x24xf32>
    "tpu.trace_stop"() : () -> ()
    %78 = vector.shape_cast %0 : vector<24x24xf32> to vector<1x24x24xf32>
    %79 = vector.broadcast %78 : vector<1x24x24xf32> to vector<8x24x24xf32>
    %80 = arith.addf %77, %79 : vector<8x24x24xf32>
    %cst_28 = arith.constant dense<0xFF800000> : vector<8x24xf32>
    %81 = vector.multi_reduction <maximumf>, %80, %cst_28 [2] : vector<8x24x24xf32> to vector<8x24xf32>
    %82 = vector.shape_cast %81 : vector<8x24xf32> to vector<8x24x1xf32>
    %83 = vector.broadcast %82 : vector<8x24x1xf32> to vector<8x24x24xf32>
    %84 = arith.subf %80, %83 : vector<8x24x24xf32>
    %85 = math.exp %84 : vector<8x24x24xf32>
    %cst_29 = arith.constant dense<0.000000e+00> : vector<8x24xf32>
    %86 = vector.multi_reduction <add>, %85, %cst_29 [2] : vector<8x24x24xf32> to vector<8x24xf32>
    %87 = vector.shape_cast %86 : vector<8x24xf32> to vector<8x24x1xf32>
    %88 = tpu.reciprocal %87 {approx = true} : vector<8x24x1xf32> -> vector<8x24x1xf32>
    %89 = vector.broadcast %88 : vector<8x24x1xf32> to vector<8x24x24xf32>
    %90 = arith.mulf %85, %89 : vector<8x24x24xf32>
    %91 = arith.truncf %90 : vector<8x24x24xf32> to vector<8x24x24xbf16>
    %92 = arith.truncf %74 : vector<8x24x16xf32> to vector<8x24x16xbf16>
    "tpu.trace_start"() <{level = 10 : i32, message = "gqk,gkd->gqd"}> : () -> ()
    %cst_30 = arith.constant dense<0.000000e+00> : vector<8x24x16xf32>
    %93 = tpu.matmul %91, %92, %cst_30 {dimension_numbers = #tpu.dot_dimension_numbers<[2], [1], [1], [2], [0, 0, 0, 1, 1, 2], [0], [0]>} : vector<8x24x24xbf16>, vector<8x24x16xbf16>, vector<8x24x16xf32> -> vector<8x24x16xf32>
    "tpu.trace_stop"() : () -> ()
    %94 = vector.extract_strided_slice %93 {offsets = [0, 0, 0], sizes = [2, 24, 16], strides = [1, 1, 1]} : vector<8x24x16xf32> to vector<2x24x16xf32>
    %95 = vector.shape_cast %94 : vector<2x24x16xf32> to vector<48x16xf32>
    %96 = vector.extract_strided_slice %93 {offsets = [2, 0, 0], sizes = [2, 24, 16], strides = [1, 1, 1]} : vector<8x24x16xf32> to vector<2x24x16xf32>
    %97 = vector.shape_cast %96 : vector<2x24x16xf32> to vector<48x16xf32>
    %98 = vector.extract_strided_slice %93 {offsets = [4, 0, 0], sizes = [2, 24, 16], strides = [1, 1, 1]} : vector<8x24x16xf32> to vector<2x24x16xf32>
    %99 = vector.shape_cast %98 : vector<2x24x16xf32> to vector<48x16xf32>
    %100 = vector.extract_strided_slice %93 {offsets = [6, 0, 0], sizes = [2, 24, 16], strides = [1, 1, 1]} : vector<8x24x16xf32> to vector<2x24x16xf32>
    %101 = vector.shape_cast %100 : vector<2x24x16xf32> to vector<48x16xf32>
    %102 = tpu.concatenate %95, %97, %99, %101 in 1 : vector<48x16xf32>, vector<48x16xf32>, vector<48x16xf32>, vector<48x16xf32> -> vector<48x64xf32>
    %103 = arith.truncf %102 : vector<48x64xf32> to vector<48x64xbf16>
    %c0_31 = arith.constant 0 : index
    %c0_32 = arith.constant 0 : index
    %c0_33 = arith.constant 0 : index
    %104 = vector.load %arg10[%c0_31, %c0_32, %c0_33] : memref<2x64x64xbf16, #tpu.memory_space<vmem>>, vector<1x64x64xbf16>
    %105 = vector.shape_cast %104 : vector<1x64x64xbf16> to vector<64x64xbf16>
    %cst_34 = arith.constant dense<0.000000e+00> : vector<48x64xf32>
    %106 = tpu.matmul %103, %105, %cst_34 {dimension_numbers = #tpu.dot_dimension_numbers<[1], [0], [0], [1], [0, 0, 1, 1], [], []>} : vector<48x64xbf16>, vector<64x64xbf16>, vector<48x64xf32> -> vector<48x64xf32>
    %107 = arith.addf %11, %106 : vector<48x64xf32>
    %c0_35 = arith.constant 0 : index
    %c0_36 = arith.constant 0 : index
    %c0_37 = arith.constant 0 : index
    %108 = vector.load %arg11[%c0_35, %c0_36, %c0_37] : memref<2x1x64xf32, #tpu.memory_space<vmem>>, vector<1x1x64xf32>
    %109 = vector.shape_cast %108 : vector<1x1x64xf32> to vector<1x64xf32>
    %110 = vector.broadcast %109 : vector<1x64xf32> to vector<48x64xf32>
    %111 = arith.addf %107, %110 : vector<48x64xf32>
    %c0_38 = arith.constant 0 : index
    %c0_39 = arith.constant 0 : index
    %c0_40 = arith.constant 0 : index
    %112 = vector.load %arg12[%c0_38, %c0_39, %c0_40] : memref<2x1x64xf32, #tpu.memory_space<vmem>>, vector<1x1x64xf32>
    %113 = vector.shape_cast %112 : vector<1x1x64xf32> to vector<1x64xf32>
    %c0_41 = arith.constant 0 : index
    %c0_42 = arith.constant 0 : index
    %c0_43 = arith.constant 0 : index
    %114 = vector.load %arg13[%c0_41, %c0_42, %c0_43] : memref<2x1x64xf32, #tpu.memory_space<vmem>>, vector<1x1x64xf32>
    %115 = vector.shape_cast %114 : vector<1x1x64xf32> to vector<1x64xf32>
    %cst_44 = arith.constant dense<0.000000e+00> : vector<48xf32>
    %116 = vector.multi_reduction <add>, %111, %cst_44 [1] : vector<48x64xf32> to vector<48xf32>
    %117 = vector.shape_cast %116 : vector<48xf32> to vector<48x1xf32>
    %cst_45 = arith.constant 6.400000e+01 : f32
    %118 = vector.broadcast %cst_45 : f32 to vector<48x1xf32>
    %119 = arith.divf %117, %118 : vector<48x1xf32>
    %120 = vector.broadcast %119 : vector<48x1xf32> to vector<48x64xf32>
    %121 = arith.subf %111, %120 : vector<48x64xf32>
    %122 = arith.mulf %121, %121 : vector<48x64xf32>
    %cst_46 = arith.constant dense<0.000000e+00> : vector<48xf32>
    %123 = vector.multi_reduction <add>, %122, %cst_46 [1] : vector<48x64xf32> to vector<48xf32>
    %124 = vector.shape_cast %123 : vector<48xf32> to vector<48x1xf32>
    %cst_47 = arith.constant 6.400000e+01 : f32
    %125 = vector.broadcast %cst_47 : f32 to vector<48x1xf32>
    %126 = arith.divf %124, %125 : vector<48x1xf32>
    %127 = vector.broadcast %119 : vector<48x1xf32> to vector<48x64xf32>
    %128 = arith.subf %111, %127 : vector<48x64xf32>
    %cst_48 = arith.constant 9.99999974E-6 : f32
    %129 = vector.broadcast %cst_48 : f32 to vector<48x1xf32>
    %130 = arith.addf %126, %129 : vector<48x1xf32>
    %131 = math.rsqrt %130 : vector<48x1xf32>
    %132 = vector.broadcast %131 : vector<48x1xf32> to vector<48x64xf32>
    %133 = arith.mulf %128, %132 : vector<48x64xf32>
    %134 = vector.broadcast %113 : vector<1x64xf32> to vector<48x64xf32>
    %135 = arith.mulf %133, %134 : vector<48x64xf32>
    %136 = vector.broadcast %115 : vector<1x64xf32> to vector<48x64xf32>
    %137 = arith.addf %135, %136 : vector<48x64xf32>
    %138 = arith.truncf %137 : vector<48x64xf32> to vector<48x64xbf16>
    %c0_49 = arith.constant 0 : index
    %c0_50 = arith.constant 0 : index
    %c0_51 = arith.constant 0 : index
    %139 = vector.load %arg14[%c0_49, %c0_50, %c0_51] : memref<2x64x256xbf16, #tpu.memory_space<vmem>>, vector<1x64x256xbf16>
    %140 = vector.shape_cast %139 : vector<1x64x256xbf16> to vector<64x256xbf16>
    %cst_52 = arith.constant dense<0.000000e+00> : vector<48x256xf32>
    %141 = tpu.matmul %138, %140, %cst_52 {dimension_numbers = #tpu.dot_dimension_numbers<[1], [0], [0], [1], [0, 0, 1, 1], [], []>} : vector<48x64xbf16>, vector<64x256xbf16>, vector<48x256xf32> -> vector<48x256xf32>
    %c0_53 = arith.constant 0 : index
    %c0_54 = arith.constant 0 : index
    %c0_55 = arith.constant 0 : index
    %142 = vector.load %arg15[%c0_53, %c0_54, %c0_55] : memref<2x1x256xf32, #tpu.memory_space<vmem>>, vector<1x1x256xf32>
    %143 = vector.shape_cast %142 : vector<1x1x256xf32> to vector<1x256xf32>
    %144 = vector.broadcast %143 : vector<1x256xf32> to vector<48x256xf32>
    %145 = arith.addf %141, %144 : vector<48x256xf32>
    %cst_56 = arith.constant 1.702000e+00 : f32
    %146 = vector.broadcast %cst_56 : f32 to vector<48x256xf32>
    %147 = arith.mulf %146, %145 : vector<48x256xf32>
    %148 = arith.negf %147 : vector<48x256xf32>
    %149 = math.exp %148 : vector<48x256xf32>
    %cst_57 = arith.constant 1.000000e+00 : f32
    %150 = vector.broadcast %cst_57 : f32 to vector<48x256xf32>
    %151 = arith.addf %150, %149 : vector<48x256xf32>
    %152 = arith.divf %150, %151 : vector<48x256xf32>
    %153 = arith.mulf %145, %152 : vector<48x256xf32>
    %154 = arith.truncf %153 : vector<48x256xf32> to vector<48x256xbf16>
    %c0_58 = arith.constant 0 : index
    %c0_59 = arith.constant 0 : index
    %c0_60 = arith.constant 0 : index
    %155 = vector.load %arg16[%c0_58, %c0_59, %c0_60] : memref<2x256x64xbf16, #tpu.memory_space<vmem>>, vector<1x256x64xbf16>
    %156 = vector.shape_cast %155 : vector<1x256x64xbf16> to vector<256x64xbf16>
    %cst_61 = arith.constant dense<0.000000e+00> : vector<48x64xf32>
    %157 = tpu.matmul %154, %156, %cst_61 {dimension_numbers = #tpu.dot_dimension_numbers<[1], [0], [0], [1], [0, 0, 1, 1], [], []>} : vector<48x256xbf16>, vector<256x64xbf16>, vector<48x64xf32> -> vector<48x64xf32>
    %158 = arith.addf %111, %157 : vector<48x64xf32>
    %c0_62 = arith.constant 0 : index
    %c0_63 = arith.constant 0 : index
    %c0_64 = arith.constant 0 : index
    %159 = vector.load %arg17[%c0_62, %c0_63, %c0_64] : memref<2x1x64xf32, #tpu.memory_space<vmem>>, vector<1x1x64xf32>
    %160 = vector.shape_cast %159 : vector<1x1x64xf32> to vector<1x64xf32>
    %161 = vector.broadcast %160 : vector<1x64xf32> to vector<48x64xf32>
    %162 = arith.addf %158, %161 : vector<48x64xf32>
    %c1 = arith.constant 1 : index
    %c0_65 = arith.constant 0 : index
    %c0_66 = arith.constant 0 : index
    %163 = vector.load %arg6[%c1, %c0_65, %c0_66] : memref<2x1x64xf32, #tpu.memory_space<vmem>>, vector<1x1x64xf32>
    %164 = vector.shape_cast %163 : vector<1x1x64xf32> to vector<1x64xf32>
    %c1_67 = arith.constant 1 : index
    %c0_68 = arith.constant 0 : index
    %c0_69 = arith.constant 0 : index
    %165 = vector.load %arg7[%c1_67, %c0_68, %c0_69] : memref<2x1x64xf32, #tpu.memory_space<vmem>>, vector<1x1x64xf32>
    %166 = vector.shape_cast %165 : vector<1x1x64xf32> to vector<1x64xf32>
    %cst_70 = arith.constant dense<0.000000e+00> : vector<48xf32>
    %167 = vector.multi_reduction <add>, %162, %cst_70 [1] : vector<48x64xf32> to vector<48xf32>
    %168 = vector.shape_cast %167 : vector<48xf32> to vector<48x1xf32>
    %cst_71 = arith.constant 6.400000e+01 : f32
    %169 = vector.broadcast %cst_71 : f32 to vector<48x1xf32>
    %170 = arith.divf %168, %169 : vector<48x1xf32>
    %171 = vector.broadcast %170 : vector<48x1xf32> to vector<48x64xf32>
    %172 = arith.subf %162, %171 : vector<48x64xf32>
    %173 = arith.mulf %172, %172 : vector<48x64xf32>
    %cst_72 = arith.constant dense<0.000000e+00> : vector<48xf32>
    %174 = vector.multi_reduction <add>, %173, %cst_72 [1] : vector<48x64xf32> to vector<48xf32>
    %175 = vector.shape_cast %174 : vector<48xf32> to vector<48x1xf32>
    %cst_73 = arith.constant 6.400000e+01 : f32
    %176 = vector.broadcast %cst_73 : f32 to vector<48x1xf32>
    %177 = arith.divf %175, %176 : vector<48x1xf32>
    %178 = vector.broadcast %170 : vector<48x1xf32> to vector<48x64xf32>
    %179 = arith.subf %162, %178 : vector<48x64xf32>
    %cst_74 = arith.constant 9.99999974E-6 : f32
    %180 = vector.broadcast %cst_74 : f32 to vector<48x1xf32>
    %181 = arith.addf %177, %180 : vector<48x1xf32>
    %182 = math.rsqrt %181 : vector<48x1xf32>
    %183 = vector.broadcast %182 : vector<48x1xf32> to vector<48x64xf32>
    %184 = arith.mulf %179, %183 : vector<48x64xf32>
    %185 = vector.broadcast %164 : vector<1x64xf32> to vector<48x64xf32>
    %186 = arith.mulf %184, %185 : vector<48x64xf32>
    %187 = vector.broadcast %166 : vector<1x64xf32> to vector<48x64xf32>
    %188 = arith.addf %186, %187 : vector<48x64xf32>
    %189 = arith.truncf %188 : vector<48x64xf32> to vector<48x64xbf16>
    %c1_75 = arith.constant 1 : index
    %c0_76 = arith.constant 0 : index
    %c0_77 = arith.constant 0 : index
    %190 = vector.load %arg8[%c1_75, %c0_76, %c0_77] : memref<2x64x192xbf16, #tpu.memory_space<vmem>>, vector<1x64x192xbf16>
    %191 = vector.shape_cast %190 : vector<1x64x192xbf16> to vector<64x192xbf16>
    %cst_78 = arith.constant dense<0.000000e+00> : vector<48x192xf32>
    %192 = tpu.matmul %189, %191, %cst_78 {dimension_numbers = #tpu.dot_dimension_numbers<[1], [0], [0], [1], [0, 0, 1, 1], [], []>} : vector<48x64xbf16>, vector<64x192xbf16>, vector<48x192xf32> -> vector<48x192xf32>
    %c1_79 = arith.constant 1 : index
    %c0_80 = arith.constant 0 : index
    %c0_81 = arith.constant 0 : index
    %193 = vector.load %arg9[%c1_79, %c0_80, %c0_81] : memref<2x1x192xf32, #tpu.memory_space<vmem>>, vector<1x1x192xf32>
    %194 = vector.shape_cast %193 : vector<1x1x192xf32> to vector<1x192xf32>
    %195 = vector.broadcast %194 : vector<1x192xf32> to vector<48x192xf32>
    %196 = arith.addf %192, %195 : vector<48x192xf32>
    %197 = vector.extract_strided_slice %196 {offsets = [0, 0], sizes = [48, 16], strides = [1, 1]} : vector<48x192xf32> to vector<48x16xf32>
    %198 = vector.shape_cast %197 : vector<48x16xf32> to vector<2x24x16xf32>
    %199 = vector.extract_strided_slice %196 {offsets = [0, 16], sizes = [48, 16], strides = [1, 1]} : vector<48x192xf32> to vector<48x16xf32>
    %200 = vector.shape_cast %199 : vector<48x16xf32> to vector<2x24x16xf32>
    %201 = vector.extract_strided_slice %196 {offsets = [0, 32], sizes = [48, 16], strides = [1, 1]} : vector<48x192xf32> to vector<48x16xf32>
    %202 = vector.shape_cast %201 : vector<48x16xf32> to vector<2x24x16xf32>
    %203 = vector.extract_strided_slice %196 {offsets = [0, 48], sizes = [48, 16], strides = [1, 1]} : vector<48x192xf32> to vector<48x16xf32>
    %204 = vector.shape_cast %203 : vector<48x16xf32> to vector<2x24x16xf32>
    %205 = tpu.concatenate %198, %200, %202, %204 in 0 : vector<2x24x16xf32>, vector<2x24x16xf32>, vector<2x24x16xf32>, vector<2x24x16xf32> -> vector<8x24x16xf32>
    %cst_82 = arith.constant 2.500000e-01 : f32
    %206 = vector.broadcast %cst_82 : f32 to vector<8x24x16xf32>
    %207 = arith.mulf %205, %206 : vector<8x24x16xf32>
    %208 = vector.extract_strided_slice %196 {offsets = [0, 64], sizes = [48, 16], strides = [1, 1]} : vector<48x192xf32> to vector<48x16xf32>
    %209 = vector.shape_cast %208 : vector<48x16xf32> to vector<2x24x16xf32>
    %210 = vector.extract_strided_slice %196 {offsets = [0, 80], sizes = [48, 16], strides = [1, 1]} : vector<48x192xf32> to vector<48x16xf32>
    %211 = vector.shape_cast %210 : vector<48x16xf32> to vector<2x24x16xf32>
    %212 = vector.extract_strided_slice %196 {offsets = [0, 96], sizes = [48, 16], strides = [1, 1]} : vector<48x192xf32> to vector<48x16xf32>
    %213 = vector.shape_cast %212 : vector<48x16xf32> to vector<2x24x16xf32>
    %214 = vector.extract_strided_slice %196 {offsets = [0, 112], sizes = [48, 16], strides = [1, 1]} : vector<48x192xf32> to vector<48x16xf32>
    %215 = vector.shape_cast %214 : vector<48x16xf32> to vector<2x24x16xf32>
    %216 = tpu.concatenate %209, %211, %213, %215 in 0 : vector<2x24x16xf32>, vector<2x24x16xf32>, vector<2x24x16xf32>, vector<2x24x16xf32> -> vector<8x24x16xf32>
    %217 = vector.extract_strided_slice %196 {offsets = [0, 128], sizes = [48, 16], strides = [1, 1]} : vector<48x192xf32> to vector<48x16xf32>
    %218 = vector.shape_cast %217 : vector<48x16xf32> to vector<2x24x16xf32>
    %219 = vector.extract_strided_slice %196 {offsets = [0, 144], sizes = [48, 16], strides = [1, 1]} : vector<48x192xf32> to vector<48x16xf32>
    %220 = vector.shape_cast %219 : vector<48x16xf32> to vector<2x24x16xf32>
    %221 = vector.extract_strided_slice %196 {offsets = [0, 160], sizes = [48, 16], strides = [1, 1]} : vector<48x192xf32> to vector<48x16xf32>
    %222 = vector.shape_cast %221 : vector<48x16xf32> to vector<2x24x16xf32>
    %223 = vector.extract_strided_slice %196 {offsets = [0, 176], sizes = [48, 16], strides = [1, 1]} : vector<48x192xf32> to vector<48x16xf32>
    %224 = vector.shape_cast %223 : vector<48x16xf32> to vector<2x24x16xf32>
    %225 = tpu.concatenate %218, %220, %222, %224 in 0 : vector<2x24x16xf32>, vector<2x24x16xf32>, vector<2x24x16xf32>, vector<2x24x16xf32> -> vector<8x24x16xf32>
    %226 = arith.truncf %207 : vector<8x24x16xf32> to vector<8x24x16xbf16>
    %227 = arith.truncf %216 : vector<8x24x16xf32> to vector<8x24x16xbf16>
    "tpu.trace_start"() <{level = 10 : i32, message = "gqd,gkd->gqk"}> : () -> ()
    %cst_83 = arith.constant dense<0.000000e+00> : vector<8x24x24xf32>
    %228 = tpu.matmul %226, %227, %cst_83 {dimension_numbers = #tpu.dot_dimension_numbers<[2], [2], [1], [1], [0, 0, 0, 1, 1, 1], [0], [0]>} : vector<8x24x16xbf16>, vector<8x24x16xbf16>, vector<8x24x24xf32> -> vector<8x24x24xf32>
    "tpu.trace_stop"() : () -> ()
    %229 = vector.shape_cast %0 : vector<24x24xf32> to vector<1x24x24xf32>
    %230 = vector.broadcast %229 : vector<1x24x24xf32> to vector<8x24x24xf32>
    %231 = arith.addf %228, %230 : vector<8x24x24xf32>
    %cst_84 = arith.constant dense<0xFF800000> : vector<8x24xf32>
    %232 = vector.multi_reduction <maximumf>, %231, %cst_84 [2] : vector<8x24x24xf32> to vector<8x24xf32>
    %233 = vector.shape_cast %232 : vector<8x24xf32> to vector<8x24x1xf32>
    %234 = vector.broadcast %233 : vector<8x24x1xf32> to vector<8x24x24xf32>
    %235 = arith.subf %231, %234 : vector<8x24x24xf32>
    %236 = math.exp %235 : vector<8x24x24xf32>
    %cst_85 = arith.constant dense<0.000000e+00> : vector<8x24xf32>
    %237 = vector.multi_reduction <add>, %236, %cst_85 [2] : vector<8x24x24xf32> to vector<8x24xf32>
    %238 = vector.shape_cast %237 : vector<8x24xf32> to vector<8x24x1xf32>
    %239 = tpu.reciprocal %238 {approx = true} : vector<8x24x1xf32> -> vector<8x24x1xf32>
    %240 = vector.broadcast %239 : vector<8x24x1xf32> to vector<8x24x24xf32>
    %241 = arith.mulf %236, %240 : vector<8x24x24xf32>
    %242 = arith.truncf %241 : vector<8x24x24xf32> to vector<8x24x24xbf16>
    %243 = arith.truncf %225 : vector<8x24x16xf32> to vector<8x24x16xbf16>
    "tpu.trace_start"() <{level = 10 : i32, message = "gqk,gkd->gqd"}> : () -> ()
    %cst_86 = arith.constant dense<0.000000e+00> : vector<8x24x16xf32>
    %244 = tpu.matmul %242, %243, %cst_86 {dimension_numbers = #tpu.dot_dimension_numbers<[2], [1], [1], [2], [0, 0, 0, 1, 1, 2], [0], [0]>} : vector<8x24x24xbf16>, vector<8x24x16xbf16>, vector<8x24x16xf32> -> vector<8x24x16xf32>
    "tpu.trace_stop"() : () -> ()
    %245 = vector.extract_strided_slice %244 {offsets = [0, 0, 0], sizes = [2, 24, 16], strides = [1, 1, 1]} : vector<8x24x16xf32> to vector<2x24x16xf32>
    %246 = vector.shape_cast %245 : vector<2x24x16xf32> to vector<48x16xf32>
    %247 = vector.extract_strided_slice %244 {offsets = [2, 0, 0], sizes = [2, 24, 16], strides = [1, 1, 1]} : vector<8x24x16xf32> to vector<2x24x16xf32>
    %248 = vector.shape_cast %247 : vector<2x24x16xf32> to vector<48x16xf32>
    %249 = vector.extract_strided_slice %244 {offsets = [4, 0, 0], sizes = [2, 24, 16], strides = [1, 1, 1]} : vector<8x24x16xf32> to vector<2x24x16xf32>
    %250 = vector.shape_cast %249 : vector<2x24x16xf32> to vector<48x16xf32>
    %251 = vector.extract_strided_slice %244 {offsets = [6, 0, 0], sizes = [2, 24, 16], strides = [1, 1, 1]} : vector<8x24x16xf32> to vector<2x24x16xf32>
    %252 = vector.shape_cast %251 : vector<2x24x16xf32> to vector<48x16xf32>
    %253 = tpu.concatenate %246, %248, %250, %252 in 1 : vector<48x16xf32>, vector<48x16xf32>, vector<48x16xf32>, vector<48x16xf32> -> vector<48x64xf32>
    %254 = arith.truncf %253 : vector<48x64xf32> to vector<48x64xbf16>
    %c1_87 = arith.constant 1 : index
    %c0_88 = arith.constant 0 : index
    %c0_89 = arith.constant 0 : index
    %255 = vector.load %arg10[%c1_87, %c0_88, %c0_89] : memref<2x64x64xbf16, #tpu.memory_space<vmem>>, vector<1x64x64xbf16>
    %256 = vector.shape_cast %255 : vector<1x64x64xbf16> to vector<64x64xbf16>
    %cst_90 = arith.constant dense<0.000000e+00> : vector<48x64xf32>
    %257 = tpu.matmul %254, %256, %cst_90 {dimension_numbers = #tpu.dot_dimension_numbers<[1], [0], [0], [1], [0, 0, 1, 1], [], []>} : vector<48x64xbf16>, vector<64x64xbf16>, vector<48x64xf32> -> vector<48x64xf32>
    %258 = arith.addf %162, %257 : vector<48x64xf32>
    %c1_91 = arith.constant 1 : index
    %c0_92 = arith.constant 0 : index
    %c0_93 = arith.constant 0 : index
    %259 = vector.load %arg11[%c1_91, %c0_92, %c0_93] : memref<2x1x64xf32, #tpu.memory_space<vmem>>, vector<1x1x64xf32>
    %260 = vector.shape_cast %259 : vector<1x1x64xf32> to vector<1x64xf32>
    %261 = vector.broadcast %260 : vector<1x64xf32> to vector<48x64xf32>
    %262 = arith.addf %258, %261 : vector<48x64xf32>
    %c1_94 = arith.constant 1 : index
    %c0_95 = arith.constant 0 : index
    %c0_96 = arith.constant 0 : index
    %263 = vector.load %arg12[%c1_94, %c0_95, %c0_96] : memref<2x1x64xf32, #tpu.memory_space<vmem>>, vector<1x1x64xf32>
    %264 = vector.shape_cast %263 : vector<1x1x64xf32> to vector<1x64xf32>
    %c1_97 = arith.constant 1 : index
    %c0_98 = arith.constant 0 : index
    %c0_99 = arith.constant 0 : index
    %265 = vector.load %arg13[%c1_97, %c0_98, %c0_99] : memref<2x1x64xf32, #tpu.memory_space<vmem>>, vector<1x1x64xf32>
    %266 = vector.shape_cast %265 : vector<1x1x64xf32> to vector<1x64xf32>
    %cst_100 = arith.constant dense<0.000000e+00> : vector<48xf32>
    %267 = vector.multi_reduction <add>, %262, %cst_100 [1] : vector<48x64xf32> to vector<48xf32>
    %268 = vector.shape_cast %267 : vector<48xf32> to vector<48x1xf32>
    %cst_101 = arith.constant 6.400000e+01 : f32
    %269 = vector.broadcast %cst_101 : f32 to vector<48x1xf32>
    %270 = arith.divf %268, %269 : vector<48x1xf32>
    %271 = vector.broadcast %270 : vector<48x1xf32> to vector<48x64xf32>
    %272 = arith.subf %262, %271 : vector<48x64xf32>
    %273 = arith.mulf %272, %272 : vector<48x64xf32>
    %cst_102 = arith.constant dense<0.000000e+00> : vector<48xf32>
    %274 = vector.multi_reduction <add>, %273, %cst_102 [1] : vector<48x64xf32> to vector<48xf32>
    %275 = vector.shape_cast %274 : vector<48xf32> to vector<48x1xf32>
    %cst_103 = arith.constant 6.400000e+01 : f32
    %276 = vector.broadcast %cst_103 : f32 to vector<48x1xf32>
    %277 = arith.divf %275, %276 : vector<48x1xf32>
    %278 = vector.broadcast %270 : vector<48x1xf32> to vector<48x64xf32>
    %279 = arith.subf %262, %278 : vector<48x64xf32>
    %cst_104 = arith.constant 9.99999974E-6 : f32
    %280 = vector.broadcast %cst_104 : f32 to vector<48x1xf32>
    %281 = arith.addf %277, %280 : vector<48x1xf32>
    %282 = math.rsqrt %281 : vector<48x1xf32>
    %283 = vector.broadcast %282 : vector<48x1xf32> to vector<48x64xf32>
    %284 = arith.mulf %279, %283 : vector<48x64xf32>
    %285 = vector.broadcast %264 : vector<1x64xf32> to vector<48x64xf32>
    %286 = arith.mulf %284, %285 : vector<48x64xf32>
    %287 = vector.broadcast %266 : vector<1x64xf32> to vector<48x64xf32>
    %288 = arith.addf %286, %287 : vector<48x64xf32>
    %289 = arith.truncf %288 : vector<48x64xf32> to vector<48x64xbf16>
    %c1_105 = arith.constant 1 : index
    %c0_106 = arith.constant 0 : index
    %c0_107 = arith.constant 0 : index
    %290 = vector.load %arg14[%c1_105, %c0_106, %c0_107] : memref<2x64x256xbf16, #tpu.memory_space<vmem>>, vector<1x64x256xbf16>
    %291 = vector.shape_cast %290 : vector<1x64x256xbf16> to vector<64x256xbf16>
    %cst_108 = arith.constant dense<0.000000e+00> : vector<48x256xf32>
    %292 = tpu.matmul %289, %291, %cst_108 {dimension_numbers = #tpu.dot_dimension_numbers<[1], [0], [0], [1], [0, 0, 1, 1], [], []>} : vector<48x64xbf16>, vector<64x256xbf16>, vector<48x256xf32> -> vector<48x256xf32>
    %c1_109 = arith.constant 1 : index
    %c0_110 = arith.constant 0 : index
    %c0_111 = arith.constant 0 : index
    %293 = vector.load %arg15[%c1_109, %c0_110, %c0_111] : memref<2x1x256xf32, #tpu.memory_space<vmem>>, vector<1x1x256xf32>
    %294 = vector.shape_cast %293 : vector<1x1x256xf32> to vector<1x256xf32>
    %295 = vector.broadcast %294 : vector<1x256xf32> to vector<48x256xf32>
    %296 = arith.addf %292, %295 : vector<48x256xf32>
    %cst_112 = arith.constant 1.702000e+00 : f32
    %297 = vector.broadcast %cst_112 : f32 to vector<48x256xf32>
    %298 = arith.mulf %297, %296 : vector<48x256xf32>
    %299 = arith.negf %298 : vector<48x256xf32>
    %300 = math.exp %299 : vector<48x256xf32>
    %cst_113 = arith.constant 1.000000e+00 : f32
    %301 = vector.broadcast %cst_113 : f32 to vector<48x256xf32>
    %302 = arith.addf %301, %300 : vector<48x256xf32>
    %303 = arith.divf %301, %302 : vector<48x256xf32>
    %304 = arith.mulf %296, %303 : vector<48x256xf32>
    %305 = arith.truncf %304 : vector<48x256xf32> to vector<48x256xbf16>
    %c1_114 = arith.constant 1 : index
    %c0_115 = arith.constant 0 : index
    %c0_116 = arith.constant 0 : index
    %306 = vector.load %arg16[%c1_114, %c0_115, %c0_116] : memref<2x256x64xbf16, #tpu.memory_space<vmem>>, vector<1x256x64xbf16>
    %307 = vector.shape_cast %306 : vector<1x256x64xbf16> to vector<256x64xbf16>
    %cst_117 = arith.constant dense<0.000000e+00> : vector<48x64xf32>
    %308 = tpu.matmul %305, %307, %cst_117 {dimension_numbers = #tpu.dot_dimension_numbers<[1], [0], [0], [1], [0, 0, 1, 1], [], []>} : vector<48x256xbf16>, vector<256x64xbf16>, vector<48x64xf32> -> vector<48x64xf32>
    %309 = arith.addf %262, %308 : vector<48x64xf32>
    %c1_118 = arith.constant 1 : index
    %c0_119 = arith.constant 0 : index
    %c0_120 = arith.constant 0 : index
    %310 = vector.load %arg17[%c1_118, %c0_119, %c0_120] : memref<2x1x64xf32, #tpu.memory_space<vmem>>, vector<1x1x64xf32>
    %311 = vector.shape_cast %310 : vector<1x1x64xf32> to vector<1x64xf32>
    %312 = vector.broadcast %311 : vector<1x64xf32> to vector<48x64xf32>
    %313 = arith.addf %309, %312 : vector<48x64xf32>
    %314 = vector.shape_cast %313 : vector<48x64xf32> to vector<2x24x64xf32>
    %c0_121 = arith.constant 0 : index
    %c0_122 = arith.constant 0 : index
    %c0_123 = arith.constant 0 : index
    %315 = vector.load %arg4[%c0_121, %c0_122, %c0_123] : memref<2x24x1xf32, #tpu.memory_space<vmem>>, vector<2x24x1xf32>
    %316 = vector.broadcast %315 : vector<2x24x1xf32> to vector<2x24x64xf32>
    %317 = arith.mulf %314, %316 : vector<2x24x64xf32>
    %cst_124 = arith.constant dense<0.000000e+00> : vector<2x64xf32>
    %318 = vector.multi_reduction <add>, %317, %cst_124 [1] : vector<2x24x64xf32> to vector<2x64xf32>
    %c0_125 = arith.constant 0 : index
    %c0_126 = arith.constant 0 : index
    %319 = vector.load %arg18[%c0_125, %c0_126] : memref<1x64xf32, #tpu.memory_space<vmem>>, vector<1x64xf32>
    %c0_127 = arith.constant 0 : index
    %c0_128 = arith.constant 0 : index
    %320 = vector.load %arg19[%c0_127, %c0_128] : memref<1x64xf32, #tpu.memory_space<vmem>>, vector<1x64xf32>
    %cst_129 = arith.constant dense<0.000000e+00> : vector<2xf32>
    %321 = vector.multi_reduction <add>, %318, %cst_129 [1] : vector<2x64xf32> to vector<2xf32>
    %322 = vector.shape_cast %321 : vector<2xf32> to vector<2x1xf32>
    %cst_130 = arith.constant 6.400000e+01 : f32
    %323 = vector.broadcast %cst_130 : f32 to vector<2x1xf32>
    %324 = arith.divf %322, %323 : vector<2x1xf32>
    %325 = vector.broadcast %324 : vector<2x1xf32> to vector<2x64xf32>
    %326 = arith.subf %318, %325 : vector<2x64xf32>
    %327 = arith.mulf %326, %326 : vector<2x64xf32>
    %cst_131 = arith.constant dense<0.000000e+00> : vector<2xf32>
    %328 = vector.multi_reduction <add>, %327, %cst_131 [1] : vector<2x64xf32> to vector<2xf32>
    %329 = vector.shape_cast %328 : vector<2xf32> to vector<2x1xf32>
    %cst_132 = arith.constant 6.400000e+01 : f32
    %330 = vector.broadcast %cst_132 : f32 to vector<2x1xf32>
    %331 = arith.divf %329, %330 : vector<2x1xf32>
    %332 = vector.broadcast %324 : vector<2x1xf32> to vector<2x64xf32>
    %333 = arith.subf %318, %332 : vector<2x64xf32>
    %cst_133 = arith.constant 9.99999974E-6 : f32
    %334 = vector.broadcast %cst_133 : f32 to vector<2x1xf32>
    %335 = arith.addf %331, %334 : vector<2x1xf32>
    %336 = math.rsqrt %335 : vector<2x1xf32>
    %337 = vector.broadcast %336 : vector<2x1xf32> to vector<2x64xf32>
    %338 = arith.mulf %333, %337 : vector<2x64xf32>
    %339 = vector.broadcast %319 : vector<1x64xf32> to vector<2x64xf32>
    %340 = arith.mulf %338, %339 : vector<2x64xf32>
    %341 = vector.broadcast %320 : vector<1x64xf32> to vector<2x64xf32>
    %342 = arith.addf %340, %341 : vector<2x64xf32>
    %343 = arith.truncf %342 : vector<2x64xf32> to vector<2x64xbf16>
    %c0_134 = arith.constant 0 : index
    %c0_135 = arith.constant 0 : index
    %344 = vector.load %arg20[%c0_134, %c0_135] : memref<64x32xbf16, #tpu.memory_space<vmem>>, vector<64x32xbf16>
    %cst_136 = arith.constant dense<0.000000e+00> : vector<2x32xf32>
    %345 = tpu.matmul %343, %344, %cst_136 {dimension_numbers = #tpu.dot_dimension_numbers<[1], [0], [0], [1], [0, 0, 1, 1], [], []>} : vector<2x64xbf16>, vector<64x32xbf16>, vector<2x32xf32> -> vector<2x32xf32>
    %c0_137 = arith.constant 0 : index
    %c0_138 = arith.constant 0 : index
    %346 = vector.load %arg5[%c0_137, %c0_138] : memref<2x2xf32, #tpu.memory_space<vmem>>, vector<2x2xf32>
    %347 = vector.shape_cast %346 : vector<2x2xf32> to vector<2x2x1xf32>
    %348 = vector.shape_cast %345 : vector<2x32xf32> to vector<1x2x32xf32>
    %349 = vector.broadcast %347 : vector<2x2x1xf32> to vector<2x2x32xf32>
    %350 = vector.broadcast %348 : vector<1x2x32xf32> to vector<2x2x32xf32>
    %351 = arith.mulf %349, %350 : vector<2x2x32xf32>
    %cst_139 = arith.constant dense<0.000000e+00> : vector<2x32xf32>
    %352 = vector.multi_reduction <add>, %351, %cst_139 [1] : vector<2x2x32xf32> to vector<2x32xf32>
    %c0_140 = arith.constant 0 : index
    %c0_141 = arith.constant 0 : index
    %353 = vector.load %arg21[%c0_140, %c0_141] : memref<2x32xf32, #tpu.memory_space<vmem>>, vector<2x32xf32>
    tpu.vector_store %arg21[%c0_140, %c0_141], %352 {strides = array<i32>} : memref<2x32xf32, #tpu.memory_space<vmem>>, vector<2x32xf32>,
    return
  }
}

</mosaic_0001>

<llo_original>
// kernel: tpu_custom_call.1
$region0: #{tpu_custom_call.1}
  #allocation0 [shape = 'u32[]', space=smem, size = 0x4, offset = 0x4, fixed_abs, tag = 'smem constant byte address 0x4 - core index']
  #allocation1 [shape = 'u32[144,128]{1,0:T(1,128)}', space=vmem, size = 0x12000, scoped, tag = 'internal scratch']
  %s0 = inlined_call_operand.vmem [shape: f32[2,24,192], index: 0, kind: input, shape index: {}]
  %s1 = inlined_call_operand.vmem [shape: bf16[192,64], index: 1, kind: input, shape index: {}]
  %s2 = inlined_call_operand.vmem [shape: f32[24,64], index: 2, kind: input, shape index: {}]
  %s3 = inlined_call_operand.hbm [shape: f32[24,24], index: 3, kind: input, shape index: {}]
  %s4 = inlined_call_operand.vmem [shape: f32[2,24,1], index: 4, kind: input, shape index: {}]
  %s5 = inlined_call_operand.vmem [shape: f32[2,2], index: 5, kind: input, shape index: {}]
  %s6 = inlined_call_operand.vmem [shape: f32[2,1,64], index: 6, kind: input, shape index: {}]
  %s7 = inlined_call_operand.vmem [shape: f32[2,1,64], index: 7, kind: input, shape index: {}]
  %s8 = inlined_call_operand.vmem [shape: bf16[2,64,192], index: 8, kind: input, shape index: {}]
  %s9 = inlined_call_operand.vmem [shape: f32[2,1,192], index: 9, kind: input, shape index: {}]
  %s10 = inlined_call_operand.vmem [shape: bf16[2,64,64], index: 10, kind: input, shape index: {}]
  %s11 = inlined_call_operand.vmem [shape: f32[2,1,64], index: 11, kind: input, shape index: {}]
  %s12 = inlined_call_operand.vmem [shape: f32[2,1,64], index: 12, kind: input, shape index: {}]
  %s13 = inlined_call_operand.vmem [shape: f32[2,1,64], index: 13, kind: input, shape index: {}]
  %s14 = inlined_call_operand.vmem [shape: bf16[2,64,256], index: 14, kind: input, shape index: {}]
  %s15 = inlined_call_operand.vmem [shape: f32[2,1,256], index: 15, kind: input, shape index: {}]
  %s16 = inlined_call_operand.vmem [shape: bf16[2,256,64], index: 16, kind: input, shape index: {}]
  %s17 = inlined_call_operand.vmem [shape: f32[2,1,64], index: 17, kind: input, shape index: {}]
  %s18 = inlined_call_operand.vmem [shape: f32[1,64], index: 18, kind: input, shape index: {}]
  %s19 = inlined_call_operand.vmem [shape: f32[1,64], index: 19, kind: input, shape index: {}]
  %s20 = inlined_call_operand.vmem [shape: bf16[64,32], index: 20, kind: input, shape index: {}]
  %s21 = inlined_call_operand.hbm [shape: f32[2,32], index: 21, kind: output, shape index: {}]
  %s22 = sld [smem:[#allocation0]]
  $region98: #{tpu_custom_call.1} parent=0
    _
  %s24 = ssub.s32 1, %s22
  %s25 = scalar_select 0, %s24, %s22
  $region1: #{tpu_custom_call.1} parent=0
    #allocation2 [shape = 'u8[12288]{0}', space=vmem, size = 0x3000, scoped, tag = 'input window, operand 3, single buffered']
    #allocation3 [shape = 's32[1]{0}', space=sflag, size = 0x4, scoped, tag = 'scoped memory for tpu_custom_call.1']
    #allocation4 [shape = 's32[1]{0}', space=sflag, size = 0x4, scoped, tag = 'scoped memory for tpu_custom_call.1']
    #allocation5 [shape = 'u8[1024]{0}', space=vmem, size = 0x400, scoped, tag = 'output window, operand 0, single buffered']
    %26 = vsyncpa [#allocation3], 0
    %27 = vsyncpa [#allocation4], 0
    // Predicated region
    $region2: #{tpu_custom_call.1} parent=1 // pred_check
      _
    $region3: #{tpu_custom_call.1} parent=1 // pred_check_branch
      %29 = sbr.rel (0) target = $region5
    $region4: #{tpu_custom_call.1} parent=1 // pred_region
      _
    $region5: #{tpu_custom_call.1} parent=1 // pred_fallthru
      _
    // Predicated region
    $region6: #{tpu_custom_call.1} parent=1 // pred_check
      _
    $region7: #{tpu_custom_call.1} parent=1 // pred_check_branch
      %31 = sbr.rel (0) target = $region9
    $region8: #{tpu_custom_call.1} parent=1 // pred_region
      _
    $region9: #{tpu_custom_call.1} parent=1 // pred_fallthru
      _
    // Predicated region
    $region10: #{tpu_custom_call.1} parent=1 // pred_check
      _
    $region11: #{tpu_custom_call.1} parent=1 // pred_check_branch
      %33 = sbr.rel (0) target = $region13
    $region12: #{tpu_custom_call.1} parent=1 // pred_region
      _
    $region13: #{tpu_custom_call.1} parent=1 // pred_fallthru
      _
    // Predicated region
    $region14: #{tpu_custom_call.1} parent=1 // pred_check
      _
    $region15: #{tpu_custom_call.1} parent=1 // pred_check_branch
      %35 = sbr.rel (0) target = $region17
    $region16: #{tpu_custom_call.1} parent=1 // pred_region
      %s37 = ssub.s32 384, 384
      %38 = vsyncadd [#allocation3], %s37
      %s39 = sshll.u32 [#allocation2], 4
      %s40 = int_to_ptr.vmem [resolvable:$true] %s39
      %45 = dma.hbm_to_vmem [thread:$0]  %s3, 384, %s40, [#allocation3], 128, 128, 8
    $region17: #{tpu_custom_call.1} parent=1 // pred_fallthru
      _
    // Predicated region
    $region18: #{tpu_custom_call.1} parent=1 // pred_check
      _
    $region19: #{tpu_custom_call.1} parent=1 // pred_check_branch
      %47 = sbr.rel (0) target = $region21
    $region20: #{tpu_custom_call.1} parent=1 // pred_region
      _
    $region21: #{tpu_custom_call.1} parent=1 // pred_fallthru
      _
    // Predicated region
    $region22: #{tpu_custom_call.1} parent=1 // pred_check
      _
    $region23: #{tpu_custom_call.1} parent=1 // pred_check_branch
      %49 = sbr.rel (0) target = $region25
    $region24: #{tpu_custom_call.1} parent=1 // pred_region
      _
    $region25: #{tpu_custom_call.1} parent=1 // pred_fallthru
      _
    // Predicated region
    $region26: #{tpu_custom_call.1} parent=1 // pred_check
      _
    $region27: #{tpu_custom_call.1} parent=1 // pred_check_branch
      %51 = sbr.rel (0) target = $region29
    $region28: #{tpu_custom_call.1} parent=1 // pred_region
      _
    $region29: #{tpu_custom_call.1} parent=1 // pred_fallthru
      _
    // Predicated region
    $region30: #{tpu_custom_call.1} parent=1 // pred_check
      _
    $region31: #{tpu_custom_call.1} parent=1 // pred_check_branch
      %53 = sbr.rel (0) target = $region33
    $region32: #{tpu_custom_call.1} parent=1 // pred_region
      _
    $region33: #{tpu_custom_call.1} parent=1 // pred_fallthru
      _
    // Predicated region
    $region34: #{tpu_custom_call.1} parent=1 // pred_check
      _
    $region35: #{tpu_custom_call.1} parent=1 // pred_check_branch
      %55 = sbr.rel (0) target = $region37
    $region36: #{tpu_custom_call.1} parent=1 // pred_region
      _
    $region37: #{tpu_custom_call.1} parent=1 // pred_fallthru
      _
    // Predicated region
    $region38: #{tpu_custom_call.1} parent=1 // pred_check
      _
    $region39: #{tpu_custom_call.1} parent=1 // pred_check_branch
      %57 = sbr.rel (0) target = $region41
    $region40: #{tpu_custom_call.1} parent=1 // pred_region
      _
    $region41: #{tpu_custom_call.1} parent=1 // pred_fallthru
      _
    // Predicated region
    $region42: #{tpu_custom_call.1} parent=1 // pred_check
      _
    $region43: #{tpu_custom_call.1} parent=1 // pred_check_branch
      %59 = sbr.rel (0) target = $region45
    $region44: #{tpu_custom_call.1} parent=1 // pred_region
      _
    $region45: #{tpu_custom_call.1} parent=1 // pred_fallthru
      _
    // Predicated region
    $region46: #{tpu_custom_call.1} parent=1 // pred_check
      _
    $region47: #{tpu_custom_call.1} parent=1 // pred_check_branch
      %61 = sbr.rel (0) target = $region49
    $region48: #{tpu_custom_call.1} parent=1 // pred_region
      _
    $region49: #{tpu_custom_call.1} parent=1 // pred_fallthru
      _
    // Predicated region
    $region50: #{tpu_custom_call.1} parent=1 // pred_check
      _
    $region51: #{tpu_custom_call.1} parent=1 // pred_check_branch
      %63 = sbr.rel (0) target = $region53
    $region52: #{tpu_custom_call.1} parent=1 // pred_region
      _
    $region53: #{tpu_custom_call.1} parent=1 // pred_fallthru
      _
    // Predicated region
    $region54: #{tpu_custom_call.1} parent=1 // pred_check
      _
    $region55: #{tpu_custom_call.1} parent=1 // pred_check_branch
      %65 = sbr.rel (0) target = $region57
    $region56: #{tpu_custom_call.1} parent=1 // pred_region
      _
    $region57: #{tpu_custom_call.1} parent=1 // pred_fallthru
      _
    // Predicated region
    $region58: #{tpu_custom_call.1} parent=1 // pred_check
      _
    $region59: #{tpu_custom_call.1} parent=1 // pred_check_branch
      %67 = sbr.rel (0) target = $region61
    $region60: #{tpu_custom_call.1} parent=1 // pred_region
      _
    $region61: #{tpu_custom_call.1} parent=1 // pred_fallthru
      _
    // Predicated region
    $region62: #{tpu_custom_call.1} parent=1 // pred_check
      _
    $region63: #{tpu_custom_call.1} parent=1 // pred_check_branch
      %69 = sbr.rel (0) target = $region65
    $region64: #{tpu_custom_call.1} parent=1 // pred_region
      _
    $region65: #{tpu_custom_call.1} parent=1 // pred_fallthru
      _
    // Predicated region
    $region66: #{tpu_custom_call.1} parent=1 // pred_check
      _
    $region67: #{tpu_custom_call.1} parent=1 // pred_check_branch
      %71 = sbr.rel (0) target = $region69
    $region68: #{tpu_custom_call.1} parent=1 // pred_region
      _
    $region69: #{tpu_custom_call.1} parent=1 // pred_fallthru
      _
    // Predicated region
    $region70: #{tpu_custom_call.1} parent=1 // pred_check
      _
    $region71: #{tpu_custom_call.1} parent=1 // pred_check_branch
      %73 = sbr.rel (0) target = $region73
    $region72: #{tpu_custom_call.1} parent=1 // pred_region
      _
    $region73: #{tpu_custom_call.1} parent=1 // pred_fallthru
      _
    // Predicated region
    $region74: #{tpu_custom_call.1} parent=1 // pred_check
      _
    $region75: #{tpu_custom_call.1} parent=1 // pred_check_branch
      %75 = sbr.rel (0) target = $region77
    $region76: #{tpu_custom_call.1} parent=1 // pred_region
      _
    $region77: #{tpu_custom_call.1} parent=1 // pred_fallthru
      _
    // Predicated region
    $region78: #{tpu_custom_call.1} parent=1 // pred_check
      _
    $region79: #{tpu_custom_call.1} parent=1 // pred_check_branch
      %77 = sbr.rel (0) target = $region81
    $region80: #{tpu_custom_call.1} parent=1 // pred_region
      _
    $region81: #{tpu_custom_call.1} parent=1 // pred_fallthru
      _
    // Predicated region
    $region82: #{tpu_custom_call.1} parent=1 // pred_check
      _
    $region83: #{tpu_custom_call.1} parent=1 // pred_check_branch
      %79 = sbr.rel (0) target = $region85
    $region84: #{tpu_custom_call.1} parent=1 // pred_region
      _
    $region85: #{tpu_custom_call.1} parent=1 // pred_fallthru
      _
    // Predicated region
    $region86: #{tpu_custom_call.1} parent=1 // pred_check
      _
    $region87: #{tpu_custom_call.1} parent=1 // pred_check_branch
      %81 = sbr.rel (0) target = $region89
    $region88: #{tpu_custom_call.1} parent=1 // pred_region
      %82 = dma.done [#allocation3], 384
    $region89: #{tpu_custom_call.1} parent=1 // pred_fallthru
      _
    %v84 = vld [vmem:[#allocation2] sm:$0xff]
    %v85 = vld [vmem:[#allocation2 + $0x8] sm:$0xff]
    %v86 = vld [vmem:[#allocation2 + $0x10] sm:$0xff]
    %v87 = vld [vmem:[%s0] sm:$0xff]
    %v88 = vld [vmem:[%s0 + $0x8] sm:$0xff]
    %v89 = vld [vmem:[%s0 + $0x10] sm:$0xff]
    %v90 = vld [vmem:[%s0 + $0x18] sm:$0xff]
    %v91 = vld [vmem:[%s0 + $0x20] sm:$0xff]
    %v92 = vld [vmem:[%s0 + $0x28] sm:$0xff]
    %v93 = vld [vmem:[%s0 + $0x30] sm:$0xff]
    %v94 = vld [vmem:[%s0 + $0x38] sm:$0xff]
    %v95 = vld [vmem:[%s0 + $0x40] sm:$0xff]
    %v96 = vld [vmem:[%s0 + $0x48] sm:$0xff]
    %v97 = vld [vmem:[%s0 + $0x50] sm:$0xff]
    %v98 = vld [vmem:[%s0 + $0x58] sm:$0xff]
    %v99 = vpack.c.bf16 %v89, %v87
    %v100 = vpack.c.bf16 %v90, %v88
    %v101 = vpack.c.bf16 %v93, %v91
    %v102 = vpack.c.bf16 %v94, %v92
    %v103 = vpack.c.bf16 %v97, %v95
    %v104 = vpack.c.bf16 %v98, %v96
    %v105 = vld [vmem:[%s1] sm:$0xf]
    %v106 = vld [vmem:[%s1 + $0x4] sm:$0xf]
    %v107 = vld [vmem:[%s1 + $0x8] sm:$0xf]
    %v108 = vld [vmem:[%s1 + $0xc] sm:$0xf]
    %v109 = vld [vmem:[%s1 + $0x10] sm:$0xf]
    %v110 = vld [vmem:[%s1 + $0x14] sm:$0xf]
    %v111 = vld [vmem:[%s1 + $0x18] sm:$0xf]
    %v112 = vld [vmem:[%s1 + $0x1c] sm:$0xf]
    %v113 = vld [vmem:[%s1 + $0x20] sm:$0xf]
    %v114 = vld [vmem:[%s1 + $0x24] sm:$0xf]
    %v115 = vld [vmem:[%s1 + $0x28] sm:$0xf]
    %v116 = vld [vmem:[%s1 + $0x2c] sm:$0xf]
    %v117 = vld [vmem:[%s1 + $0x30] sm:$0xf]
    %v118 = vld [vmem:[%s1 + $0x34] sm:$0xf]
    %v119 = vld [vmem:[%s1 + $0x38] sm:$0xf]
    %v120 = vld [vmem:[%s1 + $0x3c] sm:$0xf]
    %v121 = vld [vmem:[%s1 + $0x40] sm:$0xf]
    %v122 = vld [vmem:[%s1 + $0x44] sm:$0xf]
    %v123 = vld [vmem:[%s1 + $0x48] sm:$0xf]
    %v124 = vld [vmem:[%s1 + $0x4c] sm:$0xf]
    %v125 = vld [vmem:[%s1 + $0x50] sm:$0xf]
    %v126 = vld [vmem:[%s1 + $0x54] sm:$0xf]
    %v127 = vld [vmem:[%s1 + $0x58] sm:$0xf]
    %v128 = vld [vmem:[%s1 + $0x5c] sm:$0xf]
    %v153 = vunpack.c.l.b16 %v105
    %v154 = vunpack.c.l.b16 %v106
    %v155 = vunpack.c.l.b16 %v107
    %v156 = vunpack.c.l.b16 %v108
    %v157 = vunpack.c.l.b16 %v109
    %v158 = vunpack.c.l.b16 %v110
    %v159 = vunpack.c.l.b16 %v111
    %v160 = vunpack.c.l.b16 %v112
    %v161 = vunpack.c.l.b16 %v113
    %v162 = vunpack.c.l.b16 %v114
    %v163 = vunpack.c.l.b16 %v115
    %v164 = vunpack.c.l.b16 %v116
    %v165 = vunpack.c.l.b16 %v117
    %v166 = vunpack.c.l.b16 %v118
    %v167 = vunpack.c.l.b16 %v119
    %v168 = vunpack.c.l.b16 %v120
    %v169 = vunpack.c.l.b16 %v121
    %v170 = vunpack.c.l.b16 %v122
    %v171 = vunpack.c.l.b16 %v123
    %v172 = vunpack.c.l.b16 %v124
    %v173 = vunpack.c.l.b16 %v125
    %v174 = vunpack.c.l.b16 %v126
    %v175 = vunpack.c.l.b16 %v127
    %v176 = vunpack.c.l.b16 %v128
    %v177 = vpack.c.b16 %v154, %v153
    %v178 = vpack.c.b16 %v156, %v155
    %v179 = vpack.c.b16 %v158, %v157
    %v180 = vpack.c.b16 %v160, %v159
    %v181 = vpack.c.b16 %v162, %v161
    %v182 = vpack.c.b16 %v164, %v163
    %v183 = vpack.c.b16 %v166, %v165
    %v184 = vpack.c.b16 %v168, %v167
    %v185 = vpack.c.b16 %v170, %v169
    %v186 = vpack.c.b16 %v172, %v171
    %v187 = vpack.c.b16 %v174, %v173
    %v188 = vpack.c.b16 %v176, %v175
    %vm201 = vcmask 523264
    %v203 = vsel %vm201, %v100, 0
    %v206 = vsel %vm201, %v102, 0
    %v209 = vsel %vm201, %v104, 0
    %211 = vmatprep.subr.bf16.mxu0 0
    %212 = vmatpush1.bf16.msra.mxu0 %v177
    %213 = vmatprep.subr.bf16.mxu0 0
    %214 = vmatpush1.bf16.msra.mxu0 %v178
    %215 = vmatprep.subr.bf16.mxu0 0
    %216 = vmatpush1.bf16.msra.mxu0 %v179
    %217 = vmatprep.subr.bf16.mxu0 0
    %218 = vmatpush1.bf16.msra.mxu0 %v180
    %219 = vmatprep.subr.bf16.mxu0 0
    %220 = vmatpush1.bf16.msra.mxu0 %v181
    %221 = vmatprep.subr.bf16.mxu0 0
    %222 = vmatpush1.bf16.msra.mxu0 %v182
    %223 = vmatprep.subr.bf16.mxu0 0
    %224 = vmatpush1.bf16.msra.mxu0 %v183
    %225 = vmatprep.subr.bf16.mxu0 0
    %226 = vmatpush1.bf16.msra.mxu0 %v184
    %227 = vmatprep.subr.bf16.mxu0 0
    %228 = vmatpush1.bf16.msra.mxu0 %v185
    %229 = vmatprep.subr.bf16.mxu0 0
    %230 = vmatpush1.bf16.msra.mxu0 %v186
    %231 = vmatprep.subr.bf16.mxu0 0
    %232 = vmatpush1.bf16.msra.mxu0 %v187
    %233 = vmatprep.subr.bf16.mxu0 0
    %234 = vmatpush1.bf16.msra.mxu0 %v188
    %235 = vmatprep.subr.bf16.mxu0 0
    %236 = vmatpush1.bf16.msra.mxu0 0
    %237 = vmatprep.subr.bf16.mxu0 0
    %238 = vmatpush1.bf16.msra.mxu0 0
    %239 = vmatprep.subr.bf16.mxu0 0
    %240 = vmatpush1.bf16.msra.mxu0 0
    %241 = vmatprep.subr.bf16.mxu0 0
    %242 = vmatpush1.bf16.msra.mxu0 0
    %243 = vmatprep.mubr.bf16.mxu0 %v203
    %244 = vmatmul.mubr.bf16.gmra.mrb[0].mxu0 %v99
    %v245 = vpop.f32.mrb[0].mxu0
    %v246 = vadd.f32 0.0, %v245
    %v247 = vpop.f32.mrb[0].mxu0
    %v248 = vpop.f32.mrb[0].mxu0
    %v249 = vadd.f32 0.0, %v248
    %v250 = vpop.f32.mrb[0].mxu0
    %251 = vmatprep.mubr.bf16.mxu0 %v206
    %252 = vmatmul.mubr.bf16.gmra.mrb[0].mxu0 %v101
    %v253 = vpop.f32.mrb[0].mxu0
    %v254 = vadd.f32 0.0, %v253
    %v255 = vpop.f32.mrb[0].mxu0
    %v256 = vpop.f32.mrb[0].mxu0
    %v257 = vadd.f32 0.0, %v256
    %v258 = vpop.f32.mrb[0].mxu0
    %259 = vmatprep.mubr.bf16.mxu0 %v209
    %260 = vmatmul.mubr.bf16.gmra.mrb[0].mxu0 %v103
    %v261 = vpop.f32.mrb[0].mxu0
    %v262 = vadd.f32 0.0, %v261
    %v263 = vpop.f32.mrb[0].mxu0
    %v264 = vpop.f32.mrb[0].mxu0
    %v265 = vadd.f32 0.0, %v264
    %v266 = vpop.f32.mrb[0].mxu0
    %267 = vdwg.mxu0
    %v268 = vld [vmem:[%s2] sm:$0xff]
    %v269 = vld [vmem:[%s2 + $0x8] sm:$0xff]
    %v270 = vld [vmem:[%s2 + $0x10] sm:$0xff]
    %v271 = vadd.f32 %v246, %v268
    %v272 = vadd.f32 %v249, %v269
    %v273 = vadd.f32 %v254, %v270
    %v274 = vadd.f32 %v257, %v268
    %v275 = vadd.f32 %v262, %v269
    %v276 = vadd.f32 %v265, %v270
    %v277 = vld [vmem:[%s6] sm:$0x1]
    %v278 = vld [vmem:[%s7] sm:$0x1]
    %v279 = vsel %vm201, %v271, 0.0
    %280 = vadd.xlane.f32.xlu0 %v279
    %v281 = vpop.xlane.xlu0 %280
    %v282 = vsel %vm201, %v272, 0.0
    %283 = vadd.xlane.f32.xlu0 %v282
    %v284 = vpop.xlane.xlu0 %283
    %v285 = vsel %vm201, %v273, 0.0
    %286 = vadd.xlane.f32.xlu0 %v285
    %v287 = vpop.xlane.xlu0 %286
    %v288 = vsel %vm201, %v274, 0.0
    %289 = vadd.xlane.f32.xlu0 %v288
    %v290 = vpop.xlane.xlu0 %289
    %v291 = vsel %vm201, %v275, 0.0
    %292 = vadd.xlane.f32.xlu0 %v291
    %v293 = vpop.xlane.xlu0 %292
    %v294 = vsel %vm201, %v276, 0.0
    %295 = vadd.xlane.f32.xlu0 %v294
    %v296 = vpop.xlane.xlu0 %295
    %v297 = vrcp.pop 64.0
    %v298 = vmul.f32 %v281, %v297
    %v299 = vmul.f32 %v284, %v297
    %v300 = vmul.f32 %v287, %v297
    %v301 = vmul.f32 %v290, %v297
    %v302 = vmul.f32 %v293, %v297
    %v303 = vmul.f32 %v296, %v297
    %v304 = vsub.f32 %v271, %v298
    %v305 = vsub.f32 %v272, %v299
    %v306 = vsub.f32 %v273, %v300
    %v307 = vsub.f32 %v274, %v301
    %v308 = vsub.f32 %v275, %v302
    %v309 = vsub.f32 %v276, %v303
    %v310 = vmul.f32 %v304, %v304
    %v311 = vmul.f32 %v305, %v305
    %v312 = vmul.f32 %v306, %v306
    %v313 = vmul.f32 %v307, %v307
    %v314 = vmul.f32 %v308, %v308
    %v315 = vmul.f32 %v309, %v309
    %v316 = vsel %vm201, %v310, 0.0
    %317 = vadd.xlane.f32.xlu0 %v316
    %v318 = vpop.xlane.xlu0 %317
    %v319 = vsel %vm201, %v311, 0.0
    %320 = vadd.xlane.f32.xlu0 %v319
    %v321 = vpop.xlane.xlu0 %320
    %v322 = vsel %vm201, %v312, 0.0
    %323 = vadd.xlane.f32.xlu0 %v322
    %v324 = vpop.xlane.xlu0 %323
    %v325 = vsel %vm201, %v313, 0.0
    %326 = vadd.xlane.f32.xlu0 %v325
    %v327 = vpop.xlane.xlu0 %326
    %v328 = vsel %vm201, %v314, 0.0
    %329 = vadd.xlane.f32.xlu0 %v328
    %v330 = vpop.xlane.xlu0 %329
    %v331 = vsel %vm201, %v315, 0.0
    %332 = vadd.xlane.f32.xlu0 %v331
    %v333 = vpop.xlane.xlu0 %332
    %v334 = vmul.f32 %v318, %v297
    %v335 = vmul.f32 %v321, %v297
    %v336 = vmul.f32 %v324, %v297
    %v337 = vmul.f32 %v327, %v297
    %v338 = vmul.f32 %v330, %v297
    %v339 = vmul.f32 %v333, %v297
    %v340 = vadd.f32 %v334, 1e-05
    %v341 = vadd.f32 %v335, 1e-05
    %v342 = vadd.f32 %v336, 1e-05
    %v343 = vadd.f32 %v337, 1e-05
    %v344 = vadd.f32 %v338, 1e-05
    %v345 = vadd.f32 %v339, 1e-05
    %v346 = vrsqrt.pop %v340
    %v347 = vrsqrt.pop %v341
    %v348 = vrsqrt.pop %v342
    %v349 = vrsqrt.pop %v343
    %v350 = vrsqrt.pop %v344
    %v351 = vrsqrt.pop %v345
    %v352 = vmul.f32 %v304, %v346
    %v353 = vmul.f32 %v305, %v347
    %v354 = vmul.f32 %v306, %v348
    %v355 = vmul.f32 %v307, %v349
    %v356 = vmul.f32 %v308, %v350
    %v357 = vmul.f32 %v309, %v351
    %v359 = vlaneseq
    %v360 = vshrl.u32 %v359, 7
    %v361 = vsub.s32 0, %v360
    %v362 = vrot.slane %v277, %v361
    %v364 = vmul.f32 %v352, %v362
    %v365 = vmul.f32 %v353, %v362
    %v366 = vmul.f32 %v354, %v362
    %v367 = vmul.f32 %v355, %v362
    %v368 = vmul.f32 %v356, %v362
    %v369 = vmul.f32 %v357, %v362
    %v371 = vlaneseq
    %v372 = vshrl.u32 %v371, 7
    %v373 = vsub.s32 0, %v372
    %v374 = vrot.slane %v278, %v373
    %v376 = vadd.f32 %v364, %v374
    %v377 = vadd.f32 %v365, %v374
    %v378 = vadd.f32 %v366, %v374
    %v379 = vadd.f32 %v367, %v374
    %v380 = vadd.f32 %v368, %v374
    %v381 = vadd.f32 %v369, %v374
    %v382 = vpack.c.bf16 %v377, %v376
    %v383 = vpack.c.bf16 %v379, %v378
    %v384 = vpack.c.bf16 %v381, %v380
    %v385 = vld [vmem:[%s8] sm:$0xff]
    %v386 = vld [vmem:[%s8 + $0x8] sm:$0xff]
    %v387 = vld [vmem:[%s8 + $0x10] sm:$0xff]
    %v388 = vld [vmem:[%s8 + $0x18] sm:$0xff]
    %v389 = vld [vmem:[%s8 + $0x20] sm:$0xff]
    %v390 = vld [vmem:[%s8 + $0x28] sm:$0xff]
    %v391 = vld [vmem:[%s8 + $0x30] sm:$0xff]
    %v392 = vld [vmem:[%s8 + $0x38] sm:$0xff]
    %v393 = vld [vmem:[%s9] sm:$0x3]
    %v395 = vlaneseq
    %v396 = vshrl.u32 %v395, 7
    %v397 = vsub.s32 0, %v396
    %v398 = vrot.slane %v393, %v397
    %v399 = vlaneseq
    %v400 = vshrl.u32 %v399, 7
    %v401 = vsub.s32 1, %v400
    %v402 = vrot.slane %v393, %v401
    %v413 = vunpack.c.l.b16 %v385
    %v414 = vunpack.c.h.b16 %v385
    %v415 = vunpack.c.l.b16 %v386
    %v416 = vunpack.c.h.b16 %v386
    %v417 = vunpack.c.l.b16 %v387
    %v418 = vunpack.c.h.b16 %v387
    %v419 = vunpack.c.l.b16 %v388
    %v420 = vunpack.c.h.b16 %v388
    %v421 = vunpack.c.l.b16 %v389
    %v422 = vunpack.c.h.b16 %v389
    %v423 = vunpack.c.l.b16 %v390
    %v424 = vunpack.c.h.b16 %v390
    %v425 = vunpack.c.l.b16 %v391
    %v426 = vunpack.c.h.b16 %v391
    %v427 = vunpack.c.l.b16 %v392
    %v428 = vunpack.c.h.b16 %v392
    %v429 = vpack.c.b16 %v415, %v413
    %v430 = vpack.c.b16 %v416, %v414
    %v431 = vpack.c.b16 %v419, %v417
    %v432 = vpack.c.b16 %v420, %v418
    %v433 = vpack.c.b16 %v423, %v421
    %v434 = vpack.c.b16 %v424, %v422
    %v435 = vpack.c.b16 %v427, %v425
    %v436 = vpack.c.b16 %v428, %v426
    %v446 = vsel %vm201, %v382, 0
    %v449 = vsel %vm201, %v383, 0
    %v452 = vsel %vm201, %v384, 0
    %454 = vmatprep.subr.bf16.mxu0 %v430
    %455 = vmatpush1.bf16.msra.mxu0 %v429
    %456 = vmatprep.subr.bf16.mxu0 %v432
    %457 = vmatpush1.bf16.msra.mxu0 %v431
    %458 = vmatprep.subr.bf16.mxu0 %v434
    %459 = vmatpush1.bf16.msra.mxu0 %v433
    %460 = vmatprep.subr.bf16.mxu0 %v436
    %461 = vmatpush1.bf16.msra.mxu0 %v435
    %462 = vmatprep.subr.bf16.mxu0 0
    %463 = vmatpush1.bf16.msra.mxu0 0
    %464 = vmatprep.subr.bf16.mxu0 0
    %465 = vmatpush1.bf16.msra.mxu0 0
    %466 = vmatprep.subr.bf16.mxu0 0
    %467 = vmatpush1.bf16.msra.mxu0 0
    %468 = vmatprep.subr.bf16.mxu0 0
    %469 = vmatpush1.bf16.msra.mxu0 0
    %470 = vmatprep.subr.bf16.mxu0 0
    %471 = vmatpush1.bf16.msra.mxu0 0
    %472 = vmatprep.subr.bf16.mxu0 0
    %473 = vmatpush1.bf16.msra.mxu0 0
    %474 = vmatprep.subr.bf16.mxu0 0
    %475 = vmatpush1.bf16.msra.mxu0 0
    %476 = vmatprep.subr.bf16.mxu0 0
    %477 = vmatpush1.bf16.msra.mxu0 0
    %478 = vmatprep.subr.bf16.mxu0 0
    %479 = vmatpush1.bf16.msra.mxu0 0
    %480 = vmatprep.subr.bf16.mxu0 0
    %481 = vmatpush1.bf16.msra.mxu0 0
    %482 = vmatprep.subr.bf16.mxu0 0
    %483 = vmatpush1.bf16.msra.mxu0 0
    %484 = vmatprep.subr.bf16.mxu0 0
    %485 = vmatpush1.bf16.msra.mxu0 0
    %486 = vmatprep.mubr.bf16.mxu0 0
    %487 = vmatmul.mubr.bf16.gmra.mrb[0].mxu0 %v446
    %v488 = vpop.f32.mrb[0].mxu0
    %v489 = vadd.f32 %v398, %v488
    %v490 = vpop.f32.mrb[0].mxu0
    %v491 = vadd.f32 %v402, %v490
    %v492 = vpop.f32.mrb[0].mxu0
    %v493 = vadd.f32 %v398, %v492
    %v494 = vpop.f32.mrb[0].mxu0
    %v495 = vadd.f32 %v402, %v494
    %496 = vmatprep.mubr.bf16.mxu0 0
    %497 = vmatmul.mubr.bf16.gmra.mrb[0].mxu0 %v449
    %v498 = vpop.f32.mrb[0].mxu0
    %v499 = vadd.f32 %v398, %v498
    %v500 = vpop.f32.mrb[0].mxu0
    %v501 = vadd.f32 %v402, %v500
    %v502 = vpop.f32.mrb[0].mxu0
    %v503 = vadd.f32 %v398, %v502
    %v504 = vpop.f32.mrb[0].mxu0
    %v505 = vadd.f32 %v402, %v504
    %506 = vmatprep.mubr.bf16.mxu0 0
    %507 = vmatmul.mubr.bf16.gmra.mrb[0].mxu0 %v452
    %v508 = vpop.f32.mrb[0].mxu0
    %v509 = vadd.f32 %v398, %v508
    %v510 = vpop.f32.mrb[0].mxu0
    %v511 = vadd.f32 %v402, %v510
    %v512 = vpop.f32.mrb[0].mxu0
    %v513 = vadd.f32 %v398, %v512
    %v514 = vpop.f32.mrb[0].mxu0
    %v515 = vadd.f32 %v402, %v514
    %516 = vdwg.mxu0
    %523 = vrot.lane.b32.xlu0 %v489, 112
    %v524 = vpop.permute.xlu0 %523
    %525 = vrot.lane.b32.xlu0 %v493, 112
    %v526 = vpop.permute.xlu0 %525
    %527 = vrot.lane.b32.xlu0 %v499, 112
    %v528 = vpop.permute.xlu0 %527
    %529 = vrot.lane.b32.xlu0 %v503, 112
    %v530 = vpop.permute.xlu0 %529
    %531 = vrot.lane.b32.xlu0 %v509, 112
    %v532 = vpop.permute.xlu0 %531
    %533 = vrot.lane.b32.xlu0 %v513, 112
    %v534 = vpop.permute.xlu0 %533
    %541 = vrot.lane.b32.xlu0 %v489, 96
    %v542 = vpop.permute.xlu0 %541
    %543 = vrot.lane.b32.xlu0 %v493, 96
    %v544 = vpop.permute.xlu0 %543
    %545 = vrot.lane.b32.xlu0 %v499, 96
    %v546 = vpop.permute.xlu0 %545
    %547 = vrot.lane.b32.xlu0 %v503, 96
    %v548 = vpop.permute.xlu0 %547
    %549 = vrot.lane.b32.xlu0 %v509, 96
    %v550 = vpop.permute.xlu0 %549
    %551 = vrot.lane.b32.xlu0 %v513, 96
    %v552 = vpop.permute.xlu0 %551
    %559 = vrot.lane.b32.xlu0 %v489, 80
    %v560 = vpop.permute.xlu0 %559
    %561 = vrot.lane.b32.xlu0 %v493, 80
    %v562 = vpop.permute.xlu0 %561
    %563 = vrot.lane.b32.xlu0 %v499, 80
    %v564 = vpop.permute.xlu0 %563
    %565 = vrot.lane.b32.xlu0 %v503, 80
    %v566 = vpop.permute.xlu0 %565
    %567 = vrot.lane.b32.xlu0 %v509, 80
    %v568 = vpop.permute.xlu0 %567
    %569 = vrot.lane.b32.xlu0 %v513, 80
    %v570 = vpop.permute.xlu0 %569
    %v577 = vmul.f32 %v489, 0.25
    %v578 = vmul.f32 %v493, 0.25
    %v579 = vmul.f32 %v499, 0.25
    %v580 = vmul.f32 %v503, 0.25
    %v581 = vmul.f32 %v509, 0.25
    %v582 = vmul.f32 %v513, 0.25
    %v583 = vmul.f32 %v524, 0.25
    %v584 = vmul.f32 %v526, 0.25
    %v585 = vmul.f32 %v528, 0.25
    %v586 = vmul.f32 %v530, 0.25
    %v587 = vmul.f32 %v532, 0.25
    %v588 = vmul.f32 %v534, 0.25
    %v589 = vmul.f32 %v542, 0.25
    %v590 = vmul.f32 %v544, 0.25
    %v591 = vmul.f32 %v546, 0.25
    %v592 = vmul.f32 %v548, 0.25
    %v593 = vmul.f32 %v550, 0.25
    %v594 = vmul.f32 %v552, 0.25
    %v595 = vmul.f32 %v560, 0.25
    %v596 = vmul.f32 %v562, 0.25
    %v597 = vmul.f32 %v564, 0.25
    %v598 = vmul.f32 %v566, 0.25
    %v599 = vmul.f32 %v568, 0.25
    %v600 = vmul.f32 %v570, 0.25
    %607 = vrot.lane.b32.xlu0 %v491, 112
    %v608 = vpop.permute.xlu0 %607
    %609 = vrot.lane.b32.xlu0 %v495, 112
    %v610 = vpop.permute.xlu0 %609
    %611 = vrot.lane.b32.xlu0 %v501, 112
    %v612 = vpop.permute.xlu0 %611
    %613 = vrot.lane.b32.xlu0 %v505, 112
    %v614 = vpop.permute.xlu0 %613
    %615 = vrot.lane.b32.xlu0 %v511, 112
    %v616 = vpop.permute.xlu0 %615
    %617 = vrot.lane.b32.xlu0 %v515, 112
    %v618 = vpop.permute.xlu0 %617
    %625 = vrot.lane.b32.xlu0 %v491, 96
    %v626 = vpop.permute.xlu0 %625
    %627 = vrot.lane.b32.xlu0 %v495, 96
    %v628 = vpop.permute.xlu0 %627
    %629 = vrot.lane.b32.xlu0 %v501, 96
    %v630 = vpop.permute.xlu0 %629
    %631 = vrot.lane.b32.xlu0 %v505, 96
    %v632 = vpop.permute.xlu0 %631
    %633 = vrot.lane.b32.xlu0 %v511, 96
    %v634 = vpop.permute.xlu0 %633
    %635 = vrot.lane.b32.xlu0 %v515, 96
    %v636 = vpop.permute.xlu0 %635
    %643 = vrot.lane.b32.xlu0 %v491, 80
    %v644 = vpop.permute.xlu0 %643
    %645 = vrot.lane.b32.xlu0 %v495, 80
    %v646 = vpop.permute.xlu0 %645
    %647 = vrot.lane.b32.xlu0 %v501, 80
    %v648 = vpop.permute.xlu0 %647
    %649 = vrot.lane.b32.xlu0 %v505, 80
    %v650 = vpop.permute.xlu0 %649
    %651 = vrot.lane.b32.xlu0 %v511, 80
    %v652 = vpop.permute.xlu0 %651
    %653 = vrot.lane.b32.xlu0 %v515, 80
    %v654 = vpop.permute.xlu0 %653
    %v661 = vpack.c.bf16 %v578, %v577
    %v662 = vpack.c.bf16 %v579, %v579
    %v663 = vpack.c.bf16 %v581, %v580
    %v664 = vpack.c.bf16 %v582, %v582
    %v665 = vpack.c.bf16 %v584, %v583
    %v666 = vpack.c.bf16 %v585, %v585
    %v667 = vpack.c.bf16 %v587, %v586
    %v668 = vpack.c.bf16 %v588, %v588
    %v669 = vpack.c.bf16 %v590, %v589
    %v670 = vpack.c.bf16 %v591, %v591
    %v671 = vpack.c.bf16 %v593, %v592
    %v672 = vpack.c.bf16 %v594, %v594
    %v673 = vpack.c.bf16 %v596, %v595
    %v674 = vpack.c.bf16 %v597, %v597
    %v675 = vpack.c.bf16 %v599, %v598
    %v676 = vpack.c.bf16 %v600, %v600
    %v677 = vpack.c.bf16 %v493, %v489
    %v678 = vpack.c.bf16 %v499, %v499
    %v679 = vpack.c.bf16 %v509, %v503
    %v680 = vpack.c.bf16 %v513, %v513
    %v681 = vpack.c.bf16 %v526, %v524
    %v682 = vpack.c.bf16 %v528, %v528
    %v683 = vpack.c.bf16 %v532, %v530
    %v684 = vpack.c.bf16 %v534, %v534
    %v685 = vpack.c.bf16 %v544, %v542
    %v686 = vpack.c.bf16 %v546, %v546
    %v687 = vpack.c.bf16 %v550, %v548
    %v688 = vpack.c.bf16 %v552, %v552
    %v689 = vpack.c.bf16 %v562, %v560
    %v690 = vpack.c.bf16 %v564, %v564
    %v691 = vpack.c.bf16 %v568, %v566
    %v692 = vpack.c.bf16 %v570, %v570
    %695 = vrot.lane.b32.xlu0 %v677, 64
    %v696 = vpop.permute.xlu0 %695
    %697 = vrot.lane.b32.xlu0 %v678, 64
    %v698 = vpop.permute.xlu0 %697
    %vm699 = vcmask 130048
    %v701 = vsel %vm699, %v661, 0
    %v704 = vsel %vm699, %v662, 0
    %v707 = vsel %vm699, %v696, 0
    %v710 = vsel %vm699, %v698, 0
    %712 = vmatprep.subr.bf16.mxu0 0
    %713 = vmatpush1.bf16.xpose.msra.mxu0 %v707
    %714 = vmatprep.subr.bf16.mxu0 0
    %715 = vmatpush1.bf16.xpose.msra.mxu0 %v710
    %716 = vmatprep.subr.bf16.mxu0 0
    %717 = vmatpush1.bf16.xpose.msra.mxu0 0
    %718 = vmatprep.subr.bf16.mxu0 0
    %719 = vmatpush1.bf16.xpose.msra.mxu0 0
    %720 = vmatprep.subr.bf16.mxu0 0
    %721 = vmatpush1.bf16.xpose.msra.mxu0 0
    %722 = vmatprep.subr.bf16.mxu0 0
    %723 = vmatpush1.bf16.xpose.msra.mxu0 0
    %724 = vmatprep.subr.bf16.mxu0 0
    %725 = vmatpush1.bf16.xpose.msra.mxu0 0
    %726 = vmatprep.subr.bf16.mxu0 0
    %727 = vmatpush1.bf16.xpose.msra.mxu0 0
    %728 = vmatprep.subr.bf16.mxu0 0
    %729 = vmatpush1.bf16.xpose.msra.mxu0 0
    %730 = vmatprep.subr.bf16.mxu0 0
    %731 = vmatpush1.bf16.xpose.msra.mxu0 0
    %732 = vmatprep.subr.bf16.mxu0 0
    %733 = vmatpush1.bf16.xpose.msra.mxu0 0
    %734 = vmatprep.subr.bf16.mxu0 0
    %735 = vmatpush1.bf16.xpose.msra.mxu0 0
    %736 = vmatprep.subr.bf16.mxu0 0
    %737 = vmatpush1.bf16.xpose.msra.mxu0 0
    %738 = vmatprep.subr.bf16.mxu0 0
    %739 = vmatpush1.bf16.xpose.msra.mxu0 0
    %740 = vmatprep.subr.bf16.mxu0 0
    %741 = vmatpush1.bf16.xpose.msra.mxu0 0
    %742 = vmatprep.subr.bf16.mxu0 0
    %743 = vmatpush1.bf16.xpose.msra.mxu0 0
    %744 = vmatprep.mubr.bf16.mxu0 0
    %745 = vmatmul.mubr.bf16.gmra.mrb[0].mxu0 %v701
    %v746 = vpop.f32.mrb[0].mxu0
    %v747 = vadd.f32 %v84, %v746
    %v748 = vpop.f32.mrb[0].mxu0
    %v749 = vpop.f32.mrb[0].mxu0
    %v750 = vadd.f32 %v85, %v749
    %v751 = vpop.f32.mrb[0].mxu0
    %752 = vmatprep.mubr.bf16.mxu0 0
    %753 = vmatmul.mubr.bf16.gmra.mrb[0].mxu0 %v704
    %v754 = vpop.f32.mrb[0].mxu0
    %v755 = vadd.f32 %v86, %v754
    %v756 = vpop.f32.mrb[0].mxu0
    %v757 = vpop.f32.mrb[0].mxu0
    %v758 = vpop.f32.mrb[0].mxu0
    %759 = vdwg.mxu0
    %762 = vrot.lane.b32.xlu0 %v679, 64
    %v763 = vpop.permute.xlu0 %762
    %764 = vrot.lane.b32.xlu0 %v680, 64
    %v765 = vpop.permute.xlu0 %764
    %v767 = vsel %vm699, %v663, 0
    %v770 = vsel %vm699, %v664, 0
    %v773 = vsel %vm699, %v763, 0
    %v776 = vsel %vm699, %v765, 0
    %778 = vmatprep.subr.bf16.mxu0 0
    %779 = vmatpush1.bf16.xpose.msra.mxu0 %v773
    %780 = vmatprep.subr.bf16.mxu0 0
    %781 = vmatpush1.bf16.xpose.msra.mxu0 %v776
    %782 = vmatprep.subr.bf16.mxu0 0
    %783 = vmatpush1.bf16.xpose.msra.mxu0 0
    %784 = vmatprep.subr.bf16.mxu0 0
    %785 = vmatpush1.bf16.xpose.msra.mxu0 0
    %786 = vmatprep.subr.bf16.mxu0 0
    %787 = vmatpush1.bf16.xpose.msra.mxu0 0
    %788 = vmatprep.subr.bf16.mxu0 0
    %789 = vmatpush1.bf16.xpose.msra.mxu0 0
    %790 = vmatprep.subr.bf16.mxu0 0
    %791 = vmatpush1.bf16.xpose.msra.mxu0 0
    %792 = vmatprep.subr.bf16.mxu0 0
    %793 = vmatpush1.bf16.xpose.msra.mxu0 0
    %794 = vmatprep.subr.bf16.mxu0 0
    %795 = vmatpush1.bf16.xpose.msra.mxu0 0
    %796 = vmatprep.subr.bf16.mxu0 0
    %797 = vmatpush1.bf16.xpose.msra.mxu0 0
    %798 = vmatprep.subr.bf16.mxu0 0
    %799 = vmatpush1.bf16.xpose.msra.mxu0 0
    %800 = vmatprep.subr.bf16.mxu0 0
    %801 = vmatpush1.bf16.xpose.msra.mxu0 0
    %802 = vmatprep.subr.bf16.mxu0 0
    %803 = vmatpush1.bf16.xpose.msra.mxu0 0
    %804 = vmatprep.subr.bf16.mxu0 0
    %805 = vmatpush1.bf16.xpose.msra.mxu0 0
    %806 = vmatprep.subr.bf16.mxu0 0
    %807 = vmatpush1.bf16.xpose.msra.mxu0 0
    %808 = vmatprep.subr.bf16.mxu0 0
    %809 = vmatpush1.bf16.xpose.msra.mxu0 0
    %810 = vmatprep.mubr.bf16.mxu0 0
    %811 = vmatmul.mubr.bf16.gmra.mrb[0].mxu0 %v767
    %v812 = vpop.f32.mrb[0].mxu0
    %v813 = vadd.f32 %v84, %v812
    %v814 = vpop.f32.mrb[0].mxu0
    %v815 = vpop.f32.mrb[0].mxu0
    %v816 = vadd.f32 %v85, %v815
    %v817 = vpop.f32.mrb[0].mxu0
    %818 = vmatprep.mubr.bf16.mxu0 0
    %819 = vmatmul.mubr.bf16.gmra.mrb[0].mxu0 %v770
    %v820 = vpop.f32.mrb[0].mxu0
    %v821 = vadd.f32 %v86, %v820
    %v822 = vpop.f32.mrb[0].mxu0
    %v823 = vpop.f32.mrb[0].mxu0
    %v824 = vpop.f32.mrb[0].mxu0
    %825 = vdwg.mxu0
    %828 = vrot.lane.b32.xlu0 %v681, 64
    %v829 = vpop.permute.xlu0 %828
    %830 = vrot.lane.b32.xlu0 %v682, 64
    %v831 = vpop.permute.xlu0 %830
    %v833 = vsel %vm699, %v665, 0
    %v836 = vsel %vm699, %v666, 0
    %v839 = vsel %vm699, %v829, 0
    %v842 = vsel %vm699, %v831, 0
    %844 = vmatprep.subr.bf16.mxu0 0
    %845 = vmatpush1.bf16.xpose.msra.mxu0 %v839
    %846 = vmatprep.subr.bf16.mxu0 0
    %847 = vmatpush1.bf16.xpose.msra.mxu0 %v842
    %848 = vmatprep.subr.bf16.mxu0 0
    %849 = vmatpush1.bf16.xpose.msra.mxu0 0
    %850 = vmatprep.subr.bf16.mxu0 0
    %851 = vmatpush1.bf16.xpose.msra.mxu0 0
    %852 = vmatprep.subr.bf16.mxu0 0
    %853 = vmatpush1.bf16.xpose.msra.mxu0 0
    %854 = vmatprep.subr.bf16.mxu0 0
    %855 = vmatpush1.bf16.xpose.msra.mxu0 0
    %856 = vmatprep.subr.bf16.mxu0 0
    %857 = vmatpush1.bf16.xpose.msra.mxu0 0
    %858 = vmatprep.subr.bf16.mxu0 0
    %859 = vmatpush1.bf16.xpose.msra.mxu0 0
    %860 = vmatprep.subr.bf16.mxu0 0
    %861 = vmatpush1.bf16.xpose.msra.mxu0 0
    %862 = vmatprep.subr.bf16.mxu0 0
    %863 = vmatpush1.bf16.xpose.msra.mxu0 0
    %864 = vmatprep.subr.bf16.mxu0 0
    %865 = vmatpush1.bf16.xpose.msra.mxu0 0
    %866 = vmatprep.subr.bf16.mxu0 0
    %867 = vmatpush1.bf16.xpose.msra.mxu0 0
    %868 = vmatprep.subr.bf16.mxu0 0
    %869 = vmatpush1.bf16.xpose.msra.mxu0 0
    %870 = vmatprep.subr.bf16.mxu0 0
    %871 = vmatpush1.bf16.xpose.msra.mxu0 0
    %872 = vmatprep.subr.bf16.mxu0 0
    %873 = vmatpush1.bf16.xpose.msra.mxu0 0
    %874 = vmatprep.subr.bf16.mxu0 0
    %875 = vmatpush1.bf16.xpose.msra.mxu0 0
    %876 = vmatprep.mubr.bf16.mxu0 0
    %877 = vmatmul.mubr.bf16.gmra.mrb[0].mxu0 %v833
    %v878 = vpop.f32.mrb[0].mxu0
    %v879 = vadd.f32 %v84, %v878
    %v880 = vpop.f32.mrb[0].mxu0
    %v881 = vpop.f32.mrb[0].mxu0
    %v882 = vadd.f32 %v85, %v881
    %v883 = vpop.f32.mrb[0].mxu0
    %884 = vmatprep.mubr.bf16.mxu0 0
    %885 = vmatmul.mubr.bf16.gmra.mrb[0].mxu0 %v836
    %v886 = vpop.f32.mrb[0].mxu0
    %v887 = vadd.f32 %v86, %v886
    %v888 = vpop.f32.mrb[0].mxu0
    %v889 = vpop.f32.mrb[0].mxu0
    %v890 = vpop.f32.mrb[0].mxu0
    %891 = vdwg.mxu0
    %894 = vrot.lane.b32.xlu0 %v683, 64
    %v895 = vpop.permute.xlu0 %894
    %896 = vrot.lane.b32.xlu0 %v684, 64
    %v897 = vpop.permute.xlu0 %896
    %v899 = vsel %vm699, %v667, 0
    %v902 = vsel %vm699, %v668, 0
    %v905 = vsel %vm699, %v895, 0
    %v908 = vsel %vm699, %v897, 0
    %910 = vmatprep.subr.bf16.mxu0 0
    %911 = vmatpush1.bf16.xpose.msra.mxu0 %v905
    %912 = vmatprep.subr.bf16.mxu0 0
    %913 = vmatpush1.bf16.xpose.msra.mxu0 %v908
    %914 = vmatprep.subr.bf16.mxu0 0
    %915 = vmatpush1.bf16.xpose.msra.mxu0 0
    %916 = vmatprep.subr.bf16.mxu0 0
    %917 = vmatpush1.bf16.xpose.msra.mxu0 0
    %918 = vmatprep.subr.bf16.mxu0 0
    %919 = vmatpush1.bf16.xpose.msra.mxu0 0
    %920 = vmatprep.subr.bf16.mxu0 0
    %921 = vmatpush1.bf16.xpose.msra.mxu0 0
    %922 = vmatprep.subr.bf16.mxu0 0
    %923 = vmatpush1.bf16.xpose.msra.mxu0 0
    %924 = vmatprep.subr.bf16.mxu0 0
    %925 = vmatpush1.bf16.xpose.msra.mxu0 0
    %926 = vmatprep.subr.bf16.mxu0 0
    %927 = vmatpush1.bf16.xpose.msra.mxu0 0
    %928 = vmatprep.subr.bf16.mxu0 0
    %929 = vmatpush1.bf16.xpose.msra.mxu0 0
    %930 = vmatprep.subr.bf16.mxu0 0
    %931 = vmatpush1.bf16.xpose.msra.mxu0 0
    %932 = vmatprep.subr.bf16.mxu0 0
    %933 = vmatpush1.bf16.xpose.msra.mxu0 0
    %934 = vmatprep.subr.bf16.mxu0 0
    %935 = vmatpush1.bf16.xpose.msra.mxu0 0
    %936 = vmatprep.subr.bf16.mxu0 0
    %937 = vmatpush1.bf16.xpose.msra.mxu0 0
    %938 = vmatprep.subr.bf16.mxu0 0
    %939 = vmatpush1.bf16.xpose.msra.mxu0 0
    %940 = vmatprep.subr.bf16.mxu0 0
    %941 = vmatpush1.bf16.xpose.msra.mxu0 0
    %942 = vmatprep.mubr.bf16.mxu0 0
    %943 = vmatmul.mubr.bf16.gmra.mrb[0].mxu0 %v899
    %v944 = vpop.f32.mrb[0].mxu0
    %v945 = vadd.f32 %v84, %v944
    %v946 = vpop.f32.mrb[0].mxu0
    %v947 = vpop.f32.mrb[0].mxu0
    %v948 = vadd.f32 %v85, %v947
    %v949 = vpop.f32.mrb[0].mxu0
    %950 = vmatprep.mubr.bf16.mxu0 0
    %951 = vmatmul.mubr.bf16.gmra.mrb[0].mxu0 %v902
    %v952 = vpop.f32.mrb[0].mxu0
    %v953 = vadd.f32 %v86, %v952
    %v954 = vpop.f32.mrb[0].mxu0
    %v955 = vpop.f32.mrb[0].mxu0
    %v956 = vpop.f32.mrb[0].mxu0
    %957 = vdwg.mxu0
    %960 = vrot.lane.b32.xlu0 %v685, 64
    %v961 = vpop.permute.xlu0 %960
    %962 = vrot.lane.b32.xlu0 %v686, 64
    %v963 = vpop.permute.xlu0 %962
    %v965 = vsel %vm699, %v669, 0
    %v968 = vsel %vm699, %v670, 0
    %v971 = vsel %vm699, %v961, 0
    %v974 = vsel %vm699, %v963, 0
    %976 = vmatprep.subr.bf16.mxu0 0
    %977 = vmatpush1.bf16.xpose.msra.mxu0 %v971
    %978 = vmatprep.subr.bf16.mxu0 0
    %979 = vmatpush1.bf16.xpose.msra.mxu0 %v974
    %980 = vmatprep.subr.bf16.mxu0 0
    %981 = vmatpush1.bf16.xpose.msra.mxu0 0
    %982 = vmatprep.subr.bf16.mxu0 0
    %983 = vmatpush1.bf16.xpose.msra.mxu0 0
    %984 = vmatprep.subr.bf16.mxu0 0
    %985 = vmatpush1.bf16.xpose.msra.mxu0 0
    %986 = vmatprep.subr.bf16.mxu0 0
    %987 = vmatpush1.bf16.xpose.msra.mxu0 0
    %988 = vmatprep.subr.bf16.mxu0 0
    %989 = vmatpush1.bf16.xpose.msra.mxu0 0
    %990 = vmatprep.subr.bf16.mxu0 0
    %991 = vmatpush1.bf16.xpose.msra.mxu0 0
    %992 = vmatprep.subr.bf16.mxu0 0
    %993 = vmatpush1.bf16.xpose.msra.mxu0 0
    %994 = vmatprep.subr.bf16.mxu0 0
    %995 = vmatpush1.bf16.xpose.msra.mxu0 0
    %996 = vmatprep.subr.bf16.mxu0 0
    %997 = vmatpush1.bf16.xpose.msra.mxu0 0
    %998 = vmatprep.subr.bf16.mxu0 0
    %999 = vmatpush1.bf16.xpose.msra.mxu0 0
    %1000 = vmatprep.subr.bf16.mxu0 0
    %1001 = vmatpush1.bf16.xpose.msra.mxu0 0
    %1002 = vmatprep.subr.bf16.mxu0 0
    %1003 = vmatpush1.bf16.xpose.msra.mxu0 0
    %1004 = vmatprep.subr.bf16.mxu0 0
    %1005 = vmatpush1.bf16.xpose.msra.mxu0 0
    %1006 = vmatprep.subr.bf16.mxu0 0
    %1007 = vmatpush1.bf16.xpose.msra.mxu0 0
    %1008 = vmatprep.mubr.bf16.mxu0 0
    %1009 = vmatmul.mubr.bf16.gmra.mrb[0].mxu0 %v965
    %v1010 = vpop.f32.mrb[0].mxu0
    %v1011 = vadd.f32 %v84, %v1010
    %v1012 = vpop.f32.mrb[0].mxu0
    %v1013 = vpop.f32.mrb[0].mxu0
    %v1014 = vadd.f32 %v85, %v1013
    %v1015 = vpop.f32.mrb[0].mxu0
    %1016 = vmatprep.mubr.bf16.mxu0 0
    %1017 = vmatmul.mubr.bf16.gmra.mrb[0].mxu0 %v968
    %v1018 = vpop.f32.mrb[0].mxu0
    %v1019 = vadd.f32 %v86, %v1018
    %v1020 = vpop.f32.mrb[0].mxu0
    %v1021 = vpop.f32.mrb[0].mxu0
    %v1022 = vpop.f32.mrb[0].mxu0
    %1023 = vdwg.mxu0
    %1026 = vrot.lane.b32.xlu0 %v687, 64
    %v1027 = vpop.permute.xlu0 %1026
    %1028 = vrot.lane.b32.xlu0 %v688, 64
    %v1029 = vpop.permute.xlu0 %1028
    %v1031 = vsel %vm699, %v671, 0
    %v1034 = vsel %vm699, %v672, 0
    %v1037 = vsel %vm699, %v1027, 0
    %v1040 = vsel %vm699, %v1029, 0
    %1042 = vmatprep.subr.bf16.mxu0 0
    %1043 = vmatpush1.bf16.xpose.msra.mxu0 %v1037
    %1044 = vmatprep.subr.bf16.mxu0 0
    %1045 = vmatpush1.bf16.xpose.msra.mxu0 %v1040
    %1046 = vmatprep.subr.bf16.mxu0 0
    %1047 = vmatpush1.bf16.xpose.msra.mxu0 0
    %1048 = vmatprep.subr.bf16.mxu0 0
    %1049 = vmatpush1.bf16.xpose.msra.mxu0 0
    %1050 = vmatprep.subr.bf16.mxu0 0
    %1051 = vmatpush1.bf16.xpose.msra.mxu0 0
    %1052 = vmatprep.subr.bf16.mxu0 0
    %1053 = vmatpush1.bf16.xpose.msra.mxu0 0
    %1054 = vmatprep.subr.bf16.mxu0 0
    %1055 = vmatpush1.bf16.xpose.msra.mxu0 0
    %1056 = vmatprep.subr.bf16.mxu0 0
    %1057 = vmatpush1.bf16.xpose.msra.mxu0 0
    %1058 = vmatprep.subr.bf16.mxu0 0
    %1059 = vmatpush1.bf16.xpose.msra.mxu0 0
    %1060 = vmatprep.subr.bf16.mxu0 0
    %1061 = vmatpush1.bf16.xpose.msra.mxu0 0
    %1062 = vmatprep.subr.bf16.mxu0 0
    %1063 = vmatpush1.bf16.xpose.msra.mxu0 0
    %1064 = vmatprep.subr.bf16.mxu0 0
    %1065 = vmatpush1.bf16.xpose.msra.mxu0 0
    %1066 = vmatprep.subr.bf16.mxu0 0
    %1067 = vmatpush1.bf16.xpose.msra.mxu0 0
    %1068 = vmatprep.subr.bf16.mxu0 0
    %1069 = vmatpush1.bf16.xpose.msra.mxu0 0
    %1070 = vmatprep.subr.bf16.mxu0 0
    %1071 = vmatpush1.bf16.xpose.msra.mxu0 0
    %1072 = vmatprep.subr.bf16.mxu0 0
    %1073 = vmatpush1.bf16.xpose.msra.mxu0 0
    %1074 = vmatprep.mubr.bf16.mxu0 0
    %1075 = vmatmul.mubr.bf16.gmra.mrb[0].mxu0 %v1031
    %v1076 = vpop.f32.mrb[0].mxu0
    %v1077 = vadd.f32 %v84, %v1076
    %v1078 = vpop.f32.mrb[0].mxu0
    %v1079 = vpop.f32.mrb[0].mxu0
    %v1080 = vadd.f32 %v85, %v1079
    %v1081 = vpop.f32.mrb[0].mxu0
    %1082 = vmatprep.mubr.bf16.mxu0 0
    %1083 = vmatmul.mubr.bf16.gmra.mrb[0].mxu0 %v1034
    %v1084 = vpop.f32.mrb[0].mxu0
    %v1085 = vadd.f32 %v86, %v1084
    %v1086 = vpop.f32.mrb[0].mxu0
    %v1087 = vpop.f32.mrb[0].mxu0
    %v1088 = vpop.f32.mrb[0].mxu0
    %1089 = vdwg.mxu0
    %1092 = vrot.lane.b32.xlu0 %v689, 64
    %v1093 = vpop.permute.xlu0 %1092
    %1094 = vrot.lane.b32.xlu0 %v690, 64
    %v1095 = vpop.permute.xlu0 %1094
    %v1097 = vsel %vm699, %v673, 0
    %v1100 = vsel %vm699, %v674, 0
    %v1103 = vsel %vm699, %v1093, 0
    %v1106 = vsel %vm699, %v1095, 0
    %1108 = vmatprep.subr.bf16.mxu0 0
    %1109 = vmatpush1.bf16.xpose.msra.mxu0 %v1103
    %1110 = vmatprep.subr.bf16.mxu0 0
    %1111 = vmatpush1.bf16.xpose.msra.mxu0 %v1106
    %1112 = vmatprep.subr.bf16.mxu0 0
    %1113 = vmatpush1.bf16.xpose.msra.mxu0 0
    %1114 = vmatprep.subr.bf16.mxu0 0
    %1115 = vmatpush1.bf16.xpose.msra.mxu0 0
    %1116 = vmatprep.subr.bf16.mxu0 0
    %1117 = vmatpush1.bf16.xpose.msra.mxu0 0
    %1118 = vmatprep.subr.bf16.mxu0 0
    %1119 = vmatpush1.bf16.xpose.msra.mxu0 0
    %1120 = vmatprep.subr.bf16.mxu0 0
    %1121 = vmatpush1.bf16.xpose.msra.mxu0 0
    %1122 = vmatprep.subr.bf16.mxu0 0
    %1123 = vmatpush1.bf16.xpose.msra.mxu0 0
    %1124 = vmatprep.subr.bf16.mxu0 0
    %1125 = vmatpush1.bf16.xpose.msra.mxu0 0
    %1126 = vmatprep.subr.bf16.mxu0 0
    %1127 = vmatpush1.bf16.xpose.msra.mxu0 0
    %1128 = vmatprep.subr.bf16.mxu0 0
    %1129 = vmatpush1.bf16.xpose.msra.mxu0 0
    %1130 = vmatprep.subr.bf16.mxu0 0
    %1131 = vmatpush1.bf16.xpose.msra.mxu0 0
    %1132 = vmatprep.subr.bf16.mxu0 0
    %1133 = vmatpush1.bf16.xpose.msra.mxu0 0
    %1134 = vmatprep.subr.bf16.mxu0 0
    %1135 = vmatpush1.bf16.xpose.msra.mxu0 0
    %1136 = vmatprep.subr.bf16.mxu0 0
    %1137 = vmatpush1.bf16.xpose.msra.mxu0 0
    %1138 = vmatprep.subr.bf16.mxu0 0
    %1139 = vmatpush1.bf16.xpose.msra.mxu0 0
    %1140 = vmatprep.mubr.bf16.mxu0 0
    %1141 = vmatmul.mubr.bf16.gmra.mrb[0].mxu0 %v1097
    %v1142 = vpop.f32.mrb[0].mxu0
    %v1143 = vadd.f32 %v84, %v1142
    %v1144 = vpop.f32.mrb[0].mxu0
    %v1145 = vpop.f32.mrb[0].mxu0
    %v1146 = vadd.f32 %v85, %v1145
    %v1147 = vpop.f32.mrb[0].mxu0
    %1148 = vmatprep.mubr.bf16.mxu0 0
    %1149 = vmatmul.mubr.bf16.gmra.mrb[0].mxu0 %v1100
    %v1150 = vpop.f32.mrb[0].mxu0
    %v1151 = vadd.f32 %v86, %v1150
    %v1152 = vpop.f32.mrb[0].mxu0
    %v1153 = vpop.f32.mrb[0].mxu0
    %v1154 = vpop.f32.mrb[0].mxu0
    %1155 = vdwg.mxu0
    %1158 = vrot.lane.b32.xlu0 %v691, 64
    %v1159 = vpop.permute.xlu0 %1158
    %1160 = vrot.lane.b32.xlu0 %v692, 64
    %v1161 = vpop.permute.xlu0 %1160
    %v1163 = vsel %vm699, %v675, 0
    %v1166 = vsel %vm699, %v676, 0
    %v1169 = vsel %vm699, %v1159, 0
    %v1172 = vsel %vm699, %v1161, 0
    %1174 = vmatprep.subr.bf16.mxu0 0
    %1175 = vmatpush1.bf16.xpose.msra.mxu0 %v1169
    %1176 = vmatprep.subr.bf16.mxu0 0
    %1177 = vmatpush1.bf16.xpose.msra.mxu0 %v1172
    %1178 = vmatprep.subr.bf16.mxu0 0
    %1179 = vmatpush1.bf16.xpose.msra.mxu0 0
    %1180 = vmatprep.subr.bf16.mxu0 0
    %1181 = vmatpush1.bf16.xpose.msra.mxu0 0
    %1182 = vmatprep.subr.bf16.mxu0 0
    %1183 = vmatpush1.bf16.xpose.msra.mxu0 0
    %1184 = vmatprep.subr.bf16.mxu0 0
    %1185 = vmatpush1.bf16.xpose.msra.mxu0 0
    %1186 = vmatprep.subr.bf16.mxu0 0
    %1187 = vmatpush1.bf16.xpose.msra.mxu0 0
    %1188 = vmatprep.subr.bf16.mxu0 0
    %1189 = vmatpush1.bf16.xpose.msra.mxu0 0
    %1190 = vmatprep.subr.bf16.mxu0 0
    %1191 = vmatpush1.bf16.xpose.msra.mxu0 0
    %1192 = vmatprep.subr.bf16.mxu0 0
    %1193 = vmatpush1.bf16.xpose.msra.mxu0 0
    %1194 = vmatprep.subr.bf16.mxu0 0
    %1195 = vmatpush1.bf16.xpose.msra.mxu0 0
    %1196 = vmatprep.subr.bf16.mxu0 0
    %1197 = vmatpush1.bf16.xpose.msra.mxu0 0
    %1198 = vmatprep.subr.bf16.mxu0 0
    %1199 = vmatpush1.bf16.xpose.msra.mxu0 0
    %1200 = vmatprep.subr.bf16.mxu0 0
    %1201 = vmatpush1.bf16.xpose.msra.mxu0 0
    %1202 = vmatprep.subr.bf16.mxu0 0
    %1203 = vmatpush1.bf16.xpose.msra.mxu0 0
    %1204 = vmatprep.subr.bf16.mxu0 0
    %1205 = vmatpush1.bf16.xpose.msra.mxu0 0
    %1206 = vmatprep.mubr.bf16.mxu0 0
    %1207 = vmatmul.mubr.bf16.gmra.mrb[0].mxu0 %v1163
    %v1208 = vpop.f32.mrb[0].mxu0
    %v1209 = vadd.f32 %v84, %v1208
    %v1210 = vpop.f32.mrb[0].mxu0
    %v1211 = vpop.f32.mrb[0].mxu0
    %v1212 = vadd.f32 %v85, %v1211
    %v1213 = vpop.f32.mrb[0].mxu0
    %1214 = vmatprep.mubr.bf16.mxu0 0
    %1215 = vmatmul.mubr.bf16.gmra.mrb[0].mxu0 %v1166
    %v1216 = vpop.f32.mrb[0].mxu0
    %v1217 = vadd.f32 %v86, %v1216
    %v1218 = vpop.f32.mrb[0].mxu0
    %v1219 = vpop.f32.mrb[0].mxu0
    %v1220 = vpop.f32.mrb[0].mxu0
    %1221 = vdwg.mxu0
    %vm1222 = vcmask 195584
    %v1223 = vsel %vm1222, %v747, -inf
    %1224 = vmax.xlane.f32.xlu0 %v1223
    %v1225 = vpop.xlane.xlu0 %1224
    %v1226 = vsel %vm1222, %v750, -inf
    %1227 = vmax.xlane.f32.xlu0 %v1226
    %v1228 = vpop.xlane.xlu0 %1227
    %v1229 = vsel %vm1222, %v755, -inf
    %1230 = vmax.xlane.f32.xlu0 %v1229
    %v1231 = vpop.xlane.xlu0 %1230
    %v1232 = vsel %vm1222, %v813, -inf
    %1233 = vmax.xlane.f32.xlu0 %v1232
    %v1234 = vpop.xlane.xlu0 %1233
    %v1235 = vsel %vm1222, %v816, -inf
    %1236 = vmax.xlane.f32.xlu0 %v1235
    %v1237 = vpop.xlane.xlu0 %1236
    %v1238 = vsel %vm1222, %v821, -inf
    %1239 = vmax.xlane.f32.xlu0 %v1238
    %v1240 = vpop.xlane.xlu0 %1239
    %v1241 = vsel %vm1222, %v879, -inf
    %1242 = vmax.xlane.f32.xlu0 %v1241
    %v1243 = vpop.xlane.xlu0 %1242
    %v1244 = vsel %vm1222, %v882, -inf
    %1245 = vmax.xlane.f32.xlu0 %v1244
    %v1246 = vpop.xlane.xlu0 %1245
    %v1247 = vsel %vm1222, %v887, -inf
    %1248 = vmax.xlane.f32.xlu0 %v1247
    %v1249 = vpop.xlane.xlu0 %1248
    %v1250 = vsel %vm1222, %v945, -inf
    %1251 = vmax.xlane.f32.xlu0 %v1250
    %v1252 = vpop.xlane.xlu0 %1251
    %v1253 = vsel %vm1222, %v948, -inf
    %1254 = vmax.xlane.f32.xlu0 %v1253
    %v1255 = vpop.xlane.xlu0 %1254
    %v1256 = vsel %vm1222, %v953, -inf
    %1257 = vmax.xlane.f32.xlu0 %v1256
    %v1258 = vpop.xlane.xlu0 %1257
    %v1259 = vsel %vm1222, %v1011, -inf
    %1260 = vmax.xlane.f32.xlu0 %v1259
    %v1261 = vpop.xlane.xlu0 %1260
    %v1262 = vsel %vm1222, %v1014, -inf
    %1263 = vmax.xlane.f32.xlu0 %v1262
    %v1264 = vpop.xlane.xlu0 %1263
    %v1265 = vsel %vm1222, %v1019, -inf
    %1266 = vmax.xlane.f32.xlu0 %v1265
    %v1267 = vpop.xlane.xlu0 %1266
    %v1268 = vsel %vm1222, %v1077, -inf
    %1269 = vmax.xlane.f32.xlu0 %v1268
    %v1270 = vpop.xlane.xlu0 %1269
    %v1271 = vsel %vm1222, %v1080, -inf
    %1272 = vmax.xlane.f32.xlu0 %v1271
    %v1273 = vpop.xlane.xlu0 %1272
    %v1274 = vsel %vm1222, %v1085, -inf
    %1275 = vmax.xlane.f32.xlu0 %v1274
    %v1276 = vpop.xlane.xlu0 %1275
    %v1277 = vsel %vm1222, %v1143, -inf
    %1278 = vmax.xlane.f32.xlu0 %v1277
    %v1279 = vpop.xlane.xlu0 %1278
    %v1280 = vsel %vm1222, %v1146, -inf
    %1281 = vmax.xlane.f32.xlu0 %v1280
    %v1282 = vpop.xlane.xlu0 %1281
    %v1283 = vsel %vm1222, %v1151, -inf
    %1284 = vmax.xlane.f32.xlu0 %v1283
    %v1285 = vpop.xlane.xlu0 %1284
    %v1286 = vsel %vm1222, %v1209, -inf
    %1287 = vmax.xlane.f32.xlu0 %v1286
    %v1288 = vpop.xlane.xlu0 %1287
    %v1289 = vsel %vm1222, %v1212, -inf
    %1290 = vmax.xlane.f32.xlu0 %v1289
    %v1291 = vpop.xlane.xlu0 %1290
    %v1292 = vsel %vm1222, %v1217, -inf
    %1293 = vmax.xlane.f32.xlu0 %v1292
    %v1294 = vpop.xlane.xlu0 %1293
    %v1295 = vsub.f32 %v747, %v1225
    %v1296 = vsub.f32 %v750, %v1228
    %v1297 = vsub.f32 %v755, %v1231
    %v1298 = vsub.f32 %v813, %v1234
    %v1299 = vsub.f32 %v816, %v1237
    %v1300 = vsub.f32 %v821, %v1240
    %v1301 = vsub.f32 %v879, %v1243
    %v1302 = vsub.f32 %v882, %v1246
    %v1303 = vsub.f32 %v887, %v1249
    %v1304 = vsub.f32 %v945, %v1252
    %v1305 = vsub.f32 %v948, %v1255
    %v1306 = vsub.f32 %v953, %v1258
    %v1307 = vsub.f32 %v1011, %v1261
    %v1308 = vsub.f32 %v1014, %v1264
    %v1309 = vsub.f32 %v1019, %v1267
    %v1310 = vsub.f32 %v1077, %v1270
    %v1311 = vsub.f32 %v1080, %v1273
    %v1312 = vsub.f32 %v1085, %v1276
    %v1313 = vsub.f32 %v1143, %v1279
    %v1314 = vsub.f32 %v1146, %v1282
    %v1315 = vsub.f32 %v1151, %v1285
    %v1316 = vsub.f32 %v1209, %v1288
    %v1317 = vsub.f32 %v1212, %v1291
    %v1318 = vsub.f32 %v1217, %v1294
    %v1319 = vmul.f32 %v1295, 1.442695
    %v1320 = vpow.pop %v1319
    %v1321 = vmul.f32 %v1296, 1.442695
    %v1322 = vpow.pop %v1321
    %v1323 = vmul.f32 %v1297, 1.442695
    %v1324 = vpow.pop %v1323
    %v1325 = vmul.f32 %v1298, 1.442695
    %v1326 = vpow.pop %v1325
    %v1327 = vmul.f32 %v1299, 1.442695
    %v1328 = vpow.pop %v1327
    %v1329 = vmul.f32 %v1300, 1.442695
    %v1330 = vpow.pop %v1329
    %v1331 = vmul.f32 %v1301, 1.442695
    %v1332 = vpow.pop %v1331
    %v1333 = vmul.f32 %v1302, 1.442695
    %v1334 = vpow.pop %v1333
    %v1335 = vmul.f32 %v1303, 1.442695
    %v1336 = vpow.pop %v1335
    %v1337 = vmul.f32 %v1304, 1.442695
    %v1338 = vpow.pop %v1337
    %v1339 = vmul.f32 %v1305, 1.442695
    %v1340 = vpow.pop %v1339
    %v1341 = vmul.f32 %v1306, 1.442695
    %v1342 = vpow.pop %v1341
    %v1343 = vmul.f32 %v1307, 1.442695
    %v1344 = vpow.pop %v1343
    %v1345 = vmul.f32 %v1308, 1.442695
    %v1346 = vpow.pop %v1345
    %v1347 = vmul.f32 %v1309, 1.442695
    %v1348 = vpow.pop %v1347
    %v1349 = vmul.f32 %v1310, 1.442695
    %v1350 = vpow.pop %v1349
    %v1351 = vmul.f32 %v1311, 1.442695
    %v1352 = vpow.pop %v1351
    %v1353 = vmul.f32 %v1312, 1.442695
    %v1354 = vpow.pop %v1353
    %v1355 = vmul.f32 %v1313, 1.442695
    %v1356 = vpow.pop %v1355
    %v1357 = vmul.f32 %v1314, 1.442695
    %v1358 = vpow.pop %v1357
    %v1359 = vmul.f32 %v1315, 1.442695
    %v1360 = vpow.pop %v1359
    %v1361 = vmul.f32 %v1316, 1.442695
    %v1362 = vpow.pop %v1361
    %v1363 = vmul.f32 %v1317, 1.442695
    %v1364 = vpow.pop %v1363
    %v1365 = vmul.f32 %v1318, 1.442695
    %v1366 = vpow.pop %v1365
    %v1367 = vsel %vm1222, %v1320, 0.0
    %1368 = vadd.xlane.f32.xlu0 %v1367
    %v1369 = vpop.xlane.xlu0 %1368
    %v1370 = vsel %vm1222, %v1322, 0.0
    %1371 = vadd.xlane.f32.xlu0 %v1370
    %v1372 = vpop.xlane.xlu0 %1371
    %v1373 = vsel %vm1222, %v1324, 0.0
    %1374 = vadd.xlane.f32.xlu0 %v1373
    %v1375 = vpop.xlane.xlu0 %1374
    %v1376 = vsel %vm1222, %v1326, 0.0
    %1377 = vadd.xlane.f32.xlu0 %v1376
    %v1378 = vpop.xlane.xlu0 %1377
    %v1379 = vsel %vm1222, %v1328, 0.0
    %1380 = vadd.xlane.f32.xlu0 %v1379
    %v1381 = vpop.xlane.xlu0 %1380
    %v1382 = vsel %vm1222, %v1330, 0.0
    %1383 = vadd.xlane.f32.xlu0 %v1382
    %v1384 = vpop.xlane.xlu0 %1383
    %v1385 = vsel %vm1222, %v1332, 0.0
    %1386 = vadd.xlane.f32.xlu0 %v1385
    %v1387 = vpop.xlane.xlu0 %1386
    %v1388 = vsel %vm1222, %v1334, 0.0
    %1389 = vadd.xlane.f32.xlu0 %v1388
    %v1390 = vpop.xlane.xlu0 %1389
    %v1391 = vsel %vm1222, %v1336, 0.0
    %1392 = vadd.xlane.f32.xlu0 %v1391
    %v1393 = vpop.xlane.xlu0 %1392
    %v1394 = vsel %vm1222, %v1338, 0.0
    %1395 = vadd.xlane.f32.xlu0 %v1394
    %v1396 = vpop.xlane.xlu0 %1395
    %v1397 = vsel %vm1222, %v1340, 0.0
    %1398 = vadd.xlane.f32.xlu0 %v1397
    %v1399 = vpop.xlane.xlu0 %1398
    %v1400 = vsel %vm1222, %v1342, 0.0
    %1401 = vadd.xlane.f32.xlu0 %v1400
    %v1402 = vpop.xlane.xlu0 %1401
    %v1403 = vsel %vm1222, %v1344, 0.0
    %1404 = vadd.xlane.f32.xlu0 %v1403
    %v1405 = vpop.xlane.xlu0 %1404
    %v1406 = vsel %vm1222, %v1346, 0.0
    %1407 = vadd.xlane.f32.xlu0 %v1406
    %v1408 = vpop.xlane.xlu0 %1407
    %v1409 = vsel %vm1222, %v1348, 0.0
    %1410 = vadd.xlane.f32.xlu0 %v1409
    %v1411 = vpop.xlane.xlu0 %1410
    %v1412 = vsel %vm1222, %v1350, 0.0
    %1413 = vadd.xlane.f32.xlu0 %v1412
    %v1414 = vpop.xlane.xlu0 %1413
    %v1415 = vsel %vm1222, %v1352, 0.0
    %1416 = vadd.xlane.f32.xlu0 %v1415
    %v1417 = vpop.xlane.xlu0 %1416
    %v1418 = vsel %vm1222, %v1354, 0.0
    %1419 = vadd.xlane.f32.xlu0 %v1418
    %v1420 = vpop.xlane.xlu0 %1419
    %v1421 = vsel %vm1222, %v1356, 0.0
    %1422 = vadd.xlane.f32.xlu0 %v1421
    %v1423 = vpop.xlane.xlu0 %1422
    %v1424 = vsel %vm1222, %v1358, 0.0
    %1425 = vadd.xlane.f32.xlu0 %v1424
    %v1426 = vpop.xlane.xlu0 %1425
    %v1427 = vsel %vm1222, %v1360, 0.0
    %1428 = vadd.xlane.f32.xlu0 %v1427
    %v1429 = vpop.xlane.xlu0 %1428
    %v1430 = vsel %vm1222, %v1362, 0.0
    %1431 = vadd.xlane.f32.xlu0 %v1430
    %v1432 = vpop.xlane.xlu0 %1431
    %v1433 = vsel %vm1222, %v1364, 0.0
    %1434 = vadd.xlane.f32.xlu0 %v1433
    %v1435 = vpop.xlane.xlu0 %1434
    %v1436 = vsel %vm1222, %v1366, 0.0
    %1437 = vadd.xlane.f32.xlu0 %v1436
    %v1438 = vpop.xlane.xlu0 %1437
    %v1439 = vrcp.pop %v1369
    %v1440 = vrcp.pop %v1372
    %v1441 = vrcp.pop %v1375
    %v1442 = vrcp.pop %v1378
    %v1443 = vrcp.pop %v1381
    %v1444 = vrcp.pop %v1384
    %v1445 = vrcp.pop %v1387
    %v1446 = vrcp.pop %v1390
    %v1447 = vrcp.pop %v1393
    %v1448 = vrcp.pop %v1396
    %v1449 = vrcp.pop %v1399
    %v1450 = vrcp.pop %v1402
    %v1451 = vrcp.pop %v1405
    %v1452 = vrcp.pop %v1408
    %v1453 = vrcp.pop %v1411
    %v1454 = vrcp.pop %v1414
    %v1455 = vrcp.pop %v1417
    %v1456 = vrcp.pop %v1420
    %v1457 = vrcp.pop %v1423
    %v1458 = vrcp.pop %v1426
    %v1459 = vrcp.pop %v1429
    %v1460 = vrcp.pop %v1432
    %v1461 = vrcp.pop %v1435
    %v1462 = vrcp.pop %v1438
    %v1463 = vmul.f32 %v1320, %v1439
    %v1464 = vmul.f32 %v1322, %v1440
    %v1465 = vmul.f32 %v1324, %v1441
    %v1466 = vmul.f32 %v1326, %v1442
    %v1467 = vmul.f32 %v1328, %v1443
    %v1468 = vmul.f32 %v1330, %v1444
    %v1469 = vmul.f32 %v1332, %v1445
    %v1470 = vmul.f32 %v1334, %v1446
    %v1471 = vmul.f32 %v1336, %v1447
    %v1472 = vmul.f32 %v1338, %v1448
    %v1473 = vmul.f32 %v1340, %v1449
    %v1474 = vmul.f32 %v1342, %v1450
    %v1475 = vmul.f32 %v1344, %v1451
    %v1476 = vmul.f32 %v1346, %v1452
    %v1477 = vmul.f32 %v1348, %v1453
    %v1478 = vmul.f32 %v1350, %v1454
    %v1479 = vmul.f32 %v1352, %v1455
    %v1480 = vmul.f32 %v1354, %v1456
    %v1481 = vmul.f32 %v1356, %v1457
    %v1482 = vmul.f32 %v1358, %v1458
    %v1483 = vmul.f32 %v1360, %v1459
    %v1484 = vmul.f32 %v1362, %v1460
    %v1485 = vmul.f32 %v1364, %v1461
    %v1486 = vmul.f32 %v1366, %v1462
    %v1487 = vpack.c.bf16 %v1464, %v1463
    %v1488 = vpack.c.bf16 %v1465, %v1465
    %v1489 = vpack.c.bf16 %v1467, %v1466
    %v1490 = vpack.c.bf16 %v1468, %v1468
    %v1491 = vpack.c.bf16 %v1470, %v1469
    %v1492 = vpack.c.bf16 %v1471, %v1471
    %v1493 = vpack.c.bf16 %v1473, %v1472
    %v1494 = vpack.c.bf16 %v1474, %v1474
    %v1495 = vpack.c.bf16 %v1476, %v1475
    %v1496 = vpack.c.bf16 %v1477, %v1477
    %v1497 = vpack.c.bf16 %v1479, %v1478
    %v1498 = vpack.c.bf16 %v1480, %v1480
    %v1499 = vpack.c.bf16 %v1482, %v1481
    %v1500 = vpack.c.bf16 %v1483, %v1483
    %v1501 = vpack.c.bf16 %v1485, %v1484
    %v1502 = vpack.c.bf16 %v1486, %v1486
    %v1503 = vpack.c.bf16 %v495, %v491
    %v1504 = vpack.c.bf16 %v501, %v501
    %v1505 = vpack.c.bf16 %v511, %v505
    %v1506 = vpack.c.bf16 %v515, %v515
    %v1507 = vpack.c.bf16 %v610, %v608
    %v1508 = vpack.c.bf16 %v612, %v612
    %v1509 = vpack.c.bf16 %v616, %v614
    %v1510 = vpack.c.bf16 %v618, %v618
    %v1511 = vpack.c.bf16 %v628, %v626
    %v1512 = vpack.c.bf16 %v630, %v630
    %v1513 = vpack.c.bf16 %v634, %v632
    %v1514 = vpack.c.bf16 %v636, %v636
    %v1515 = vpack.c.bf16 %v646, %v644
    %v1516 = vpack.c.bf16 %v648, %v648
    %v1517 = vpack.c.bf16 %v652, %v650
    %v1518 = vpack.c.bf16 %v654, %v654
    %v1520 = vsel %vm1222, %v1487, 0
    %v1523 = vsel %vm1222, %v1488, 0
    %vm1525 = vcmask 1043456
    %v1527 = vsel %vm1525, %v1504, 0
    %1529 = vmatprep.subr.bf16.mxu0 0
    %1530 = vmatpush1.bf16.msra.mxu0 %v1503
    %1531 = vmatprep.subr.bf16.mxu0 0
    %1532 = vmatpush1.bf16.msra.mxu0 %v1527
    %1533 = vmatprep.subr.bf16.mxu0 0
    %1534 = vmatpush1.bf16.msra.mxu0 0
    %1535 = vmatprep.subr.bf16.mxu0 0
    %1536 = vmatpush1.bf16.msra.mxu0 0
    %1537 = vmatprep.subr.bf16.mxu0 0
    %1538 = vmatpush1.bf16.msra.mxu0 0
    %1539 = vmatprep.subr.bf16.mxu0 0
    %1540 = vmatpush1.bf16.msra.mxu0 0
    %1541 = vmatprep.subr.bf16.mxu0 0
    %1542 = vmatpush1.bf16.msra.mxu0 0
    %1543 = vmatprep.subr.bf16.mxu0 0
    %1544 = vmatpush1.bf16.msra.mxu0 0
    %1545 = vmatprep.subr.bf16.mxu0 0
    %1546 = vmatpush1.bf16.msra.mxu0 0
    %1547 = vmatprep.subr.bf16.mxu0 0
    %1548 = vmatpush1.bf16.msra.mxu0 0
    %1549 = vmatprep.subr.bf16.mxu0 0
    %1550 = vmatpush1.bf16.msra.mxu0 0
    %1551 = vmatprep.subr.bf16.mxu0 0
    %1552 = vmatpush1.bf16.msra.mxu0 0
    %1553 = vmatprep.subr.bf16.mxu0 0
    %1554 = vmatpush1.bf16.msra.mxu0 0
    %1555 = vmatprep.subr.bf16.mxu0 0
    %1556 = vmatpush1.bf16.msra.mxu0 0
    %1557 = vmatprep.subr.bf16.mxu0 0
    %1558 = vmatpush1.bf16.msra.mxu0 0
    %1559 = vmatprep.subr.bf16.mxu0 0
    %1560 = vmatpush1.bf16.msra.mxu0 0
    %1561 = vmatprep.mubr.bf16.mxu0 0
    %1562 = vmatmul.mubr.bf16.gmra.mrb[0].mxu0 %v1520
    %v1563 = vpop.f32.mrb[0].mxu0
    %v1564 = vadd.f32 0.0, %v1563
    %v1565 = vpop.f32.mrb[0].mxu0
    %v1566 = vpop.f32.mrb[0].mxu0
    %v1567 = vadd.f32 0.0, %v1566
    %v1568 = vpop.f32.mrb[0].mxu0
    %1569 = vmatprep.mubr.bf16.mxu0 0
    %1570 = vmatmul.mubr.bf16.gmra.mrb[0].mxu0 %v1523
    %v1571 = vpop.f32.mrb[0].mxu0
    %v1572 = vadd.f32 0.0, %v1571
    %v1573 = vpop.f32.mrb[0].mxu0
    %v1574 = vpop.f32.mrb[0].mxu0
    %v1575 = vpop.f32.mrb[0].mxu0
    %1576 = vdwg.mxu0
    %v1578 = vsel %vm1222, %v1489, 0
    %v1581 = vsel %vm1222, %v1490, 0
    %v1584 = vsel %vm1525, %v1506, 0
    %1586 = vmatprep.subr.bf16.mxu0 0
    %1587 = vmatpush1.bf16.msra.mxu0 %v1505
    %1588 = vmatprep.subr.bf16.mxu0 0
    %1589 = vmatpush1.bf16.msra.mxu0 %v1584
    %1590 = vmatprep.subr.bf16.mxu0 0
    %1591 = vmatpush1.bf16.msra.mxu0 0
    %1592 = vmatprep.subr.bf16.mxu0 0
    %1593 = vmatpush1.bf16.msra.mxu0 0
    %1594 = vmatprep.subr.bf16.mxu0 0
    %1595 = vmatpush1.bf16.msra.mxu0 0
    %1596 = vmatprep.subr.bf16.mxu0 0
    %1597 = vmatpush1.bf16.msra.mxu0 0
    %1598 = vmatprep.subr.bf16.mxu0 0
    %1599 = vmatpush1.bf16.msra.mxu0 0
    %1600 = vmatprep.subr.bf16.mxu0 0
    %1601 = vmatpush1.bf16.msra.mxu0 0
    %1602 = vmatprep.subr.bf16.mxu0 0
    %1603 = vmatpush1.bf16.msra.mxu0 0
    %1604 = vmatprep.subr.bf16.mxu0 0
    %1605 = vmatpush1.bf16.msra.mxu0 0
    %1606 = vmatprep.subr.bf16.mxu0 0
    %1607 = vmatpush1.bf16.msra.mxu0 0
    %1608 = vmatprep.subr.bf16.mxu0 0
    %1609 = vmatpush1.bf16.msra.mxu0 0
    %1610 = vmatprep.subr.bf16.mxu0 0
    %1611 = vmatpush1.bf16.msra.mxu0 0
    %1612 = vmatprep.subr.bf16.mxu0 0
    %1613 = vmatpush1.bf16.msra.mxu0 0
    %1614 = vmatprep.subr.bf16.mxu0 0
    %1615 = vmatpush1.bf16.msra.mxu0 0
    %1616 = vmatprep.subr.bf16.mxu0 0
    %1617 = vmatpush1.bf16.msra.mxu0 0
    %1618 = vmatprep.mubr.bf16.mxu0 0
    %1619 = vmatmul.mubr.bf16.gmra.mrb[0].mxu0 %v1578
    %v1620 = vpop.f32.mrb[0].mxu0
    %v1621 = vadd.f32 0.0, %v1620
    %v1622 = vpop.f32.mrb[0].mxu0
    %v1623 = vpop.f32.mrb[0].mxu0
    %v1624 = vadd.f32 0.0, %v1623
    %v1625 = vpop.f32.mrb[0].mxu0
    %1626 = vmatprep.mubr.bf16.mxu0 0
    %1627 = vmatmul.mubr.bf16.gmra.mrb[0].mxu0 %v1581
    %v1628 = vpop.f32.mrb[0].mxu0
    %v1629 = vadd.f32 0.0, %v1628
    %v1630 = vpop.f32.mrb[0].mxu0
    %v1631 = vpop.f32.mrb[0].mxu0
    %v1632 = vpop.f32.mrb[0].mxu0
    %1633 = vdwg.mxu0
    %v1635 = vsel %vm1222, %v1491, 0
    %v1638 = vsel %vm1222, %v1492, 0
    %v1641 = vsel %vm1525, %v1508, 0
    %1643 = vmatprep.subr.bf16.mxu0 0
    %1644 = vmatpush1.bf16.msra.mxu0 %v1507
    %1645 = vmatprep.subr.bf16.mxu0 0
    %1646 = vmatpush1.bf16.msra.mxu0 %v1641
    %1647 = vmatprep.subr.bf16.mxu0 0
    %1648 = vmatpush1.bf16.msra.mxu0 0
    %1649 = vmatprep.subr.bf16.mxu0 0
    %1650 = vmatpush1.bf16.msra.mxu0 0
    %1651 = vmatprep.subr.bf16.mxu0 0
    %1652 = vmatpush1.bf16.msra.mxu0 0
    %1653 = vmatprep.subr.bf16.mxu0 0
    %1654 = vmatpush1.bf16.msra.mxu0 0
    %1655 = vmatprep.subr.bf16.mxu0 0
    %1656 = vmatpush1.bf16.msra.mxu0 0
    %1657 = vmatprep.subr.bf16.mxu0 0
    %1658 = vmatpush1.bf16.msra.mxu0 0
    %1659 = vmatprep.subr.bf16.mxu0 0
    %1660 = vmatpush1.bf16.msra.mxu0 0
    %1661 = vmatprep.subr.bf16.mxu0 0
    %1662 = vmatpush1.bf16.msra.mxu0 0
    %1663 = vmatprep.subr.bf16.mxu0 0
    %1664 = vmatpush1.bf16.msra.mxu0 0
    %1665 = vmatprep.subr.bf16.mxu0 0
    %1666 = vmatpush1.bf16.msra.mxu0 0
    %1667 = vmatprep.subr.bf16.mxu0 0
    %1668 = vmatpush1.bf16.msra.mxu0 0
    %1669 = vmatprep.subr.bf16.mxu0 0
    %1670 = vmatpush1.bf16.msra.mxu0 0
    %1671 = vmatprep.subr.bf16.mxu0 0
    %1672 = vmatpush1.bf16.msra.mxu0 0
    %1673 = vmatprep.subr.bf16.mxu0 0
    %1674 = vmatpush1.bf16.msra.mxu0 0
    %1675 = vmatprep.mubr.bf16.mxu0 0
    %1676 = vmatmul.mubr.bf16.gmra.mrb[0].mxu0 %v1635
    %v1677 = vpop.f32.mrb[0].mxu0
    %v1678 = vadd.f32 0.0, %v1677
    %v1679 = vpop.f32.mrb[0].mxu0
    %v1680 = vpop.f32.mrb[0].mxu0
    %v1681 = vadd.f32 0.0, %v1680
    %v1682 = vpop.f32.mrb[0].mxu0
    %1683 = vmatprep.mubr.bf16.mxu0 0
    %1684 = vmatmul.mubr.bf16.gmra.mrb[0].mxu0 %v1638
    %v1685 = vpop.f32.mrb[0].mxu0
    %v1686 = vadd.f32 0.0, %v1685
    %v1687 = vpop.f32.mrb[0].mxu0
    %v1688 = vpop.f32.mrb[0].mxu0
    %v1689 = vpop.f32.mrb[0].mxu0
    %1690 = vdwg.mxu0
    %v1692 = vsel %vm1222, %v1493, 0
    %v1695 = vsel %vm1222, %v1494, 0
    %v1698 = vsel %vm1525, %v1510, 0
    %1700 = vmatprep.subr.bf16.mxu0 0
    %1701 = vmatpush1.bf16.msra.mxu0 %v1509
    %1702 = vmatprep.subr.bf16.mxu0 0
    %1703 = vmatpush1.bf16.msra.mxu0 %v1698
    %1704 = vmatprep.subr.bf16.mxu0 0
    %1705 = vmatpush1.bf16.msra.mxu0 0
    %1706 = vmatprep.subr.bf16.mxu0 0
    %1707 = vmatpush1.bf16.msra.mxu0 0
    %1708 = vmatprep.subr.bf16.mxu0 0
    %1709 = vmatpush1.bf16.msra.mxu0 0
    %1710 = vmatprep.subr.bf16.mxu0 0
    %1711 = vmatpush1.bf16.msra.mxu0 0
    %1712 = vmatprep.subr.bf16.mxu0 0
    %1713 = vmatpush1.bf16.msra.mxu0 0
    %1714 = vmatprep.subr.bf16.mxu0 0
    %1715 = vmatpush1.bf16.msra.mxu0 0
    %1716 = vmatprep.subr.bf16.mxu0 0
    %1717 = vmatpush1.bf16.msra.mxu0 0
    %1718 = vmatprep.subr.bf16.mxu0 0
    %1719 = vmatpush1.bf16.msra.mxu0 0
    %1720 = vmatprep.subr.bf16.mxu0 0
    %1721 = vmatpush1.bf16.msra.mxu0 0
    %1722 = vmatprep.subr.bf16.mxu0 0
    %1723 = vmatpush1.bf16.msra.mxu0 0
    %1724 = vmatprep.subr.bf16.mxu0 0
    %1725 = vmatpush1.bf16.msra.mxu0 0
    %1726 = vmatprep.subr.bf16.mxu0 0
    %1727 = vmatpush1.bf16.msra.mxu0 0
    %1728 = vmatprep.subr.bf16.mxu0 0
    %1729 = vmatpush1.bf16.msra.mxu0 0
    %1730 = vmatprep.subr.bf16.mxu0 0
    %1731 = vmatpush1.bf16.msra.mxu0 0
    %1732 = vmatprep.mubr.bf16.mxu0 0
    %1733 = vmatmul.mubr.bf16.gmra.mrb[0].mxu0 %v1692
    %v1734 = vpop.f32.mrb[0].mxu0
    %v1735 = vadd.f32 0.0, %v1734
    %v1736 = vpop.f32.mrb[0].mxu0
    %v1737 = vpop.f32.mrb[0].mxu0
    %v1738 = vadd.f32 0.0, %v1737
    %v1739 = vpop.f32.mrb[0].mxu0
    %1740 = vmatprep.mubr.bf16.mxu0 0
    %1741 = vmatmul.mubr.bf16.gmra.mrb[0].mxu0 %v1695
    %v1742 = vpop.f32.mrb[0].mxu0
    %v1743 = vadd.f32 0.0, %v1742
    %v1744 = vpop.f32.mrb[0].mxu0
    %v1745 = vpop.f32.mrb[0].mxu0
    %v1746 = vpop.f32.mrb[0].mxu0
    %1747 = vdwg.mxu0
    %v1749 = vsel %vm1222, %v1495, 0
    %v1752 = vsel %vm1222, %v1496, 0
    %v1755 = vsel %vm1525, %v1512, 0
    %1757 = vmatprep.subr.bf16.mxu0 0
    %1758 = vmatpush1.bf16.msra.mxu0 %v1511
    %1759 = vmatprep.subr.bf16.mxu0 0
    %1760 = vmatpush1.bf16.msra.mxu0 %v1755
    %1761 = vmatprep.subr.bf16.mxu0 0
    %1762 = vmatpush1.bf16.msra.mxu0 0
    %1763 = vmatprep.subr.bf16.mxu0 0
    %1764 = vmatpush1.bf16.msra.mxu0 0
    %1765 = vmatprep.subr.bf16.mxu0 0
    %1766 = vmatpush1.bf16.msra.mxu0 0
    %1767 = vmatprep.subr.bf16.mxu0 0
    %1768 = vmatpush1.bf16.msra.mxu0 0
    %1769 = vmatprep.subr.bf16.mxu0 0
    %1770 = vmatpush1.bf16.msra.mxu0 0
    %1771 = vmatprep.subr.bf16.mxu0 0
    %1772 = vmatpush1.bf16.msra.mxu0 0
    %1773 = vmatprep.subr.bf16.mxu0 0
    %1774 = vmatpush1.bf16.msra.mxu0 0
    %1775 = vmatprep.subr.bf16.mxu0 0
    %1776 = vmatpush1.bf16.msra.mxu0 0
    %1777 = vmatprep.subr.bf16.mxu0 0
    %1778 = vmatpush1.bf16.msra.mxu0 0
    %1779 = vmatprep.subr.bf16.mxu0 0
    %1780 = vmatpush1.bf16.msra.mxu0 0
    %1781 = vmatprep.subr.bf16.mxu0 0
    %1782 = vmatpush1.bf16.msra.mxu0 0
    %1783 = vmatprep.subr.bf16.mxu0 0
    %1784 = vmatpush1.bf16.msra.mxu0 0
    %1785 = vmatprep.subr.bf16.mxu0 0
    %1786 = vmatpush1.bf16.msra.mxu0 0
    %1787 = vmatprep.subr.bf16.mxu0 0
    %1788 = vmatpush1.bf16.msra.mxu0 0
    %1789 = vmatprep.mubr.bf16.mxu0 0
    %1790 = vmatmul.mubr.bf16.gmra.mrb[0].mxu0 %v1749
    %v1791 = vpop.f32.mrb[0].mxu0
    %v1792 = vadd.f32 0.0, %v1791
    %v1793 = vpop.f32.mrb[0].mxu0
    %v1794 = vpop.f32.mrb[0].mxu0
    %v1795 = vadd.f32 0.0, %v1794
    %v1796 = vpop.f32.mrb[0].mxu0
    %1797 = vmatprep.mubr.bf16.mxu0 0
    %1798 = vmatmul.mubr.bf16.gmra.mrb[0].mxu0 %v1752
    %v1799 = vpop.f32.mrb[0].mxu0
    %v1800 = vadd.f32 0.0, %v1799
    %v1801 = vpop.f32.mrb[0].mxu0
    %v1802 = vpop.f32.mrb[0].mxu0
    %v1803 = vpop.f32.mrb[0].mxu0
    %1804 = vdwg.mxu0
    %v1806 = vsel %vm1222, %v1497, 0
    %v1809 = vsel %vm1222, %v1498, 0
    %v1812 = vsel %vm1525, %v1514, 0
    %1814 = vmatprep.subr.bf16.mxu0 0
    %1815 = vmatpush1.bf16.msra.mxu0 %v1513
    %1816 = vmatprep.subr.bf16.mxu0 0
    %1817 = vmatpush1.bf16.msra.mxu0 %v1812
    %1818 = vmatprep.subr.bf16.mxu0 0
    %1819 = vmatpush1.bf16.msra.mxu0 0
    %1820 = vmatprep.subr.bf16.mxu0 0
    %1821 = vmatpush1.bf16.msra.mxu0 0
    %1822 = vmatprep.subr.bf16.mxu0 0
    %1823 = vmatpush1.bf16.msra.mxu0 0
    %1824 = vmatprep.subr.bf16.mxu0 0
    %1825 = vmatpush1.bf16.msra.mxu0 0
    %1826 = vmatprep.subr.bf16.mxu0 0
    %1827 = vmatpush1.bf16.msra.mxu0 0
    %1828 = vmatprep.subr.bf16.mxu0 0
    %1829 = vmatpush1.bf16.msra.mxu0 0
    %1830 = vmatprep.subr.bf16.mxu0 0
    %1831 = vmatpush1.bf16.msra.mxu0 0
    %1832 = vmatprep.subr.bf16.mxu0 0
    %1833 = vmatpush1.bf16.msra.mxu0 0
    %1834 = vmatprep.subr.bf16.mxu0 0
    %1835 = vmatpush1.bf16.msra.mxu0 0
    %1836 = vmatprep.subr.bf16.mxu0 0
    %1837 = vmatpush1.bf16.msra.mxu0 0
    %1838 = vmatprep.subr.bf16.mxu0 0
    %1839 = vmatpush1.bf16.msra.mxu0 0
    %1840 = vmatprep.subr.bf16.mxu0 0
    %1841 = vmatpush1.bf16.msra.mxu0 0
    %1842 = vmatprep.subr.bf16.mxu0 0
    %1843 = vmatpush1.bf16.msra.mxu0 0
    %1844 = vmatprep.subr.bf16.mxu0 0
    %1845 = vmatpush1.bf16.msra.mxu0 0
    %1846 = vmatprep.mubr.bf16.mxu0 0
    %1847 = vmatmul.mubr.bf16.gmra.mrb[0].mxu0 %v1806
    %v1848 = vpop.f32.mrb[0].mxu0
    %v1849 = vadd.f32 0.0, %v1848
    %v1850 = vpop.f32.mrb[0].mxu0
    %v1851 = vpop.f32.mrb[0].mxu0
    %v1852 = vadd.f32 0.0, %v1851
    %v1853 = vpop.f32.mrb[0].mxu0
    %1854 = vmatprep.mubr.bf16.mxu0 0
    %1855 = vmatmul.mubr.bf16.gmra.mrb[0].mxu0 %v1809
    %v1856 = vpop.f32.mrb[0].mxu0
    %v1857 = vadd.f32 0.0, %v1856
    %v1858 = vpop.f32.mrb[0].mxu0
    %v1859 = vpop.f32.mrb[0].mxu0
    %v1860 = vpop.f32.mrb[0].mxu0
    %1861 = vdwg.mxu0
    %v1863 = vsel %vm1222, %v1499, 0
    %v1866 = vsel %vm1222, %v1500, 0
    %v1869 = vsel %vm1525, %v1516, 0
    %1871 = vmatprep.subr.bf16.mxu0 0
    %1872 = vmatpush1.bf16.msra.mxu0 %v1515
    %1873 = vmatprep.subr.bf16.mxu0 0
    %1874 = vmatpush1.bf16.msra.mxu0 %v1869
    %1875 = vmatprep.subr.bf16.mxu0 0
    %1876 = vmatpush1.bf16.msra.mxu0 0
    %1877 = vmatprep.subr.bf16.mxu0 0
    %1878 = vmatpush1.bf16.msra.mxu0 0
    %1879 = vmatprep.subr.bf16.mxu0 0
    %1880 = vmatpush1.bf16.msra.mxu0 0
    %1881 = vmatprep.subr.bf16.mxu0 0
    %1882 = vmatpush1.bf16.msra.mxu0 0
    %1883 = vmatprep.subr.bf16.mxu0 0
    %1884 = vmatpush1.bf16.msra.mxu0 0
    %1885 = vmatprep.subr.bf16.mxu0 0
    %1886 = vmatpush1.bf16.msra.mxu0 0
    %1887 = vmatprep.subr.bf16.mxu0 0
    %1888 = vmatpush1.bf16.msra.mxu0 0
    %1889 = vmatprep.subr.bf16.mxu0 0
    %1890 = vmatpush1.bf16.msra.mxu0 0
    %1891 = vmatprep.subr.bf16.mxu0 0
    %1892 = vmatpush1.bf16.msra.mxu0 0
    %1893 = vmatprep.subr.bf16.mxu0 0
    %1894 = vmatpush1.bf16.msra.mxu0 0
    %1895 = vmatprep.subr.bf16.mxu0 0
    %1896 = vmatpush1.bf16.msra.mxu0 0
    %1897 = vmatprep.subr.bf16.mxu0 0
    %1898 = vmatpush1.bf16.msra.mxu0 0
    %1899 = vmatprep.subr.bf16.mxu0 0
    %1900 = vmatpush1.bf16.msra.mxu0 0
    %1901 = vmatprep.subr.bf16.mxu0 0
    %1902 = vmatpush1.bf16.msra.mxu0 0
    %1903 = vmatprep.mubr.bf16.mxu0 0
    %1904 = vmatmul.mubr.bf16.gmra.mrb[0].mxu0 %v1863
    %v1905 = vpop.f32.mrb[0].mxu0
    %v1906 = vadd.f32 0.0, %v1905
    %v1907 = vpop.f32.mrb[0].mxu0
    %v1908 = vpop.f32.mrb[0].mxu0
    %v1909 = vadd.f32 0.0, %v1908
    %v1910 = vpop.f32.mrb[0].mxu0
    %1911 = vmatprep.mubr.bf16.mxu0 0
    %1912 = vmatmul.mubr.bf16.gmra.mrb[0].mxu0 %v1866
    %v1913 = vpop.f32.mrb[0].mxu0
    %v1914 = vadd.f32 0.0, %v1913
    %v1915 = vpop.f32.mrb[0].mxu0
    %v1916 = vpop.f32.mrb[0].mxu0
    %v1917 = vpop.f32.mrb[0].mxu0
    %1918 = vdwg.mxu0
    %v1920 = vsel %vm1222, %v1501, 0
    %v1923 = vsel %vm1222, %v1502, 0
    %v1926 = vsel %vm1525, %v1518, 0
    %1928 = vmatprep.subr.bf16.mxu0 0
    %1929 = vmatpush1.bf16.msra.mxu0 %v1517
    %1930 = vmatprep.subr.bf16.mxu0 0
    %1931 = vmatpush1.bf16.msra.mxu0 %v1926
    %1932 = vmatprep.subr.bf16.mxu0 0
    %1933 = vmatpush1.bf16.msra.mxu0 0
    %1934 = vmatprep.subr.bf16.mxu0 0
    %1935 = vmatpush1.bf16.msra.mxu0 0
    %1936 = vmatprep.subr.bf16.mxu0 0
    %1937 = vmatpush1.bf16.msra.mxu0 0
    %1938 = vmatprep.subr.bf16.mxu0 0
    %1939 = vmatpush1.bf16.msra.mxu0 0
    %1940 = vmatprep.subr.bf16.mxu0 0
    %1941 = vmatpush1.bf16.msra.mxu0 0
    %1942 = vmatprep.subr.bf16.mxu0 0
    %1943 = vmatpush1.bf16.msra.mxu0 0
    %1944 = vmatprep.subr.bf16.mxu0 0
    %1945 = vmatpush1.bf16.msra.mxu0 0
    %1946 = vmatprep.subr.bf16.mxu0 0
    %1947 = vmatpush1.bf16.msra.mxu0 0
    %1948 = vmatprep.subr.bf16.mxu0 0
    %1949 = vmatpush1.bf16.msra.mxu0 0
    %1950 = vmatprep.subr.bf16.mxu0 0
    %1951 = vmatpush1.bf16.msra.mxu0 0
    %1952 = vmatprep.subr.bf16.mxu0 0
    %1953 = vmatpush1.bf16.msra.mxu0 0
    %1954 = vmatprep.subr.bf16.mxu0 0
    %1955 = vmatpush1.bf16.msra.mxu0 0
    %1956 = vmatprep.subr.bf16.mxu0 0
    %1957 = vmatpush1.bf16.msra.mxu0 0
    %1958 = vmatprep.subr.bf16.mxu0 0
    %1959 = vmatpush1.bf16.msra.mxu0 0
    %1960 = vmatprep.mubr.bf16.mxu0 0
    %1961 = vmatmul.mubr.bf16.gmra.mrb[0].mxu0 %v1920
    %v1962 = vpop.f32.mrb[0].mxu0
    %v1963 = vadd.f32 0.0, %v1962
    %v1964 = vpop.f32.mrb[0].mxu0
    %v1965 = vpop.f32.mrb[0].mxu0
    %v1966 = vadd.f32 0.0, %v1965
    %v1967 = vpop.f32.mrb[0].mxu0
    %1968 = vmatprep.mubr.bf16.mxu0 0
    %1969 = vmatmul.mubr.bf16.gmra.mrb[0].mxu0 %v1923
    %v1970 = vpop.f32.mrb[0].mxu0
    %v1971 = vadd.f32 0.0, %v1970
    %v1972 = vpop.f32.mrb[0].mxu0
    %v1973 = vpop.f32.mrb[0].mxu0
    %v1974 = vpop.f32.mrb[0].mxu0
    %1975 = vdwg.mxu0
    %1982 = vrot.lane.b32.xlu0 %v1678, 16
    %v1983 = vpop.permute.xlu0 %1982
    %1984 = vrot.lane.b32.xlu0 %v1681, 16
    %v1985 = vpop.permute.xlu0 %1984
    %1986 = vrot.lane.b32.xlu0 %v1686, 16
    %v1987 = vpop.permute.xlu0 %1986
    %1988 = vrot.lane.b32.xlu0 %v1735, 16
    %v1989 = vpop.permute.xlu0 %1988
    %1990 = vrot.lane.b32.xlu0 %v1738, 16
    %v1991 = vpop.permute.xlu0 %1990
    %1992 = vrot.lane.b32.xlu0 %v1743, 16
    %v1993 = vpop.permute.xlu0 %1992
    %2006 = vrot.lane.b32.xlu0 %v1792, 32
    %v2007 = vpop.permute.xlu0 %2006
    %2008 = vrot.lane.b32.xlu0 %v1795, 32
    %v2009 = vpop.permute.xlu0 %2008
    %2010 = vrot.lane.b32.xlu0 %v1800, 32
    %v2011 = vpop.permute.xlu0 %2010
    %2012 = vrot.lane.b32.xlu0 %v1849, 32
    %v2013 = vpop.permute.xlu0 %2012
    %2014 = vrot.lane.b32.xlu0 %v1852, 32
    %v2015 = vpop.permute.xlu0 %2014
    %2016 = vrot.lane.b32.xlu0 %v1857, 32
    %v2017 = vpop.permute.xlu0 %2016
    %2030 = vrot.lane.b32.xlu0 %v1906, 48
    %v2031 = vpop.permute.xlu0 %2030
    %2032 = vrot.lane.b32.xlu0 %v1909, 48
    %v2033 = vpop.permute.xlu0 %2032
    %2034 = vrot.lane.b32.xlu0 %v1914, 48
    %v2035 = vpop.permute.xlu0 %2034
    %2036 = vrot.lane.b32.xlu0 %v1963, 48
    %v2037 = vpop.permute.xlu0 %2036
    %2038 = vrot.lane.b32.xlu0 %v1966, 48
    %v2039 = vpop.permute.xlu0 %2038
    %2040 = vrot.lane.b32.xlu0 %v1971, 48
    %v2041 = vpop.permute.xlu0 %2040
    %v2048 = vsel %vm699, %v1564, %v1983
    %v2049 = vsel %vm699, %v1567, %v1985
    %v2050 = vsel %vm699, %v1572, %v1987
    %v2051 = vsel %vm699, %v1621, %v1989
    %v2052 = vsel %vm699, %v1624, %v1991
    %v2053 = vsel %vm699, %v1629, %v1993
    %vm2054 = vcmask 261120
    %v2055 = vsel %vm2054, %v2048, %v2007
    %v2056 = vsel %vm2054, %v2049, %v2009
    %v2057 = vsel %vm2054, %v2050, %v2011
    %v2058 = vsel %vm2054, %v2051, %v2013
    %v2059 = vsel %vm2054, %v2052, %v2015
    %v2060 = vsel %vm2054, %v2053, %v2017
    %vm2061 = vcmask 392192
    %v2062 = vsel %vm2061, %v2055, %v2031
    %v2063 = vsel %vm2061, %v2056, %v2033
    %v2064 = vsel %vm2061, %v2057, %v2035
    %v2065 = vsel %vm2061, %v2058, %v2037
    %v2066 = vsel %vm2061, %v2059, %v2039
    %v2067 = vsel %vm2061, %v2060, %v2041
    %v2068 = vpack.c.bf16 %v2063, %v2062
    %v2069 = vpack.c.bf16 %v2065, %v2064
    %v2070 = vpack.c.bf16 %v2067, %v2066
    %v2071 = vld [vmem:[%s10] sm:$0xf]
    %v2072 = vld [vmem:[%s10 + $0x4] sm:$0xf]
    %v2073 = vld [vmem:[%s10 + $0x8] sm:$0xf]
    %v2074 = vld [vmem:[%s10 + $0xc] sm:$0xf]
    %v2075 = vld [vmem:[%s10 + $0x10] sm:$0xf]
    %v2076 = vld [vmem:[%s10 + $0x14] sm:$0xf]
    %v2077 = vld [vmem:[%s10 + $0x18] sm:$0xf]
    %v2078 = vld [vmem:[%s10 + $0x1c] sm:$0xf]
    %v2087 = vunpack.c.l.b16 %v2071
    %v2088 = vunpack.c.l.b16 %v2072
    %v2089 = vunpack.c.l.b16 %v2073
    %v2090 = vunpack.c.l.b16 %v2074
    %v2091 = vunpack.c.l.b16 %v2075
    %v2092 = vunpack.c.l.b16 %v2076
    %v2093 = vunpack.c.l.b16 %v2077
    %v2094 = vunpack.c.l.b16 %v2078
    %v2095 = vpack.c.b16 %v2088, %v2087
    %v2096 = vpack.c.b16 %v2090, %v2089
    %v2097 = vpack.c.b16 %v2092, %v2091
    %v2098 = vpack.c.b16 %v2094, %v2093
    %v2104 = vsel %vm201, %v2068, 0
    %v2107 = vsel %vm201, %v2069, 0
    %v2110 = vsel %vm201, %v2070, 0
    %2112 = vmatprep.subr.bf16.mxu0 0
    %2113 = vmatpush1.bf16.msra.mxu0 %v2095
    %2114 = vmatprep.subr.bf16.mxu0 0
    %2115 = vmatpush1.bf16.msra.mxu0 %v2096
    %2116 = vmatprep.subr.bf16.mxu0 0
    %2117 = vmatpush1.bf16.msra.mxu0 %v2097
    %2118 = vmatprep.subr.bf16.mxu0 0
    %2119 = vmatpush1.bf16.msra.mxu0 %v2098
    %2120 = vmatprep.subr.bf16.mxu0 0
    %2121 = vmatpush1.bf16.msra.mxu0 0
    %2122 = vmatprep.subr.bf16.mxu0 0
    %2123 = vmatpush1.bf16.msra.mxu0 0
    %2124 = vmatprep.subr.bf16.mxu0 0
    %2125 = vmatpush1.bf16.msra.mxu0 0
    %2126 = vmatprep.subr.bf16.mxu0 0
    %2127 = vmatpush1.bf16.msra.mxu0 0
    %2128 = vmatprep.subr.bf16.mxu0 0
    %2129 = vmatpush1.bf16.msra.mxu0 0
    %2130 = vmatprep.subr.bf16.mxu0 0
    %2131 = vmatpush1.bf16.msra.mxu0 0
    %2132 = vmatprep.subr.bf16.mxu0 0
    %2133 = vmatpush1.bf16.msra.mxu0 0
    %2134 = vmatprep.subr.bf16.mxu0 0
    %2135 = vmatpush1.bf16.msra.mxu0 0
    %2136 = vmatprep.subr.bf16.mxu0 0
    %2137 = vmatpush1.bf16.msra.mxu0 0
    %2138 = vmatprep.subr.bf16.mxu0 0
    %2139 = vmatpush1.bf16.msra.mxu0 0
    %2140 = vmatprep.subr.bf16.mxu0 0
    %2141 = vmatpush1.bf16.msra.mxu0 0
    %2142 = vmatprep.subr.bf16.mxu0 0
    %2143 = vmatpush1.bf16.msra.mxu0 0
    %2144 = vmatprep.mubr.bf16.mxu0 0
    %2145 = vmatmul.mubr.bf16.gmra.mrb[0].mxu0 %v2104
    %v2146 = vpop.f32.mrb[0].mxu0
    %v2147 = vadd.f32 0.0, %v2146
    %v2148 = vpop.f32.mrb[0].mxu0
    %v2149 = vpop.f32.mrb[0].mxu0
    %v2150 = vadd.f32 0.0, %v2149
    %v2151 = vpop.f32.mrb[0].mxu0
    %2152 = vmatprep.mubr.bf16.mxu0 0
    %2153 = vmatmul.mubr.bf16.gmra.mrb[0].mxu0 %v2107
    %v2154 = vpop.f32.mrb[0].mxu0
    %v2155 = vadd.f32 0.0, %v2154
    %v2156 = vpop.f32.mrb[0].mxu0
    %v2157 = vpop.f32.mrb[0].mxu0
    %v2158 = vadd.f32 0.0, %v2157
    %v2159 = vpop.f32.mrb[0].mxu0
    %2160 = vmatprep.mubr.bf16.mxu0 0
    %2161 = vmatmul.mubr.bf16.gmra.mrb[0].mxu0 %v2110
    %v2162 = vpop.f32.mrb[0].mxu0
    %v2163 = vadd.f32 0.0, %v2162
    %v2164 = vpop.f32.mrb[0].mxu0
    %v2165 = vpop.f32.mrb[0].mxu0
    %v2166 = vadd.f32 0.0, %v2165
    %v2167 = vpop.f32.mrb[0].mxu0
    %2168 = vdwg.mxu0
    %v2169 = vadd.f32 %v271, %v2147
    %v2170 = vadd.f32 %v272, %v2150
    %v2171 = vadd.f32 %v273, %v2155
    %v2172 = vadd.f32 %v274, %v2158
    %v2173 = vadd.f32 %v275, %v2163
    %v2174 = vadd.f32 %v276, %v2166
    %v2175 = vld [vmem:[%s11] sm:$0x1]
    %v2177 = vlaneseq
    %v2178 = vshrl.u32 %v2177, 7
    %v2179 = vsub.s32 0, %v2178
    %v2180 = vrot.slane %v2175, %v2179
    %v2182 = vadd.f32 %v2169, %v2180
    %v2183 = vadd.f32 %v2170, %v2180
    %v2184 = vadd.f32 %v2171, %v2180
    %v2185 = vadd.f32 %v2172, %v2180
    %v2186 = vadd.f32 %v2173, %v2180
    %v2187 = vadd.f32 %v2174, %v2180
    %v2188 = vld [vmem:[%s12] sm:$0x1]
    %v2189 = vld [vmem:[%s13] sm:$0x1]
    %v2190 = vsel %vm201, %v2182, 0.0
    %2191 = vadd.xlane.f32.xlu0 %v2190
    %v2192 = vpop.xlane.xlu0 %2191
    %v2193 = vsel %vm201, %v2183, 0.0
    %2194 = vadd.xlane.f32.xlu0 %v2193
    %v2195 = vpop.xlane.xlu0 %2194
    %v2196 = vsel %vm201, %v2184, 0.0
    %2197 = vadd.xlane.f32.xlu0 %v2196
    %v2198 = vpop.xlane.xlu0 %2197
    %v2199 = vsel %vm201, %v2185, 0.0
    %2200 = vadd.xlane.f32.xlu0 %v2199
    %v2201 = vpop.xlane.xlu0 %2200
    %v2202 = vsel %vm201, %v2186, 0.0
    %2203 = vadd.xlane.f32.xlu0 %v2202
    %v2204 = vpop.xlane.xlu0 %2203
    %v2205 = vsel %vm201, %v2187, 0.0
    %2206 = vadd.xlane.f32.xlu0 %v2205
    %v2207 = vpop.xlane.xlu0 %2206
    %v2208 = vmul.f32 %v2192, %v297
    %v2209 = vmul.f32 %v2195, %v297
    %v2210 = vmul.f32 %v2198, %v297
    %v2211 = vmul.f32 %v2201, %v297
    %v2212 = vmul.f32 %v2204, %v297
    %v2213 = vmul.f32 %v2207, %v297
    %v2214 = vsub.f32 %v2182, %v2208
    %v2215 = vsub.f32 %v2183, %v2209
    %v2216 = vsub.f32 %v2184, %v2210
    %v2217 = vsub.f32 %v2185, %v2211
    %v2218 = vsub.f32 %v2186, %v2212
    %v2219 = vsub.f32 %v2187, %v2213
    %v2220 = vmul.f32 %v2214, %v2214
    %v2221 = vmul.f32 %v2215, %v2215
    %v2222 = vmul.f32 %v2216, %v2216
    %v2223 = vmul.f32 %v2217, %v2217
    %v2224 = vmul.f32 %v2218, %v2218
    %v2225 = vmul.f32 %v2219, %v2219
    %v2226 = vsel %vm201, %v2220, 0.0
    %2227 = vadd.xlane.f32.xlu0 %v2226
    %v2228 = vpop.xlane.xlu0 %2227
    %v2229 = vsel %vm201, %v2221, 0.0
    %2230 = vadd.xlane.f32.xlu0 %v2229
    %v2231 = vpop.xlane.xlu0 %2230
    %v2232 = vsel %vm201, %v2222, 0.0
    %2233 = vadd.xlane.f32.xlu0 %v2232
    %v2234 = vpop.xlane.xlu0 %2233
    %v2235 = vsel %vm201, %v2223, 0.0
    %2236 = vadd.xlane.f32.xlu0 %v2235
    %v2237 = vpop.xlane.xlu0 %2236
    %v2238 = vsel %vm201, %v2224, 0.0
    %2239 = vadd.xlane.f32.xlu0 %v2238
    %v2240 = vpop.xlane.xlu0 %2239
    %v2241 = vsel %vm201, %v2225, 0.0
    %2242 = vadd.xlane.f32.xlu0 %v2241
    %v2243 = vpop.xlane.xlu0 %2242
    %v2244 = vmul.f32 %v2228, %v297
    %v2245 = vmul.f32 %v2231, %v297
    %v2246 = vmul.f32 %v2234, %v297
    %v2247 = vmul.f32 %v2237, %v297
    %v2248 = vmul.f32 %v2240, %v297
    %v2249 = vmul.f32 %v2243, %v297
    %v2250 = vadd.f32 %v2244, 1e-05
    %v2251 = vadd.f32 %v2245, 1e-05
    %v2252 = vadd.f32 %v2246, 1e-05
    %v2253 = vadd.f32 %v2247, 1e-05
    %v2254 = vadd.f32 %v2248, 1e-05
    %v2255 = vadd.f32 %v2249, 1e-05
    %v2256 = vrsqrt.pop %v2250
    %v2257 = vrsqrt.pop %v2251
    %v2258 = vrsqrt.pop %v2252
    %v2259 = vrsqrt.pop %v2253
    %v2260 = vrsqrt.pop %v2254
    %v2261 = vrsqrt.pop %v2255
    %v2262 = vmul.f32 %v2214, %v2256
    %v2263 = vmul.f32 %v2215, %v2257
    %v2264 = vmul.f32 %v2216, %v2258
    %v2265 = vmul.f32 %v2217, %v2259
    %v2266 = vmul.f32 %v2218, %v2260
    %v2267 = vmul.f32 %v2219, %v2261
    %v2269 = vlaneseq
    %v2270 = vshrl.u32 %v2269, 7
    %v2271 = vsub.s32 0, %v2270
    %v2272 = vrot.slane %v2188, %v2271
    %v2274 = vmul.f32 %v2262, %v2272
    %v2275 = vmul.f32 %v2263, %v2272
    %v2276 = vmul.f32 %v2264, %v2272
    %v2277 = vmul.f32 %v2265, %v2272
    %v2278 = vmul.f32 %v2266, %v2272
    %v2279 = vmul.f32 %v2267, %v2272
    %v2281 = vlaneseq
    %v2282 = vshrl.u32 %v2281, 7
    %v2283 = vsub.s32 0, %v2282
    %v2284 = vrot.slane %v2189, %v2283
    %v2286 = vadd.f32 %v2274, %v2284
    %v2287 = vadd.f32 %v2275, %v2284
    %v2288 = vadd.f32 %v2276, %v2284
    %v2289 = vadd.f32 %v2277, %v2284
    %v2290 = vadd.f32 %v2278, %v2284
    %v2291 = vadd.f32 %v2279, %v2284
    %v2292 = vpack.c.bf16 %v2287, %v2286
    %v2293 = vpack.c.bf16 %v2289, %v2288
    %v2294 = vpack.c.bf16 %v2291, %v2290
    %v2295 = vld [vmem:[%s14] sm:$0xff]
    %v2296 = vld [vmem:[%s14 + $0x8] sm:$0xff]
    %v2297 = vld [vmem:[%s14 + $0x10] sm:$0xff]
    %v2298 = vld [vmem:[%s14 + $0x18] sm:$0xff]
    %v2299 = vld [vmem:[%s14 + $0x20] sm:$0xff]
    %v2300 = vld [vmem:[%s14 + $0x28] sm:$0xff]
    %v2301 = vld [vmem:[%s14 + $0x30] sm:$0xff]
    %v2302 = vld [vmem:[%s14 + $0x38] sm:$0xff]
    %v2303 = vld [vmem:[%s15] sm:$0x3]
    %v2305 = vlaneseq
    %v2306 = vshrl.u32 %v2305, 7
    %v2307 = vsub.s32 0, %v2306
    %v2308 = vrot.slane %v2303, %v2307
    %v2309 = vlaneseq
    %v2310 = vshrl.u32 %v2309, 7
    %v2311 = vsub.s32 1, %v2310
    %v2312 = vrot.slane %v2303, %v2311
    %v2323 = vunpack.c.l.b16 %v2295
    %v2324 = vunpack.c.h.b16 %v2295
    %v2325 = vunpack.c.l.b16 %v2296
    %v2326 = vunpack.c.h.b16 %v2296
    %v2327 = vunpack.c.l.b16 %v2297
    %v2328 = vunpack.c.h.b16 %v2297
    %v2329 = vunpack.c.l.b16 %v2298
    %v2330 = vunpack.c.h.b16 %v2298
    %v2331 = vunpack.c.l.b16 %v2299
    %v2332 = vunpack.c.h.b16 %v2299
    %v2333 = vunpack.c.l.b16 %v2300
    %v2334 = vunpack.c.h.b16 %v2300
    %v2335 = vunpack.c.l.b16 %v2301
    %v2336 = vunpack.c.h.b16 %v2301
    %v2337 = vunpack.c.l.b16 %v2302
    %v2338 = vunpack.c.h.b16 %v2302
    %v2339 = vpack.c.b16 %v2325, %v2323
    %v2340 = vpack.c.b16 %v2326, %v2324
    %v2341 = vpack.c.b16 %v2329, %v2327
    %v2342 = vpack.c.b16 %v2330, %v2328
    %v2343 = vpack.c.b16 %v2333, %v2331
    %v2344 = vpack.c.b16 %v2334, %v2332
    %v2345 = vpack.c.b16 %v2337, %v2335
    %v2346 = vpack.c.b16 %v2338, %v2336
    %v2356 = vsel %vm201, %v2292, 0
    %v2359 = vsel %vm201, %v2293, 0
    %v2362 = vsel %vm201, %v2294, 0
    %2364 = vmatprep.subr.bf16.mxu0 %v2340
    %2365 = vmatpush1.bf16.msra.mxu0 %v2339
    %2366 = vmatprep.subr.bf16.mxu0 %v2342
    %2367 = vmatpush1.bf16.msra.mxu0 %v2341
    %2368 = vmatprep.subr.bf16.mxu0 %v2344
    %2369 = vmatpush1.bf16.msra.mxu0 %v2343
    %2370 = vmatprep.subr.bf16.mxu0 %v2346
    %2371 = vmatpush1.bf16.msra.mxu0 %v2345
    %2372 = vmatprep.subr.bf16.mxu0 0
    %2373 = vmatpush1.bf16.msra.mxu0 0
    %2374 = vmatprep.subr.bf16.mxu0 0
    %2375 = vmatpush1.bf16.msra.mxu0 0
    %2376 = vmatprep.subr.bf16.mxu0 0
    %2377 = vmatpush1.bf16.msra.mxu0 0
    %2378 = vmatprep.subr.bf16.mxu0 0
    %2379 = vmatpush1.bf16.msra.mxu0 0
    %2380 = vmatprep.subr.bf16.mxu0 0
    %2381 = vmatpush1.bf16.msra.mxu0 0
    %2382 = vmatprep.subr.bf16.mxu0 0
    %2383 = vmatpush1.bf16.msra.mxu0 0
    %2384 = vmatprep.subr.bf16.mxu0 0
    %2385 = vmatpush1.bf16.msra.mxu0 0
    %2386 = vmatprep.subr.bf16.mxu0 0
    %2387 = vmatpush1.bf16.msra.mxu0 0
    %2388 = vmatprep.subr.bf16.mxu0 0
    %2389 = vmatpush1.bf16.msra.mxu0 0
    %2390 = vmatprep.subr.bf16.mxu0 0
    %2391 = vmatpush1.bf16.msra.mxu0 0
    %2392 = vmatprep.subr.bf16.mxu0 0
    %2393 = vmatpush1.bf16.msra.mxu0 0
    %2394 = vmatprep.subr.bf16.mxu0 0
    %2395 = vmatpush1.bf16.msra.mxu0 0
    %2396 = vmatprep.mubr.bf16.mxu0 0
    %2397 = vmatmul.mubr.bf16.gmra.mrb[0].mxu0 %v2356
    %v2398 = vpop.f32.mrb[0].mxu0
    %v2399 = vadd.f32 %v2308, %v2398
    %v2400 = vpop.f32.mrb[0].mxu0
    %v2401 = vadd.f32 %v2312, %v2400
    %v2402 = vpop.f32.mrb[0].mxu0
    %v2403 = vadd.f32 %v2308, %v2402
    %v2404 = vpop.f32.mrb[0].mxu0
    %v2405 = vadd.f32 %v2312, %v2404
    %2406 = vmatprep.mubr.bf16.mxu0 0
    %2407 = vmatmul.mubr.bf16.gmra.mrb[0].mxu0 %v2359
    %v2408 = vpop.f32.mrb[0].mxu0
    %v2409 = vadd.f32 %v2308, %v2408
    %v2410 = vpop.f32.mrb[0].mxu0
    %v2411 = vadd.f32 %v2312, %v2410
    %v2412 = vpop.f32.mrb[0].mxu0
    %v2413 = vadd.f32 %v2308, %v2412
    %v2414 = vpop.f32.mrb[0].mxu0
    %v2415 = vadd.f32 %v2312, %v2414
    %2416 = vmatprep.mubr.bf16.mxu0 0
    %2417 = vmatmul.mubr.bf16.gmra.mrb[0].mxu0 %v2362
    %v2418 = vpop.f32.mrb[0].mxu0
    %v2419 = vadd.f32 %v2308, %v2418
    %v2420 = vpop.f32.mrb[0].mxu0
    %v2421 = vadd.f32 %v2312, %v2420
    %v2422 = vpop.f32.mrb[0].mxu0
    %v2423 = vadd.f32 %v2308, %v2422
    %v2424 = vpop.f32.mrb[0].mxu0
    %v2425 = vadd.f32 %v2312, %v2424
    %2426 = vdwg.mxu0
    %v2427 = vmul.f32 %v2399, 1.702
    %v2428 = vmul.f32 %v2401, 1.702
    %v2429 = vmul.f32 %v2403, 1.702
    %v2430 = vmul.f32 %v2405, 1.702
    %v2431 = vmul.f32 %v2409, 1.702
    %v2432 = vmul.f32 %v2411, 1.702
    %v2433 = vmul.f32 %v2413, 1.702
    %v2434 = vmul.f32 %v2415, 1.702
    %v2435 = vmul.f32 %v2419, 1.702
    %v2436 = vmul.f32 %v2421, 1.702
    %v2437 = vmul.f32 %v2423, 1.702
    %v2438 = vmul.f32 %v2425, 1.702
    %v2439 = vxor.u32 %v2427, 2147483648
    %v2440 = vxor.u32 %v2428, 2147483648
    %v2441 = vxor.u32 %v2429, 2147483648
    %v2442 = vxor.u32 %v2430, 2147483648
    %v2443 = vxor.u32 %v2431, 2147483648
    %v2444 = vxor.u32 %v2432, 2147483648
    %v2445 = vxor.u32 %v2433, 2147483648
    %v2446 = vxor.u32 %v2434, 2147483648
    %v2447 = vxor.u32 %v2435, 2147483648
    %v2448 = vxor.u32 %v2436, 2147483648
    %v2449 = vxor.u32 %v2437, 2147483648
    %v2450 = vxor.u32 %v2438, 2147483648
    %v2451 = vmul.f32 %v2439, 1.442695
    %v2452 = vpow.pop %v2451
    %v2453 = vmul.f32 %v2440, 1.442695
    %v2454 = vpow.pop %v2453
    %v2455 = vmul.f32 %v2441, 1.442695
    %v2456 = vpow.pop %v2455
    %v2457 = vmul.f32 %v2442, 1.442695
    %v2458 = vpow.pop %v2457
    %v2459 = vmul.f32 %v2443, 1.442695
    %v2460 = vpow.pop %v2459
    %v2461 = vmul.f32 %v2444, 1.442695
    %v2462 = vpow.pop %v2461
    %v2463 = vmul.f32 %v2445, 1.442695
    %v2464 = vpow.pop %v2463
    %v2465 = vmul.f32 %v2446, 1.442695
    %v2466 = vpow.pop %v2465
    %v2467 = vmul.f32 %v2447, 1.442695
    %v2468 = vpow.pop %v2467
    %v2469 = vmul.f32 %v2448, 1.442695
    %v2470 = vpow.pop %v2469
    %v2471 = vmul.f32 %v2449, 1.442695
    %v2472 = vpow.pop %v2471
    %v2473 = vmul.f32 %v2450, 1.442695
    %v2474 = vpow.pop %v2473
    %v2475 = vadd.f32 %v2452, 1.0
    %v2476 = vadd.f32 %v2454, 1.0
    %v2477 = vadd.f32 %v2456, 1.0
    %v2478 = vadd.f32 %v2458, 1.0
    %v2479 = vadd.f32 %v2460, 1.0
    %v2480 = vadd.f32 %v2462, 1.0
    %v2481 = vadd.f32 %v2464, 1.0
    %v2482 = vadd.f32 %v2466, 1.0
    %v2483 = vadd.f32 %v2468, 1.0
    %v2484 = vadd.f32 %v2470, 1.0
    %v2485 = vadd.f32 %v2472, 1.0
    %v2486 = vadd.f32 %v2474, 1.0
    %v2487 = vrcp.pop %v2475
    %v2488 = vmul.f32 1.0, %v2487
    %v2489 = vrcp.pop %v2476
    %v2490 = vmul.f32 1.0, %v2489
    %v2491 = vrcp.pop %v2477
    %v2492 = vmul.f32 1.0, %v2491
    %v2493 = vrcp.pop %v2478
    %v2494 = vmul.f32 1.0, %v2493
    %v2495 = vrcp.pop %v2479
    %v2496 = vmul.f32 1.0, %v2495
    %v2497 = vrcp.pop %v2480
    %v2498 = vmul.f32 1.0, %v2497
    %v2499 = vrcp.pop %v2481
    %v2500 = vmul.f32 1.0, %v2499
    %v2501 = vrcp.pop %v2482
    %v2502 = vmul.f32 1.0, %v2501
    %v2503 = vrcp.pop %v2483
    %v2504 = vmul.f32 1.0, %v2503
    %v2505 = vrcp.pop %v2484
    %v2506 = vmul.f32 1.0, %v2505
    %v2507 = vrcp.pop %v2485
    %v2508 = vmul.f32 1.0, %v2507
    %v2509 = vrcp.pop %v2486
    %v2510 = vmul.f32 1.0, %v2509
    %v2511 = vmul.f32 %v2399, %v2488
    %v2512 = vmul.f32 %v2401, %v2490
    %v2513 = vmul.f32 %v2403, %v2492
    %v2514 = vmul.f32 %v2405, %v2494
    %v2515 = vmul.f32 %v2409, %v2496
    %v2516 = vmul.f32 %v2411, %v2498
    %v2517 = vmul.f32 %v2413, %v2500
    %v2518 = vmul.f32 %v2415, %v2502
    %v2519 = vmul.f32 %v2419, %v2504
    %v2520 = vmul.f32 %v2421, %v2506
    %v2521 = vmul.f32 %v2423, %v2508
    %v2522 = vmul.f32 %v2425, %v2510
    %v2523 = vpack.c.bf16 %v2513, %v2511
    %v2524 = vpack.c.bf16 %v2514, %v2512
    %v2525 = vpack.c.bf16 %v2517, %v2515
    %v2526 = vpack.c.bf16 %v2518, %v2516
    %v2527 = vpack.c.bf16 %v2521, %v2519
    %v2528 = vpack.c.bf16 %v2522, %v2520
    %v2529 = vld [vmem:[%s16] sm:$0xf]
    %v2530 = vld [vmem:[%s16 + $0x4] sm:$0xf]
    %v2531 = vld [vmem:[%s16 + $0x8] sm:$0xf]
    %v2532 = vld [vmem:[%s16 + $0xc] sm:$0xf]
    %v2533 = vld [vmem:[%s16 + $0x10] sm:$0xf]
    %v2534 = vld [vmem:[%s16 + $0x14] sm:$0xf]
    %v2535 = vld [vmem:[%s16 + $0x18] sm:$0xf]
    %v2536 = vld [vmem:[%s16 + $0x1c] sm:$0xf]
    %v2537 = vld [vmem:[%s16 + $0x20] sm:$0xf]
    %v2538 = vld [vmem:[%s16 + $0x24] sm:$0xf]
    %v2539 = vld [vmem:[%s16 + $0x28] sm:$0xf]
    %v2540 = vld [vmem:[%s16 + $0x2c] sm:$0xf]
    %v2541 = vld [vmem:[%s16 + $0x30] sm:$0xf]
    %v2542 = vld [vmem:[%s16 + $0x34] sm:$0xf]
    %v2543 = vld [vmem:[%s16 + $0x38] sm:$0xf]
    %v2544 = vld [vmem:[%s16 + $0x3c] sm:$0xf]
    %v2545 = vld [vmem:[%s16 + $0x40] sm:$0xf]
    %v2546 = vld [vmem:[%s16 + $0x44] sm:$0xf]
    %v2547 = vld [vmem:[%s16 + $0x48] sm:$0xf]
    %v2548 = vld [vmem:[%s16 + $0x4c] sm:$0xf]
    %v2549 = vld [vmem:[%s16 + $0x50] sm:$0xf]
    %v2550 = vld [vmem:[%s16 + $0x54] sm:$0xf]
    %v2551 = vld [vmem:[%s16 + $0x58] sm:$0xf]
    %v2552 = vld [vmem:[%s16 + $0x5c] sm:$0xf]
    %v2553 = vld [vmem:[%s16 + $0x60] sm:$0xf]
    %v2554 = vld [vmem:[%s16 + $0x64] sm:$0xf]
    %v2555 = vld [vmem:[%s16 + $0x68] sm:$0xf]
    %v2556 = vld [vmem:[%s16 + $0x6c] sm:$0xf]
    %v2557 = vld [vmem:[%s16 + $0x70] sm:$0xf]
    %v2558 = vld [vmem:[%s16 + $0x74] sm:$0xf]
    %v2559 = vld [vmem:[%s16 + $0x78] sm:$0xf]
    %v2560 = vld [vmem:[%s16 + $0x7c] sm:$0xf]
    %v2593 = vunpack.c.l.b16 %v2529
    %v2594 = vunpack.c.l.b16 %v2530
    %v2595 = vunpack.c.l.b16 %v2531
    %v2596 = vunpack.c.l.b16 %v2532
    %v2597 = vunpack.c.l.b16 %v2533
    %v2598 = vunpack.c.l.b16 %v2534
    %v2599 = vunpack.c.l.b16 %v2535
    %v2600 = vunpack.c.l.b16 %v2536
    %v2601 = vunpack.c.l.b16 %v2537
    %v2602 = vunpack.c.l.b16 %v2538
    %v2603 = vunpack.c.l.b16 %v2539
    %v2604 = vunpack.c.l.b16 %v2540
    %v2605 = vunpack.c.l.b16 %v2541
    %v2606 = vunpack.c.l.b16 %v2542
    %v2607 = vunpack.c.l.b16 %v2543
    %v2608 = vunpack.c.l.b16 %v2544
    %v2609 = vunpack.c.l.b16 %v2545
    %v2610 = vunpack.c.l.b16 %v2546
    %v2611 = vunpack.c.l.b16 %v2547
    %v2612 = vunpack.c.l.b16 %v2548
    %v2613 = vunpack.c.l.b16 %v2549
    %v2614 = vunpack.c.l.b16 %v2550
    %v2615 = vunpack.c.l.b16 %v2551
    %v2616 = vunpack.c.l.b16 %v2552
    %v2617 = vunpack.c.l.b16 %v2553
    %v2618 = vunpack.c.l.b16 %v2554
    %v2619 = vunpack.c.l.b16 %v2555
    %v2620 = vunpack.c.l.b16 %v2556
    %v2621 = vunpack.c.l.b16 %v2557
    %v2622 = vunpack.c.l.b16 %v2558
    %v2623 = vunpack.c.l.b16 %v2559
    %v2624 = vunpack.c.l.b16 %v2560
    %v2625 = vpack.c.b16 %v2594, %v2593
    %v2626 = vpack.c.b16 %v2596, %v2595
    %v2627 = vpack.c.b16 %v2598, %v2597
    %v2628 = vpack.c.b16 %v2600, %v2599
    %v2629 = vpack.c.b16 %v2602, %v2601
    %v2630 = vpack.c.b16 %v2604, %v2603
    %v2631 = vpack.c.b16 %v2606, %v2605
    %v2632 = vpack.c.b16 %v2608, %v2607
    %v2633 = vpack.c.b16 %v2610, %v2609
    %v2634 = vpack.c.b16 %v2612, %v2611
    %v2635 = vpack.c.b16 %v2614, %v2613
    %v2636 = vpack.c.b16 %v2616, %v2615
    %v2637 = vpack.c.b16 %v2618, %v2617
    %v2638 = vpack.c.b16 %v2620, %v2619
    %v2639 = vpack.c.b16 %v2622, %v2621
    %v2640 = vpack.c.b16 %v2624, %v2623
    %2657 = vmatprep.subr.bf16.mxu0 0
    %2658 = vmatpush1.bf16.msra.mxu0 %v2625
    %2659 = vmatprep.subr.bf16.mxu0 0
    %2660 = vmatpush1.bf16.msra.mxu0 %v2626
    %2661 = vmatprep.subr.bf16.mxu0 0
    %2662 = vmatpush1.bf16.msra.mxu0 %v2627
    %2663 = vmatprep.subr.bf16.mxu0 0
    %2664 = vmatpush1.bf16.msra.mxu0 %v2628
    %2665 = vmatprep.subr.bf16.mxu0 0
    %2666 = vmatpush1.bf16.msra.mxu0 %v2629
    %2667 = vmatprep.subr.bf16.mxu0 0
    %2668 = vmatpush1.bf16.msra.mxu0 %v2630
    %2669 = vmatprep.subr.bf16.mxu0 0
    %2670 = vmatpush1.bf16.msra.mxu0 %v2631
    %2671 = vmatprep.subr.bf16.mxu0 0
    %2672 = vmatpush1.bf16.msra.mxu0 %v2632
    %2673 = vmatprep.subr.bf16.mxu0 0
    %2674 = vmatpush1.bf16.msra.mxu0 %v2633
    %2675 = vmatprep.subr.bf16.mxu0 0
    %2676 = vmatpush1.bf16.msra.mxu0 %v2634
    %2677 = vmatprep.subr.bf16.mxu0 0
    %2678 = vmatpush1.bf16.msra.mxu0 %v2635
    %2679 = vmatprep.subr.bf16.mxu0 0
    %2680 = vmatpush1.bf16.msra.mxu0 %v2636
    %2681 = vmatprep.subr.bf16.mxu0 0
    %2682 = vmatpush1.bf16.msra.mxu0 %v2637
    %2683 = vmatprep.subr.bf16.mxu0 0
    %2684 = vmatpush1.bf16.msra.mxu0 %v2638
    %2685 = vmatprep.subr.bf16.mxu0 0
    %2686 = vmatpush1.bf16.msra.mxu0 %v2639
    %2687 = vmatprep.subr.bf16.mxu0 0
    %2688 = vmatpush1.bf16.msra.mxu0 %v2640
    %2689 = vmatprep.mubr.bf16.mxu0 %v2524
    %2690 = vmatmul.mubr.bf16.gmra.mrb[0].mxu0 %v2523
    %v2691 = vpop.f32.mrb[0].mxu0
    %v2692 = vadd.f32 0.0, %v2691
    %v2693 = vpop.f32.mrb[0].mxu0
    %v2694 = vpop.f32.mrb[0].mxu0
    %v2695 = vadd.f32 0.0, %v2694
    %v2696 = vpop.f32.mrb[0].mxu0
    %2697 = vmatprep.mubr.bf16.mxu0 %v2526
    %2698 = vmatmul.mubr.bf16.gmra.mrb[0].mxu0 %v2525
    %v2699 = vpop.f32.mrb[0].mxu0
    %v2700 = vadd.f32 0.0, %v2699
    %v2701 = vpop.f32.mrb[0].mxu0
    %v2702 = vpop.f32.mrb[0].mxu0
    %v2703 = vadd.f32 0.0, %v2702
    %v2704 = vpop.f32.mrb[0].mxu0
    %2705 = vmatprep.mubr.bf16.mxu0 %v2528
    %2706 = vmatmul.mubr.bf16.gmra.mrb[0].mxu0 %v2527
    %v2707 = vpop.f32.mrb[0].mxu0
    %v2708 = vadd.f32 0.0, %v2707
    %v2709 = vpop.f32.mrb[0].mxu0
    %v2710 = vpop.f32.mrb[0].mxu0
    %v2711 = vadd.f32 0.0, %v2710
    %v2712 = vpop.f32.mrb[0].mxu0
    %2713 = vdwg.mxu0
    %v2714 = vadd.f32 %v2182, %v2692
    %v2715 = vadd.f32 %v2183, %v2695
    %v2716 = vadd.f32 %v2184, %v2700
    %v2717 = vadd.f32 %v2185, %v2703
    %v2718 = vadd.f32 %v2186, %v2708
    %v2719 = vadd.f32 %v2187, %v2711
    %v2720 = vld [vmem:[%s17] sm:$0x1]
    %v2722 = vlaneseq
    %v2723 = vshrl.u32 %v2722, 7
    %v2724 = vsub.s32 0, %v2723
    %v2725 = vrot.slane %v2720, %v2724
    %v2727 = vadd.f32 %v2714, %v2725
    %v2728 = vadd.f32 %v2715, %v2725
    %v2729 = vadd.f32 %v2716, %v2725
    %v2730 = vadd.f32 %v2717, %v2725
    %v2731 = vadd.f32 %v2718, %v2725
    %v2732 = vadd.f32 %v2719, %v2725
    %s2733 = scalar_lea.vmem %s6, 1
    %v2734 = vld [vmem:[%s2733] sm:$0x1]
    %s2735 = scalar_lea.vmem %s7, 1
    %v2736 = vld [vmem:[%s2735] sm:$0x1]
    %v2737 = vsel %vm201, %v2727, 0.0
    %2738 = vadd.xlane.f32.xlu0 %v2737
    %v2739 = vpop.xlane.xlu0 %2738
    %v2740 = vsel %vm201, %v2728, 0.0
    %2741 = vadd.xlane.f32.xlu0 %v2740
    %v2742 = vpop.xlane.xlu0 %2741
    %v2743 = vsel %vm201, %v2729, 0.0
    %2744 = vadd.xlane.f32.xlu0 %v2743
    %v2745 = vpop.xlane.xlu0 %2744
    %v2746 = vsel %vm201, %v2730, 0.0
    %2747 = vadd.xlane.f32.xlu0 %v2746
    %v2748 = vpop.xlane.xlu0 %2747
    %v2749 = vsel %vm201, %v2731, 0.0
    %2750 = vadd.xlane.f32.xlu0 %v2749
    %v2751 = vpop.xlane.xlu0 %2750
    %v2752 = vsel %vm201, %v2732, 0.0
    %2753 = vadd.xlane.f32.xlu0 %v2752
    %v2754 = vpop.xlane.xlu0 %2753
    %v2755 = vmul.f32 %v2739, %v297
    %v2756 = vmul.f32 %v2742, %v297
    %v2757 = vmul.f32 %v2745, %v297
    %v2758 = vmul.f32 %v2748, %v297
    %v2759 = vmul.f32 %v2751, %v297
    %v2760 = vmul.f32 %v2754, %v297
    %v2761 = vsub.f32 %v2727, %v2755
    %v2762 = vsub.f32 %v2728, %v2756
    %v2763 = vsub.f32 %v2729, %v2757
    %v2764 = vsub.f32 %v2730, %v2758
    %v2765 = vsub.f32 %v2731, %v2759
    %v2766 = vsub.f32 %v2732, %v2760
    %v2767 = vmul.f32 %v2761, %v2761
    %v2768 = vmul.f32 %v2762, %v2762
    %v2769 = vmul.f32 %v2763, %v2763
    %v2770 = vmul.f32 %v2764, %v2764
    %v2771 = vmul.f32 %v2765, %v2765
    %v2772 = vmul.f32 %v2766, %v2766
    %v2773 = vsel %vm201, %v2767, 0.0
    %2774 = vadd.xlane.f32.xlu0 %v2773
    %v2775 = vpop.xlane.xlu0 %2774
    %v2776 = vsel %vm201, %v2768, 0.0
    %2777 = vadd.xlane.f32.xlu0 %v2776
    %v2778 = vpop.xlane.xlu0 %2777
    %v2779 = vsel %vm201, %v2769, 0.0
    %2780 = vadd.xlane.f32.xlu0 %v2779
    %v2781 = vpop.xlane.xlu0 %2780
    %v2782 = vsel %vm201, %v2770, 0.0
    %2783 = vadd.xlane.f32.xlu0 %v2782
    %v2784 = vpop.xlane.xlu0 %2783
    %v2785 = vsel %vm201, %v2771, 0.0
    %2786 = vadd.xlane.f32.xlu0 %v2785
    %v2787 = vpop.xlane.xlu0 %2786
    %v2788 = vsel %vm201, %v2772, 0.0
    %2789 = vadd.xlane.f32.xlu0 %v2788
    %v2790 = vpop.xlane.xlu0 %2789
    %v2791 = vmul.f32 %v2775, %v297
    %v2792 = vmul.f32 %v2778, %v297
    %v2793 = vmul.f32 %v2781, %v297
    %v2794 = vmul.f32 %v2784, %v297
    %v2795 = vmul.f32 %v2787, %v297
    %v2796 = vmul.f32 %v2790, %v297
    %v2797 = vadd.f32 %v2791, 1e-05
    %v2798 = vadd.f32 %v2792, 1e-05
    %v2799 = vadd.f32 %v2793, 1e-05
    %v2800 = vadd.f32 %v2794, 1e-05
    %v2801 = vadd.f32 %v2795, 1e-05
    %v2802 = vadd.f32 %v2796, 1e-05
    %v2803 = vrsqrt.pop %v2797
    %v2804 = vrsqrt.pop %v2798
    %v2805 = vrsqrt.pop %v2799
    %v2806 = vrsqrt.pop %v2800
    %v2807 = vrsqrt.pop %v2801
    %v2808 = vrsqrt.pop %v2802
    %v2809 = vmul.f32 %v2761, %v2803
    %v2810 = vmul.f32 %v2762, %v2804
    %v2811 = vmul.f32 %v2763, %v2805
    %v2812 = vmul.f32 %v2764, %v2806
    %v2813 = vmul.f32 %v2765, %v2807
    %v2814 = vmul.f32 %v2766, %v2808
    %v2816 = vlaneseq
    %v2817 = vshrl.u32 %v2816, 7
    %v2818 = vsub.s32 0, %v2817
    %v2819 = vrot.slane %v2734, %v2818
    %v2821 = vmul.f32 %v2809, %v2819
    %v2822 = vmul.f32 %v2810, %v2819
    %v2823 = vmul.f32 %v2811, %v2819
    %v2824 = vmul.f32 %v2812, %v2819
    %v2825 = vmul.f32 %v2813, %v2819
    %v2826 = vmul.f32 %v2814, %v2819
    %v2828 = vlaneseq
    %v2829 = vshrl.u32 %v2828, 7
    %v2830 = vsub.s32 0, %v2829
    %v2831 = vrot.slane %v2736, %v2830
    %v2833 = vadd.f32 %v2821, %v2831
    %v2834 = vadd.f32 %v2822, %v2831
    %v2835 = vadd.f32 %v2823, %v2831
    %v2836 = vadd.f32 %v2824, %v2831
    %v2837 = vadd.f32 %v2825, %v2831
    %v2838 = vadd.f32 %v2826, %v2831
    %v2839 = vpack.c.bf16 %v2834, %v2833
    %v2840 = vpack.c.bf16 %v2836, %v2835
    %v2841 = vpack.c.bf16 %v2838, %v2837
    %s2842 = scalar_lea.vmem %s8, 64
    %v2843 = vld [vmem:[%s2842] sm:$0xff]
    %v2844 = vld [vmem:[%s2842 + $0x8] sm:$0xff]
    %v2845 = vld [vmem:[%s2842 + $0x10] sm:$0xff]
    %v2846 = vld [vmem:[%s2842 + $0x18] sm:$0xff]
    %v2847 = vld [vmem:[%s2842 + $0x20] sm:$0xff]
    %v2848 = vld [vmem:[%s2842 + $0x28] sm:$0xff]
    %v2849 = vld [vmem:[%s2842 + $0x30] sm:$0xff]
    %v2850 = vld [vmem:[%s2842 + $0x38] sm:$0xff]
    %s2851 = scalar_lea.vmem %s9, 2
    %v2852 = vld [vmem:[%s2851] sm:$0x3]
    %v2854 = vlaneseq
    %v2855 = vshrl.u32 %v2854, 7
    %v2856 = vsub.s32 0, %v2855
    %v2857 = vrot.slane %v2852, %v2856
    %v2858 = vlaneseq
    %v2859 = vshrl.u32 %v2858, 7
    %v2860 = vsub.s32 1, %v2859
    %v2861 = vrot.slane %v2852, %v2860
    %v2872 = vunpack.c.l.b16 %v2843
    %v2873 = vunpack.c.h.b16 %v2843
    %v2874 = vunpack.c.l.b16 %v2844
    %v2875 = vunpack.c.h.b16 %v2844
    %v2876 = vunpack.c.l.b16 %v2845
    %v2877 = vunpack.c.h.b16 %v2845
    %v2878 = vunpack.c.l.b16 %v2846
    %v2879 = vunpack.c.h.b16 %v2846
    %v2880 = vunpack.c.l.b16 %v2847
    %v2881 = vunpack.c.h.b16 %v2847
    %v2882 = vunpack.c.l.b16 %v2848
    %v2883 = vunpack.c.h.b16 %v2848
    %v2884 = vunpack.c.l.b16 %v2849
    %v2885 = vunpack.c.h.b16 %v2849
    %v2886 = vunpack.c.l.b16 %v2850
    %v2887 = vunpack.c.h.b16 %v2850
    %v2888 = vpack.c.b16 %v2874, %v2872
    %v2889 = vpack.c.b16 %v2875, %v2873
    %v2890 = vpack.c.b16 %v2878, %v2876
    %v2891 = vpack.c.b16 %v2879, %v2877
    %v2892 = vpack.c.b16 %v2882, %v2880
    %v2893 = vpack.c.b16 %v2883, %v2881
    %v2894 = vpack.c.b16 %v2886, %v2884
    %v2895 = vpack.c.b16 %v2887, %v2885
    %v2905 = vsel %vm201, %v2839, 0
    %v2908 = vsel %vm201, %v2840, 0
    %v2911 = vsel %vm201, %v2841, 0
    %2913 = vmatprep.subr.bf16.mxu0 %v2889
    %2914 = vmatpush1.bf16.msra.mxu0 %v2888
    %2915 = vmatprep.subr.bf16.mxu0 %v2891
    %2916 = vmatpush1.bf16.msra.mxu0 %v2890
    %2917 = vmatprep.subr.bf16.mxu0 %v2893
    %2918 = vmatpush1.bf16.msra.mxu0 %v2892
    %2919 = vmatprep.subr.bf16.mxu0 %v2895
    %2920 = vmatpush1.bf16.msra.mxu0 %v2894
    %2921 = vmatprep.subr.bf16.mxu0 0
    %2922 = vmatpush1.bf16.msra.mxu0 0
    %2923 = vmatprep.subr.bf16.mxu0 0
    %2924 = vmatpush1.bf16.msra.mxu0 0
    %2925 = vmatprep.subr.bf16.mxu0 0
    %2926 = vmatpush1.bf16.msra.mxu0 0
    %2927 = vmatprep.subr.bf16.mxu0 0
    %2928 = vmatpush1.bf16.msra.mxu0 0
    %2929 = vmatprep.subr.bf16.mxu0 0
    %2930 = vmatpush1.bf16.msra.mxu0 0
    %2931 = vmatprep.subr.bf16.mxu0 0
    %2932 = vmatpush1.bf16.msra.mxu0 0
    %2933 = vmatprep.subr.bf16.mxu0 0
    %2934 = vmatpush1.bf16.msra.mxu0 0
    %2935 = vmatprep.subr.bf16.mxu0 0
    %2936 = vmatpush1.bf16.msra.mxu0 0
    %2937 = vmatprep.subr.bf16.mxu0 0
    %2938 = vmatpush1.bf16.msra.mxu0 0
    %2939 = vmatprep.subr.bf16.mxu0 0
    %2940 = vmatpush1.bf16.msra.mxu0 0
    %2941 = vmatprep.subr.bf16.mxu0 0
    %2942 = vmatpush1.bf16.msra.mxu0 0
    %2943 = vmatprep.subr.bf16.mxu0 0
    %2944 = vmatpush1.bf16.msra.mxu0 0
    %2945 = vmatprep.mubr.bf16.mxu0 0
    %2946 = vmatmul.mubr.bf16.gmra.mrb[0].mxu0 %v2905
    %v2947 = vpop.f32.mrb[0].mxu0
    %v2948 = vadd.f32 %v2857, %v2947
    %v2949 = vpop.f32.mrb[0].mxu0
    %v2950 = vadd.f32 %v2861, %v2949
    %v2951 = vpop.f32.mrb[0].mxu0
    %v2952 = vadd.f32 %v2857, %v2951
    %v2953 = vpop.f32.mrb[0].mxu0
    %v2954 = vadd.f32 %v2861, %v2953
    %2955 = vmatprep.mubr.bf16.mxu0 0
    %2956 = vmatmul.mubr.bf16.gmra.mrb[0].mxu0 %v2908
    %v2957 = vpop.f32.mrb[0].mxu0
    %v2958 = vadd.f32 %v2857, %v2957
    %v2959 = vpop.f32.mrb[0].mxu0
    %v2960 = vadd.f32 %v2861, %v2959
    %v2961 = vpop.f32.mrb[0].mxu0
    %v2962 = vadd.f32 %v2857, %v2961
    %v2963 = vpop.f32.mrb[0].mxu0
    %v2964 = vadd.f32 %v2861, %v2963
    %2965 = vmatprep.mubr.bf16.mxu0 0
    %2966 = vmatmul.mubr.bf16.gmra.mrb[0].mxu0 %v2911
    %v2967 = vpop.f32.mrb[0].mxu0
    %v2968 = vadd.f32 %v2857, %v2967
    %v2969 = vpop.f32.mrb[0].mxu0
    %v2970 = vadd.f32 %v2861, %v2969
    %v2971 = vpop.f32.mrb[0].mxu0
    %v2972 = vadd.f32 %v2857, %v2971
    %v2973 = vpop.f32.mrb[0].mxu0
    %v2974 = vadd.f32 %v2861, %v2973
    %2975 = vdwg.mxu0
    %2982 = vrot.lane.b32.xlu0 %v2948, 112
    %v2983 = vpop.permute.xlu0 %2982
    %2984 = vrot.lane.b32.xlu0 %v2952, 112
    %v2985 = vpop.permute.xlu0 %2984
    %2986 = vrot.lane.b32.xlu0 %v2958, 112
    %v2987 = vpop.permute.xlu0 %2986
    %2988 = vrot.lane.b32.xlu0 %v2962, 112
    %v2989 = vpop.permute.xlu0 %2988
    %2990 = vrot.lane.b32.xlu0 %v2968, 112
    %v2991 = vpop.permute.xlu0 %2990
    %2992 = vrot.lane.b32.xlu0 %v2972, 112
    %v2993 = vpop.permute.xlu0 %2992
    %3000 = vrot.lane.b32.xlu0 %v2948, 96
    %v3001 = vpop.permute.xlu0 %3000
    %3002 = vrot.lane.b32.xlu0 %v2952, 96
    %v3003 = vpop.permute.xlu0 %3002
    %3004 = vrot.lane.b32.xlu0 %v2958, 96
    %v3005 = vpop.permute.xlu0 %3004
    %3006 = vrot.lane.b32.xlu0 %v2962, 96
    %v3007 = vpop.permute.xlu0 %3006
    %3008 = vrot.lane.b32.xlu0 %v2968, 96
    %v3009 = vpop.permute.xlu0 %3008
    %3010 = vrot.lane.b32.xlu0 %v2972, 96
    %v3011 = vpop.permute.xlu0 %3010
    %3018 = vrot.lane.b32.xlu0 %v2948, 80
    %v3019 = vpop.permute.xlu0 %3018
    %3020 = vrot.lane.b32.xlu0 %v2952, 80
    %v3021 = vpop.permute.xlu0 %3020
    %3022 = vrot.lane.b32.xlu0 %v2958, 80
    %v3023 = vpop.permute.xlu0 %3022
    %3024 = vrot.lane.b32.xlu0 %v2962, 80
    %v3025 = vpop.permute.xlu0 %3024
    %3026 = vrot.lane.b32.xlu0 %v2968, 80
    %v3027 = vpop.permute.xlu0 %3026
    %3028 = vrot.lane.b32.xlu0 %v2972, 80
    %v3029 = vpop.permute.xlu0 %3028
    %v3036 = vmul.f32 %v2948, 0.25
    %v3037 = vmul.f32 %v2952, 0.25
    %v3038 = vmul.f32 %v2958, 0.25
    %v3039 = vmul.f32 %v2962, 0.25
    %v3040 = vmul.f32 %v2968, 0.25
    %v3041 = vmul.f32 %v2972, 0.25
    %v3042 = vmul.f32 %v2983, 0.25
    %v3043 = vmul.f32 %v2985, 0.25
    %v3044 = vmul.f32 %v2987, 0.25
    %v3045 = vmul.f32 %v2989, 0.25
    %v3046 = vmul.f32 %v2991, 0.25
    %v3047 = vmul.f32 %v2993, 0.25
    %v3048 = vmul.f32 %v3001, 0.25
    %v3049 = vmul.f32 %v3003, 0.25
    %v3050 = vmul.f32 %v3005, 0.25
    %v3051 = vmul.f32 %v3007, 0.25
    %v3052 = vmul.f32 %v3009, 0.25
    %v3053 = vmul.f32 %v3011, 0.25
    %v3054 = vmul.f32 %v3019, 0.25
    %v3055 = vmul.f32 %v3021, 0.25
    %v3056 = vmul.f32 %v3023, 0.25
    %v3057 = vmul.f32 %v3025, 0.25
    %v3058 = vmul.f32 %v3027, 0.25
    %v3059 = vmul.f32 %v3029, 0.25
    %3066 = vrot.lane.b32.xlu0 %v2950, 112
    %v3067 = vpop.permute.xlu0 %3066
    %3068 = vrot.lane.b32.xlu0 %v2954, 112
    %v3069 = vpop.permute.xlu0 %3068
    %3070 = vrot.lane.b32.xlu0 %v2960, 112
    %v3071 = vpop.permute.xlu0 %3070
    %3072 = vrot.lane.b32.xlu0 %v2964, 112
    %v3073 = vpop.permute.xlu0 %3072
    %3074 = vrot.lane.b32.xlu0 %v2970, 112
    %v3075 = vpop.permute.xlu0 %3074
    %3076 = vrot.lane.b32.xlu0 %v2974, 112
    %v3077 = vpop.permute.xlu0 %3076
    %3084 = vrot.lane.b32.xlu0 %v2950, 96
    %v3085 = vpop.permute.xlu0 %3084
    %3086 = vrot.lane.b32.xlu0 %v2954, 96
    %v3087 = vpop.permute.xlu0 %3086
    %3088 = vrot.lane.b32.xlu0 %v2960, 96
    %v3089 = vpop.permute.xlu0 %3088
    %3090 = vrot.lane.b32.xlu0 %v2964, 96
    %v3091 = vpop.permute.xlu0 %3090
    %3092 = vrot.lane.b32.xlu0 %v2970, 96
    %v3093 = vpop.permute.xlu0 %3092
    %3094 = vrot.lane.b32.xlu0 %v2974, 96
    %v3095 = vpop.permute.xlu0 %3094
    %3102 = vrot.lane.b32.xlu0 %v2950, 80
    %v3103 = vpop.permute.xlu0 %3102
    %3104 = vrot.lane.b32.xlu0 %v2954, 80
    %v3105 = vpop.permute.xlu0 %3104
    %3106 = vrot.lane.b32.xlu0 %v2960, 80
    %v3107 = vpop.permute.xlu0 %3106
    %3108 = vrot.lane.b32.xlu0 %v2964, 80
    %v3109 = vpop.permute.xlu0 %3108
    %3110 = vrot.lane.b32.xlu0 %v2970, 80
    %v3111 = vpop.permute.xlu0 %3110
    %3112 = vrot.lane.b32.xlu0 %v2974, 80
    %v3113 = vpop.permute.xlu0 %3112
    %v3120 = vpack.c.bf16 %v3037, %v3036
    %v3121 = vpack.c.bf16 %v3038, %v3038
    %v3122 = vpack.c.bf16 %v3040, %v3039
    %v3123 = vpack.c.bf16 %v3041, %v3041
    %v3124 = vpack.c.bf16 %v3043, %v3042
    %v3125 = vpack.c.bf16 %v3044, %v3044
    %v3126 = vpack.c.bf16 %v3046, %v3045
    %v3127 = vpack.c.bf16 %v3047, %v3047
    %v3128 = vpack.c.bf16 %v3049, %v3048
    %v3129 = vpack.c.bf16 %v3050, %v3050
    %v3130 = vpack.c.bf16 %v3052, %v3051
    %v3131 = vpack.c.bf16 %v3053, %v3053
    %v3132 = vpack.c.bf16 %v3055, %v3054
    %v3133 = vpack.c.bf16 %v3056, %v3056
    %v3134 = vpack.c.bf16 %v3058, %v3057
    %v3135 = vpack.c.bf16 %v3059, %v3059
    %v3136 = vpack.c.bf16 %v2952, %v2948
    %v3137 = vpack.c.bf16 %v2958, %v2958
    %v3138 = vpack.c.bf16 %v2968, %v2962
    %v3139 = vpack.c.bf16 %v2972, %v2972
    %v3140 = vpack.c.bf16 %v2985, %v2983
    %v3141 = vpack.c.bf16 %v2987, %v2987
    %v3142 = vpack.c.bf16 %v2991, %v2989
    %v3143 = vpack.c.bf16 %v2993, %v2993
    %v3144 = vpack.c.bf16 %v3003, %v3001
    %v3145 = vpack.c.bf16 %v3005, %v3005
    %v3146 = vpack.c.bf16 %v3009, %v3007
    %v3147 = vpack.c.bf16 %v3011, %v3011
    %v3148 = vpack.c.bf16 %v3021, %v3019
    %v3149 = vpack.c.bf16 %v3023, %v3023
    %v3150 = vpack.c.bf16 %v3027, %v3025
    %v3151 = vpack.c.bf16 %v3029, %v3029
    %3154 = vrot.lane.b32.xlu0 %v3136, 64
    %v3155 = vpop.permute.xlu0 %3154
    %3156 = vrot.lane.b32.xlu0 %v3137, 64
    %v3157 = vpop.permute.xlu0 %3156
    %v3159 = vsel %vm699, %v3120, 0
    %v3162 = vsel %vm699, %v3121, 0
    %v3165 = vsel %vm699, %v3155, 0
    %v3168 = vsel %vm699, %v3157, 0
    %3170 = vmatprep.subr.bf16.mxu0 0
    %3171 = vmatpush1.bf16.xpose.msra.mxu0 %v3165
    %3172 = vmatprep.subr.bf16.mxu0 0
    %3173 = vmatpush1.bf16.xpose.msra.mxu0 %v3168
    %3174 = vmatprep.subr.bf16.mxu0 0
    %3175 = vmatpush1.bf16.xpose.msra.mxu0 0
    %3176 = vmatprep.subr.bf16.mxu0 0
    %3177 = vmatpush1.bf16.xpose.msra.mxu0 0
    %3178 = vmatprep.subr.bf16.mxu0 0
    %3179 = vmatpush1.bf16.xpose.msra.mxu0 0
    %3180 = vmatprep.subr.bf16.mxu0 0
    %3181 = vmatpush1.bf16.xpose.msra.mxu0 0
    %3182 = vmatprep.subr.bf16.mxu0 0
    %3183 = vmatpush1.bf16.xpose.msra.mxu0 0
    %3184 = vmatprep.subr.bf16.mxu0 0
    %3185 = vmatpush1.bf16.xpose.msra.mxu0 0
    %3186 = vmatprep.subr.bf16.mxu0 0
    %3187 = vmatpush1.bf16.xpose.msra.mxu0 0
    %3188 = vmatprep.subr.bf16.mxu0 0
    %3189 = vmatpush1.bf16.xpose.msra.mxu0 0
    %3190 = vmatprep.subr.bf16.mxu0 0
    %3191 = vmatpush1.bf16.xpose.msra.mxu0 0
    %3192 = vmatprep.subr.bf16.mxu0 0
    %3193 = vmatpush1.bf16.xpose.msra.mxu0 0
    %3194 = vmatprep.subr.bf16.mxu0 0
    %3195 = vmatpush1.bf16.xpose.msra.mxu0 0
    %3196 = vmatprep.subr.bf16.mxu0 0
    %3197 = vmatpush1.bf16.xpose.msra.mxu0 0
    %3198 = vmatprep.subr.bf16.mxu0 0
    %3199 = vmatpush1.bf16.xpose.msra.mxu0 0
    %3200 = vmatprep.subr.bf16.mxu0 0
    %3201 = vmatpush1.bf16.xpose.msra.mxu0 0
    %3202 = vmatprep.mubr.bf16.mxu0 0
    %3203 = vmatmul.mubr.bf16.gmra.mrb[0].mxu0 %v3159
    %v3204 = vpop.f32.mrb[0].mxu0
    %v3205 = vadd.f32 %v84, %v3204
    %v3206 = vpop.f32.mrb[0].mxu0
    %v3207 = vpop.f32.mrb[0].mxu0
    %v3208 = vadd.f32 %v85, %v3207
    %v3209 = vpop.f32.mrb[0].mxu0
    %3210 = vmatprep.mubr.bf16.mxu0 0
    %3211 = vmatmul.mubr.bf16.gmra.mrb[0].mxu0 %v3162
    %v3212 = vpop.f32.mrb[0].mxu0
    %v3213 = vadd.f32 %v86, %v3212
    %v3214 = vpop.f32.mrb[0].mxu0
    %v3215 = vpop.f32.mrb[0].mxu0
    %v3216 = vpop.f32.mrb[0].mxu0
    %3217 = vdwg.mxu0
    %3220 = vrot.lane.b32.xlu0 %v3138, 64
    %v3221 = vpop.permute.xlu0 %3220
    %3222 = vrot.lane.b32.xlu0 %v3139, 64
    %v3223 = vpop.permute.xlu0 %3222
    %v3225 = vsel %vm699, %v3122, 0
    %v3228 = vsel %vm699, %v3123, 0
    %v3231 = vsel %vm699, %v3221, 0
    %v3234 = vsel %vm699, %v3223, 0
    %3236 = vmatprep.subr.bf16.mxu0 0
    %3237 = vmatpush1.bf16.xpose.msra.mxu0 %v3231
    %3238 = vmatprep.subr.bf16.mxu0 0
    %3239 = vmatpush1.bf16.xpose.msra.mxu0 %v3234
    %3240 = vmatprep.subr.bf16.mxu0 0
    %3241 = vmatpush1.bf16.xpose.msra.mxu0 0
    %3242 = vmatprep.subr.bf16.mxu0 0
    %3243 = vmatpush1.bf16.xpose.msra.mxu0 0
    %3244 = vmatprep.subr.bf16.mxu0 0
    %3245 = vmatpush1.bf16.xpose.msra.mxu0 0
    %3246 = vmatprep.subr.bf16.mxu0 0
    %3247 = vmatpush1.bf16.xpose.msra.mxu0 0
    %3248 = vmatprep.subr.bf16.mxu0 0
    %3249 = vmatpush1.bf16.xpose.msra.mxu0 0
    %3250 = vmatprep.subr.bf16.mxu0 0
    %3251 = vmatpush1.bf16.xpose.msra.mxu0 0
    %3252 = vmatprep.subr.bf16.mxu0 0
    %3253 = vmatpush1.bf16.xpose.msra.mxu0 0
    %3254 = vmatprep.subr.bf16.mxu0 0
    %3255 = vmatpush1.bf16.xpose.msra.mxu0 0
    %3256 = vmatprep.subr.bf16.mxu0 0
    %3257 = vmatpush1.bf16.xpose.msra.mxu0 0
    %3258 = vmatprep.subr.bf16.mxu0 0
    %3259 = vmatpush1.bf16.xpose.msra.mxu0 0
    %3260 = vmatprep.subr.bf16.mxu0 0
    %3261 = vmatpush1.bf16.xpose.msra.mxu0 0
    %3262 = vmatprep.subr.bf16.mxu0 0
    %3263 = vmatpush1.bf16.xpose.msra.mxu0 0
    %3264 = vmatprep.subr.bf16.mxu0 0
    %3265 = vmatpush1.bf16.xpose.msra.mxu0 0
    %3266 = vmatprep.subr.bf16.mxu0 0
    %3267 = vmatpush1.bf16.xpose.msra.mxu0 0
    %3268 = vmatprep.mubr.bf16.mxu0 0
    %3269 = vmatmul.mubr.bf16.gmra.mrb[0].mxu0 %v3225
    %v3270 = vpop.f32.mrb[0].mxu0
    %v3271 = vadd.f32 %v84, %v3270
    %v3272 = vpop.f32.mrb[0].mxu0
    %v3273 = vpop.f32.mrb[0].mxu0
    %v3274 = vadd.f32 %v85, %v3273
    %v3275 = vpop.f32.mrb[0].mxu0
    %3276 = vmatprep.mubr.bf16.mxu0 0
    %3277 = vmatmul.mubr.bf16.gmra.mrb[0].mxu0 %v3228
    %v3278 = vpop.f32.mrb[0].mxu0
    %v3279 = vadd.f32 %v86, %v3278
    %v3280 = vpop.f32.mrb[0].mxu0
    %v3281 = vpop.f32.mrb[0].mxu0
    %v3282 = vpop.f32.mrb[0].mxu0
    %3283 = vdwg.mxu0
    %3286 = vrot.lane.b32.xlu0 %v3140, 64
    %v3287 = vpop.permute.xlu0 %3286
    %3288 = vrot.lane.b32.xlu0 %v3141, 64
    %v3289 = vpop.permute.xlu0 %3288
    %v3291 = vsel %vm699, %v3124, 0
    %v3294 = vsel %vm699, %v3125, 0
    %v3297 = vsel %vm699, %v3287, 0
    %v3300 = vsel %vm699, %v3289, 0
    %3302 = vmatprep.subr.bf16.mxu0 0
    %3303 = vmatpush1.bf16.xpose.msra.mxu0 %v3297
    %3304 = vmatprep.subr.bf16.mxu0 0
    %3305 = vmatpush1.bf16.xpose.msra.mxu0 %v3300
    %3306 = vmatprep.subr.bf16.mxu0 0
    %3307 = vmatpush1.bf16.xpose.msra.mxu0 0
    %3308 = vmatprep.subr.bf16.mxu0 0
    %3309 = vmatpush1.bf16.xpose.msra.mxu0 0
    %3310 = vmatprep.subr.bf16.mxu0 0
    %3311 = vmatpush1.bf16.xpose.msra.mxu0 0
    %3312 = vmatprep.subr.bf16.mxu0 0
    %3313 = vmatpush1.bf16.xpose.msra.mxu0 0
    %3314 = vmatprep.subr.bf16.mxu0 0
    %3315 = vmatpush1.bf16.xpose.msra.mxu0 0
    %3316 = vmatprep.subr.bf16.mxu0 0
    %3317 = vmatpush1.bf16.xpose.msra.mxu0 0
    %3318 = vmatprep.subr.bf16.mxu0 0
    %3319 = vmatpush1.bf16.xpose.msra.mxu0 0
    %3320 = vmatprep.subr.bf16.mxu0 0
    %3321 = vmatpush1.bf16.xpose.msra.mxu0 0
    %3322 = vmatprep.subr.bf16.mxu0 0
    %3323 = vmatpush1.bf16.xpose.msra.mxu0 0
    %3324 = vmatprep.subr.bf16.mxu0 0
    %3325 = vmatpush1.bf16.xpose.msra.mxu0 0
    %3326 = vmatprep.subr.bf16.mxu0 0
    %3327 = vmatpush1.bf16.xpose.msra.mxu0 0
    %3328 = vmatprep.subr.bf16.mxu0 0
    %3329 = vmatpush1.bf16.xpose.msra.mxu0 0
    %3330 = vmatprep.subr.bf16.mxu0 0
    %3331 = vmatpush1.bf16.xpose.msra.mxu0 0
    %3332 = vmatprep.subr.bf16.mxu0 0
    %3333 = vmatpush1.bf16.xpose.msra.mxu0 0
    %3334 = vmatprep.mubr.bf16.mxu0 0
    %3335 = vmatmul.mubr.bf16.gmra.mrb[0].mxu0 %v3291
    %v3336 = vpop.f32.mrb[0].mxu0
    %v3337 = vadd.f32 %v84, %v3336
    %v3338 = vpop.f32.mrb[0].mxu0
    %v3339 = vpop.f32.mrb[0].mxu0
    %v3340 = vadd.f32 %v85, %v3339
    %v3341 = vpop.f32.mrb[0].mxu0
    %3342 = vmatprep.mubr.bf16.mxu0 0
    %3343 = vmatmul.mubr.bf16.gmra.mrb[0].mxu0 %v3294
    %v3344 = vpop.f32.mrb[0].mxu0
    %v3345 = vadd.f32 %v86, %v3344
    %v3346 = vpop.f32.mrb[0].mxu0
    %v3347 = vpop.f32.mrb[0].mxu0
    %v3348 = vpop.f32.mrb[0].mxu0
    %3349 = vdwg.mxu0
    %3352 = vrot.lane.b32.xlu0 %v3142, 64
    %v3353 = vpop.permute.xlu0 %3352
    %3354 = vrot.lane.b32.xlu0 %v3143, 64
    %v3355 = vpop.permute.xlu0 %3354
    %v3357 = vsel %vm699, %v3126, 0
    %v3360 = vsel %vm699, %v3127, 0
    %v3363 = vsel %vm699, %v3353, 0
    %v3366 = vsel %vm699, %v3355, 0
    %3368 = vmatprep.subr.bf16.mxu0 0
    %3369 = vmatpush1.bf16.xpose.msra.mxu0 %v3363
    %3370 = vmatprep.subr.bf16.mxu0 0
    %3371 = vmatpush1.bf16.xpose.msra.mxu0 %v3366
    %3372 = vmatprep.subr.bf16.mxu0 0
    %3373 = vmatpush1.bf16.xpose.msra.mxu0 0
    %3374 = vmatprep.subr.bf16.mxu0 0
    %3375 = vmatpush1.bf16.xpose.msra.mxu0 0
    %3376 = vmatprep.subr.bf16.mxu0 0
    %3377 = vmatpush1.bf16.xpose.msra.mxu0 0
    %3378 = vmatprep.subr.bf16.mxu0 0
    %3379 = vmatpush1.bf16.xpose.msra.mxu0 0
    %3380 = vmatprep.subr.bf16.mxu0 0
    %3381 = vmatpush1.bf16.xpose.msra.mxu0 0
    %3382 = vmatprep.subr.bf16.mxu0 0
    %3383 = vmatpush1.bf16.xpose.msra.mxu0 0
    %3384 = vmatprep.subr.bf16.mxu0 0
    %3385 = vmatpush1.bf16.xpose.msra.mxu0 0
    %3386 = vmatprep.subr.bf16.mxu0 0
    %3387 = vmatpush1.bf16.xpose.msra.mxu0 0
    %3388 = vmatprep.subr.bf16.mxu0 0
    %3389 = vmatpush1.bf16.xpose.msra.mxu0 0
    %3390 = vmatprep.subr.bf16.mxu0 0
    %3391 = vmatpush1.bf16.xpose.msra.mxu0 0
    %3392 = vmatprep.subr.bf16.mxu0 0
    %3393 = vmatpush1.bf16.xpose.msra.mxu0 0
    %3394 = vmatprep.subr.bf16.mxu0 0
    %3395 = vmatpush1.bf16.xpose.msra.mxu0 0
    %3396 = vmatprep.subr.bf16.mxu0 0
    %3397 = vmatpush1.bf16.xpose.msra.mxu0 0
    %3398 = vmatprep.subr.bf16.mxu0 0
    %3399 = vmatpush1.bf16.xpose.msra.mxu0 0
    %3400 = vmatprep.mubr.bf16.mxu0 0
    %3401 = vmatmul.mubr.bf16.gmra.mrb[0].mxu0 %v3357
    %v3402 = vpop.f32.mrb[0].mxu0
    %v3403 = vadd.f32 %v84, %v3402
    %v3404 = vpop.f32.mrb[0].mxu0
    %v3405 = vpop.f32.mrb[0].mxu0
    %v3406 = vadd.f32 %v85, %v3405
    %v3407 = vpop.f32.mrb[0].mxu0
    %3408 = vmatprep.mubr.bf16.mxu0 0
    %3409 = vmatmul.mubr.bf16.gmra.mrb[0].mxu0 %v3360
    %v3410 = vpop.f32.mrb[0].mxu0
    %v3411 = vadd.f32 %v86, %v3410
    %v3412 = vpop.f32.mrb[0].mxu0
    %v3413 = vpop.f32.mrb[0].mxu0
    %v3414 = vpop.f32.mrb[0].mxu0
    %3415 = vdwg.mxu0
    %3418 = vrot.lane.b32.xlu0 %v3144, 64
    %v3419 = vpop.permute.xlu0 %3418
    %3420 = vrot.lane.b32.xlu0 %v3145, 64
    %v3421 = vpop.permute.xlu0 %3420
    %v3423 = vsel %vm699, %v3128, 0
    %v3426 = vsel %vm699, %v3129, 0
    %v3429 = vsel %vm699, %v3419, 0
    %v3432 = vsel %vm699, %v3421, 0
    %3434 = vmatprep.subr.bf16.mxu0 0
    %3435 = vmatpush1.bf16.xpose.msra.mxu0 %v3429
    %3436 = vmatprep.subr.bf16.mxu0 0
    %3437 = vmatpush1.bf16.xpose.msra.mxu0 %v3432
    %3438 = vmatprep.subr.bf16.mxu0 0
    %3439 = vmatpush1.bf16.xpose.msra.mxu0 0
    %3440 = vmatprep.subr.bf16.mxu0 0
    %3441 = vmatpush1.bf16.xpose.msra.mxu0 0
    %3442 = vmatprep.subr.bf16.mxu0 0
    %3443 = vmatpush1.bf16.xpose.msra.mxu0 0
    %3444 = vmatprep.subr.bf16.mxu0 0
    %3445 = vmatpush1.bf16.xpose.msra.mxu0 0
    %3446 = vmatprep.subr.bf16.mxu0 0
    %3447 = vmatpush1.bf16.xpose.msra.mxu0 0
    %3448 = vmatprep.subr.bf16.mxu0 0
    %3449 = vmatpush1.bf16.xpose.msra.mxu0 0
    %3450 = vmatprep.subr.bf16.mxu0 0
    %3451 = vmatpush1.bf16.xpose.msra.mxu0 0
    %3452 = vmatprep.subr.bf16.mxu0 0
    %3453 = vmatpush1.bf16.xpose.msra.mxu0 0
    %3454 = vmatprep.subr.bf16.mxu0 0
    %3455 = vmatpush1.bf16.xpose.msra.mxu0 0
    %3456 = vmatprep.subr.bf16.mxu0 0
    %3457 = vmatpush1.bf16.xpose.msra.mxu0 0
    %3458 = vmatprep.subr.bf16.mxu0 0
    %3459 = vmatpush1.bf16.xpose.msra.mxu0 0
    %3460 = vmatprep.subr.bf16.mxu0 0
    %3461 = vmatpush1.bf16.xpose.msra.mxu0 0
    %3462 = vmatprep.subr.bf16.mxu0 0
    %3463 = vmatpush1.bf16.xpose.msra.mxu0 0
    %3464 = vmatprep.subr.bf16.mxu0 0
    %3465 = vmatpush1.bf16.xpose.msra.mxu0 0
    %3466 = vmatprep.mubr.bf16.mxu0 0
    %3467 = vmatmul.mubr.bf16.gmra.mrb[0].mxu0 %v3423
    %v3468 = vpop.f32.mrb[0].mxu0
    %v3469 = vadd.f32 %v84, %v3468
    %v3470 = vpop.f32.mrb[0].mxu0
    %v3471 = vpop.f32.mrb[0].mxu0
    %v3472 = vadd.f32 %v85, %v3471
    %v3473 = vpop.f32.mrb[0].mxu0
    %3474 = vmatprep.mubr.bf16.mxu0 0
    %3475 = vmatmul.mubr.bf16.gmra.mrb[0].mxu0 %v3426
    %v3476 = vpop.f32.mrb[0].mxu0
    %v3477 = vadd.f32 %v86, %v3476
    %v3478 = vpop.f32.mrb[0].mxu0
    %v3479 = vpop.f32.mrb[0].mxu0
    %v3480 = vpop.f32.mrb[0].mxu0
    %3481 = vdwg.mxu0
    %3484 = vrot.lane.b32.xlu0 %v3146, 64
    %v3485 = vpop.permute.xlu0 %3484
    %3486 = vrot.lane.b32.xlu0 %v3147, 64
    %v3487 = vpop.permute.xlu0 %3486
    %v3489 = vsel %vm699, %v3130, 0
    %v3492 = vsel %vm699, %v3131, 0
    %v3495 = vsel %vm699, %v3485, 0
    %v3498 = vsel %vm699, %v3487, 0
    %3500 = vmatprep.subr.bf16.mxu0 0
    %3501 = vmatpush1.bf16.xpose.msra.mxu0 %v3495
    %3502 = vmatprep.subr.bf16.mxu0 0
    %3503 = vmatpush1.bf16.xpose.msra.mxu0 %v3498
    %3504 = vmatprep.subr.bf16.mxu0 0
    %3505 = vmatpush1.bf16.xpose.msra.mxu0 0
    %3506 = vmatprep.subr.bf16.mxu0 0
    %3507 = vmatpush1.bf16.xpose.msra.mxu0 0
    %3508 = vmatprep.subr.bf16.mxu0 0
    %3509 = vmatpush1.bf16.xpose.msra.mxu0 0
    %3510 = vmatprep.subr.bf16.mxu0 0
    %3511 = vmatpush1.bf16.xpose.msra.mxu0 0
    %3512 = vmatprep.subr.bf16.mxu0 0
    %3513 = vmatpush1.bf16.xpose.msra.mxu0 0
    %3514 = vmatprep.subr.bf16.mxu0 0
    %3515 = vmatpush1.bf16.xpose.msra.mxu0 0
    %3516 = vmatprep.subr.bf16.mxu0 0
    %3517 = vmatpush1.bf16.xpose.msra.mxu0 0
    %3518 = vmatprep.subr.bf16.mxu0 0
    %3519 = vmatpush1.bf16.xpose.msra.mxu0 0
    %3520 = vmatprep.subr.bf16.mxu0 0
    %3521 = vmatpush1.bf16.xpose.msra.mxu0 0
    %3522 = vmatprep.subr.bf16.mxu0 0
    %3523 = vmatpush1.bf16.xpose.msra.mxu0 0
    %3524 = vmatprep.subr.bf16.mxu0 0
    %3525 = vmatpush1.bf16.xpose.msra.mxu0 0
    %3526 = vmatprep.subr.bf16.mxu0 0
    %3527 = vmatpush1.bf16.xpose.msra.mxu0 0
    %3528 = vmatprep.subr.bf16.mxu0 0
    %3529 = vmatpush1.bf16.xpose.msra.mxu0 0
    %3530 = vmatprep.subr.bf16.mxu0 0
    %3531 = vmatpush1.bf16.xpose.msra.mxu0 0
    %3532 = vmatprep.mubr.bf16.mxu0 0
    %3533 = vmatmul.mubr.bf16.gmra.mrb[0].mxu0 %v3489
    %v3534 = vpop.f32.mrb[0].mxu0
    %v3535 = vadd.f32 %v84, %v3534
    %v3536 = vpop.f32.mrb[0].mxu0
    %v3537 = vpop.f32.mrb[0].mxu0
    %v3538 = vadd.f32 %v85, %v3537
    %v3539 = vpop.f32.mrb[0].mxu0
    %3540 = vmatprep.mubr.bf16.mxu0 0
    %3541 = vmatmul.mubr.bf16.gmra.mrb[0].mxu0 %v3492
    %v3542 = vpop.f32.mrb[0].mxu0
    %v3543 = vadd.f32 %v86, %v3542
    %v3544 = vpop.f32.mrb[0].mxu0
    %v3545 = vpop.f32.mrb[0].mxu0
    %v3546 = vpop.f32.mrb[0].mxu0
    %3547 = vdwg.mxu0
    %3550 = vrot.lane.b32.xlu0 %v3148, 64
    %v3551 = vpop.permute.xlu0 %3550
    %3552 = vrot.lane.b32.xlu0 %v3149, 64
    %v3553 = vpop.permute.xlu0 %3552
    %v3555 = vsel %vm699, %v3132, 0
    %v3558 = vsel %vm699, %v3133, 0
    %v3561 = vsel %vm699, %v3551, 0
    %v3564 = vsel %vm699, %v3553, 0
    %3566 = vmatprep.subr.bf16.mxu0 0
    %3567 = vmatpush1.bf16.xpose.msra.mxu0 %v3561
    %3568 = vmatprep.subr.bf16.mxu0 0
    %3569 = vmatpush1.bf16.xpose.msra.mxu0 %v3564
    %3570 = vmatprep.subr.bf16.mxu0 0
    %3571 = vmatpush1.bf16.xpose.msra.mxu0 0
    %3572 = vmatprep.subr.bf16.mxu0 0
    %3573 = vmatpush1.bf16.xpose.msra.mxu0 0
    %3574 = vmatprep.subr.bf16.mxu0 0
    %3575 = vmatpush1.bf16.xpose.msra.mxu0 0
    %3576 = vmatprep.subr.bf16.mxu0 0
    %3577 = vmatpush1.bf16.xpose.msra.mxu0 0
    %3578 = vmatprep.subr.bf16.mxu0 0
    %3579 = vmatpush1.bf16.xpose.msra.mxu0 0
    %3580 = vmatprep.subr.bf16.mxu0 0
    %3581 = vmatpush1.bf16.xpose.msra.mxu0 0
    %3582 = vmatprep.subr.bf16.mxu0 0
    %3583 = vmatpush1.bf16.xpose.msra.mxu0 0
    %3584 = vmatprep.subr.bf16.mxu0 0
    %3585 = vmatpush1.bf16.xpose.msra.mxu0 0
    %3586 = vmatprep.subr.bf16.mxu0 0
    %3587 = vmatpush1.bf16.xpose.msra.mxu0 0
    %3588 = vmatprep.subr.bf16.mxu0 0
    %3589 = vmatpush1.bf16.xpose.msra.mxu0 0
    %3590 = vmatprep.subr.bf16.mxu0 0
    %3591 = vmatpush1.bf16.xpose.msra.mxu0 0
    %3592 = vmatprep.subr.bf16.mxu0 0
    %3593 = vmatpush1.bf16.xpose.msra.mxu0 0
    %3594 = vmatprep.subr.bf16.mxu0 0
    %3595 = vmatpush1.bf16.xpose.msra.mxu0 0
    %3596 = vmatprep.subr.bf16.mxu0 0
    %3597 = vmatpush1.bf16.xpose.msra.mxu0 0
    %3598 = vmatprep.mubr.bf16.mxu0 0
    %3599 = vmatmul.mubr.bf16.gmra.mrb[0].mxu0 %v3555
    %v3600 = vpop.f32.mrb[0].mxu0
    %v3601 = vadd.f32 %v84, %v3600
    %v3602 = vpop.f32.mrb[0].mxu0
    %v3603 = vpop.f32.mrb[0].mxu0
    %v3604 = vadd.f32 %v85, %v3603
    %v3605 = vpop.f32.mrb[0].mxu0
    %3606 = vmatprep.mubr.bf16.mxu0 0
    %3607 = vmatmul.mubr.bf16.gmra.mrb[0].mxu0 %v3558
    %v3608 = vpop.f32.mrb[0].mxu0
    %v3609 = vadd.f32 %v86, %v3608
    %v3610 = vpop.f32.mrb[0].mxu0
    %v3611 = vpop.f32.mrb[0].mxu0
    %v3612 = vpop.f32.mrb[0].mxu0
    %3613 = vdwg.mxu0
    %3616 = vrot.lane.b32.xlu0 %v3150, 64
    %v3617 = vpop.permute.xlu0 %3616
    %3618 = vrot.lane.b32.xlu0 %v3151, 64
    %v3619 = vpop.permute.xlu0 %3618
    %v3621 = vsel %vm699, %v3134, 0
    %v3624 = vsel %vm699, %v3135, 0
    %v3627 = vsel %vm699, %v3617, 0
    %v3630 = vsel %vm699, %v3619, 0
    %3632 = vmatprep.subr.bf16.mxu0 0
    %3633 = vmatpush1.bf16.xpose.msra.mxu0 %v3627
    %3634 = vmatprep.subr.bf16.mxu0 0
    %3635 = vmatpush1.bf16.xpose.msra.mxu0 %v3630
    %3636 = vmatprep.subr.bf16.mxu0 0
    %3637 = vmatpush1.bf16.xpose.msra.mxu0 0
    %3638 = vmatprep.subr.bf16.mxu0 0
    %3639 = vmatpush1.bf16.xpose.msra.mxu0 0
    %3640 = vmatprep.subr.bf16.mxu0 0
    %3641 = vmatpush1.bf16.xpose.msra.mxu0 0
    %3642 = vmatprep.subr.bf16.mxu0 0
    %3643 = vmatpush1.bf16.xpose.msra.mxu0 0
    %3644 = vmatprep.subr.bf16.mxu0 0
    %3645 = vmatpush1.bf16.xpose.msra.mxu0 0
    %3646 = vmatprep.subr.bf16.mxu0 0
    %3647 = vmatpush1.bf16.xpose.msra.mxu0 0
    %3648 = vmatprep.subr.bf16.mxu0 0
    %3649 = vmatpush1.bf16.xpose.msra.mxu0 0
    %3650 = vmatprep.subr.bf16.mxu0 0
    %3651 = vmatpush1.bf16.xpose.msra.mxu0 0
    %3652 = vmatprep.subr.bf16.mxu0 0
    %3653 = vmatpush1.bf16.xpose.msra.mxu0 0
    %3654 = vmatprep.subr.bf16.mxu0 0
    %3655 = vmatpush1.bf16.xpose.msra.mxu0 0
    %3656 = vmatprep.subr.bf16.mxu0 0
    %3657 = vmatpush1.bf16.xpose.msra.mxu0 0
    %3658 = vmatprep.subr.bf16.mxu0 0
    %3659 = vmatpush1.bf16.xpose.msra.mxu0 0
    %3660 = vmatprep.subr.bf16.mxu0 0
    %3661 = vmatpush1.bf16.xpose.msra.mxu0 0
    %3662 = vmatprep.subr.bf16.mxu0 0
    %3663 = vmatpush1.bf16.xpose.msra.mxu0 0
    %3664 = vmatprep.mubr.bf16.mxu0 0
    %3665 = vmatmul.mubr.bf16.gmra.mrb[0].mxu0 %v3621
    %v3666 = vpop.f32.mrb[0].mxu0
    %v3667 = vadd.f32 %v84, %v3666
    %v3668 = vpop.f32.mrb[0].mxu0
    %v3669 = vpop.f32.mrb[0].mxu0
    %v3670 = vadd.f32 %v85, %v3669
    %v3671 = vpop.f32.mrb[0].mxu0
    %3672 = vmatprep.mubr.bf16.mxu0 0
    %3673 = vmatmul.mubr.bf16.gmra.mrb[0].mxu0 %v3624
    %v3674 = vpop.f32.mrb[0].mxu0
    %v3675 = vadd.f32 %v86, %v3674
    %v3676 = vpop.f32.mrb[0].mxu0
    %v3677 = vpop.f32.mrb[0].mxu0
    %v3678 = vpop.f32.mrb[0].mxu0
    %3679 = vdwg.mxu0
    %v3680 = vsel %vm1222, %v3205, -inf
    %3681 = vmax.xlane.f32.xlu0 %v3680
    %v3682 = vpop.xlane.xlu0 %3681
    %v3683 = vsel %vm1222, %v3208, -inf
    %3684 = vmax.xlane.f32.xlu0 %v3683
    %v3685 = vpop.xlane.xlu0 %3684
    %v3686 = vsel %vm1222, %v3213, -inf
    %3687 = vmax.xlane.f32.xlu0 %v3686
    %v3688 = vpop.xlane.xlu0 %3687
    %v3689 = vsel %vm1222, %v3271, -inf
    %3690 = vmax.xlane.f32.xlu0 %v3689
    %v3691 = vpop.xlane.xlu0 %3690
    %v3692 = vsel %vm1222, %v3274, -inf
    %3693 = vmax.xlane.f32.xlu0 %v3692
    %v3694 = vpop.xlane.xlu0 %3693
    %v3695 = vsel %vm1222, %v3279, -inf
    %3696 = vmax.xlane.f32.xlu0 %v3695
    %v3697 = vpop.xlane.xlu0 %3696
    %v3698 = vsel %vm1222, %v3337, -inf
    %3699 = vmax.xlane.f32.xlu0 %v3698
    %v3700 = vpop.xlane.xlu0 %3699
    %v3701 = vsel %vm1222, %v3340, -inf
    %3702 = vmax.xlane.f32.xlu0 %v3701
    %v3703 = vpop.xlane.xlu0 %3702
    %v3704 = vsel %vm1222, %v3345, -inf
    %3705 = vmax.xlane.f32.xlu0 %v3704
    %v3706 = vpop.xlane.xlu0 %3705
    %v3707 = vsel %vm1222, %v3403, -inf
    %3708 = vmax.xlane.f32.xlu0 %v3707
    %v3709 = vpop.xlane.xlu0 %3708
    %v3710 = vsel %vm1222, %v3406, -inf
    %3711 = vmax.xlane.f32.xlu0 %v3710
    %v3712 = vpop.xlane.xlu0 %3711
    %v3713 = vsel %vm1222, %v3411, -inf
    %3714 = vmax.xlane.f32.xlu0 %v3713
    %v3715 = vpop.xlane.xlu0 %3714
    %v3716 = vsel %vm1222, %v3469, -inf
    %3717 = vmax.xlane.f32.xlu0 %v3716
    %v3718 = vpop.xlane.xlu0 %3717
    %v3719 = vsel %vm1222, %v3472, -inf
    %3720 = vmax.xlane.f32.xlu0 %v3719
    %v3721 = vpop.xlane.xlu0 %3720
    %v3722 = vsel %vm1222, %v3477, -inf
    %3723 = vmax.xlane.f32.xlu0 %v3722
    %v3724 = vpop.xlane.xlu0 %3723
    %v3725 = vsel %vm1222, %v3535, -inf
    %3726 = vmax.xlane.f32.xlu0 %v3725
    %v3727 = vpop.xlane.xlu0 %3726
    %v3728 = vsel %vm1222, %v3538, -inf
    %3729 = vmax.xlane.f32.xlu0 %v3728
    %v3730 = vpop.xlane.xlu0 %3729
    %v3731 = vsel %vm1222, %v3543, -inf
    %3732 = vmax.xlane.f32.xlu0 %v3731
    %v3733 = vpop.xlane.xlu0 %3732
    %v3734 = vsel %vm1222, %v3601, -inf
    %3735 = vmax.xlane.f32.xlu0 %v3734
    %v3736 = vpop.xlane.xlu0 %3735
    %v3737 = vsel %vm1222, %v3604, -inf
    %3738 = vmax.xlane.f32.xlu0 %v3737
    %v3739 = vpop.xlane.xlu0 %3738
    %v3740 = vsel %vm1222, %v3609, -inf
    %3741 = vmax.xlane.f32.xlu0 %v3740
    %v3742 = vpop.xlane.xlu0 %3741
    %v3743 = vsel %vm1222, %v3667, -inf
    %3744 = vmax.xlane.f32.xlu0 %v3743
    %v3745 = vpop.xlane.xlu0 %3744
    %v3746 = vsel %vm1222, %v3670, -inf
    %3747 = vmax.xlane.f32.xlu0 %v3746
    %v3748 = vpop.xlane.xlu0 %3747
    %v3749 = vsel %vm1222, %v3675, -inf
    %3750 = vmax.xlane.f32.xlu0 %v3749
    %v3751 = vpop.xlane.xlu0 %3750
    %v3752 = vsub.f32 %v3205, %v3682
    %v3753 = vsub.f32 %v3208, %v3685
    %v3754 = vsub.f32 %v3213, %v3688
    %v3755 = vsub.f32 %v3271, %v3691
    %v3756 = vsub.f32 %v3274, %v3694
    %v3757 = vsub.f32 %v3279, %v3697
    %v3758 = vsub.f32 %v3337, %v3700
    %v3759 = vsub.f32 %v3340, %v3703
    %v3760 = vsub.f32 %v3345, %v3706
    %v3761 = vsub.f32 %v3403, %v3709
    %v3762 = vsub.f32 %v3406, %v3712
    %v3763 = vsub.f32 %v3411, %v3715
    %v3764 = vsub.f32 %v3469, %v3718
    %v3765 = vsub.f32 %v3472, %v3721
    %v3766 = vsub.f32 %v3477, %v3724
    %v3767 = vsub.f32 %v3535, %v3727
    %v3768 = vsub.f32 %v3538, %v3730
    %v3769 = vsub.f32 %v3543, %v3733
    %v3770 = vsub.f32 %v3601, %v3736
    %v3771 = vsub.f32 %v3604, %v3739
    %v3772 = vsub.f32 %v3609, %v3742
    %v3773 = vsub.f32 %v3667, %v3745
    %v3774 = vsub.f32 %v3670, %v3748
    %v3775 = vsub.f32 %v3675, %v3751
    %v3776 = vmul.f32 %v3752, 1.442695
    %v3777 = vpow.pop %v3776
    %v3778 = vmul.f32 %v3753, 1.442695
    %v3779 = vpow.pop %v3778
    %v3780 = vmul.f32 %v3754, 1.442695
    %v3781 = vpow.pop %v3780
    %v3782 = vmul.f32 %v3755, 1.442695
    %v3783 = vpow.pop %v3782
    %v3784 = vmul.f32 %v3756, 1.442695
    %v3785 = vpow.pop %v3784
    %v3786 = vmul.f32 %v3757, 1.442695
    %v3787 = vpow.pop %v3786
    %v3788 = vmul.f32 %v3758, 1.442695
    %v3789 = vpow.pop %v3788
    %v3790 = vmul.f32 %v3759, 1.442695
    %v3791 = vpow.pop %v3790
    %v3792 = vmul.f32 %v3760, 1.442695
    %v3793 = vpow.pop %v3792
    %v3794 = vmul.f32 %v3761, 1.442695
    %v3795 = vpow.pop %v3794
    %v3796 = vmul.f32 %v3762, 1.442695
    %v3797 = vpow.pop %v3796
    %v3798 = vmul.f32 %v3763, 1.442695
    %v3799 = vpow.pop %v3798
    %v3800 = vmul.f32 %v3764, 1.442695
    %v3801 = vpow.pop %v3800
    %v3802 = vmul.f32 %v3765, 1.442695
    %v3803 = vpow.pop %v3802
    %v3804 = vmul.f32 %v3766, 1.442695
    %v3805 = vpow.pop %v3804
    %v3806 = vmul.f32 %v3767, 1.442695
    %v3807 = vpow.pop %v3806
    %v3808 = vmul.f32 %v3768, 1.442695
    %v3809 = vpow.pop %v3808
    %v3810 = vmul.f32 %v3769, 1.442695
    %v3811 = vpow.pop %v3810
    %v3812 = vmul.f32 %v3770, 1.442695
    %v3813 = vpow.pop %v3812
    %v3814 = vmul.f32 %v3771, 1.442695
    %v3815 = vpow.pop %v3814
    %v3816 = vmul.f32 %v3772, 1.442695
    %v3817 = vpow.pop %v3816
    %v3818 = vmul.f32 %v3773, 1.442695
    %v3819 = vpow.pop %v3818
    %v3820 = vmul.f32 %v3774, 1.442695
    %v3821 = vpow.pop %v3820
    %v3822 = vmul.f32 %v3775, 1.442695
    %v3823 = vpow.pop %v3822
    %v3824 = vsel %vm1222, %v3777, 0.0
    %3825 = vadd.xlane.f32.xlu0 %v3824
    %v3826 = vpop.xlane.xlu0 %3825
    %v3827 = vsel %vm1222, %v3779, 0.0
    %3828 = vadd.xlane.f32.xlu0 %v3827
    %v3829 = vpop.xlane.xlu0 %3828
    %v3830 = vsel %vm1222, %v3781, 0.0
    %3831 = vadd.xlane.f32.xlu0 %v3830
    %v3832 = vpop.xlane.xlu0 %3831
    %v3833 = vsel %vm1222, %v3783, 0.0
    %3834 = vadd.xlane.f32.xlu0 %v3833
    %v3835 = vpop.xlane.xlu0 %3834
    %v3836 = vsel %vm1222, %v3785, 0.0
    %3837 = vadd.xlane.f32.xlu0 %v3836
    %v3838 = vpop.xlane.xlu0 %3837
    %v3839 = vsel %vm1222, %v3787, 0.0
    %3840 = vadd.xlane.f32.xlu0 %v3839
    %v3841 = vpop.xlane.xlu0 %3840
    %v3842 = vsel %vm1222, %v3789, 0.0
    %3843 = vadd.xlane.f32.xlu0 %v3842
    %v3844 = vpop.xlane.xlu0 %3843
    %v3845 = vsel %vm1222, %v3791, 0.0
    %3846 = vadd.xlane.f32.xlu0 %v3845
    %v3847 = vpop.xlane.xlu0 %3846
    %v3848 = vsel %vm1222, %v3793, 0.0
    %3849 = vadd.xlane.f32.xlu0 %v3848
    %v3850 = vpop.xlane.xlu0 %3849
    %v3851 = vsel %vm1222, %v3795, 0.0
    %3852 = vadd.xlane.f32.xlu0 %v3851
    %v3853 = vpop.xlane.xlu0 %3852
    %v3854 = vsel %vm1222, %v3797, 0.0
    %3855 = vadd.xlane.f32.xlu0 %v3854
    %v3856 = vpop.xlane.xlu0 %3855
    %v3857 = vsel %vm1222, %v3799, 0.0
    %3858 = vadd.xlane.f32.xlu0 %v3857
    %v3859 = vpop.xlane.xlu0 %3858
    %v3860 = vsel %vm1222, %v3801, 0.0
    %3861 = vadd.xlane.f32.xlu0 %v3860
    %v3862 = vpop.xlane.xlu0 %3861
    %v3863 = vsel %vm1222, %v3803, 0.0
    %3864 = vadd.xlane.f32.xlu0 %v3863
    %v3865 = vpop.xlane.xlu0 %3864
    %v3866 = vsel %vm1222, %v3805, 0.0
    %3867 = vadd.xlane.f32.xlu0 %v3866
    %v3868 = vpop.xlane.xlu0 %3867
    %v3869 = vsel %vm1222, %v3807, 0.0
    %3870 = vadd.xlane.f32.xlu0 %v3869
    %v3871 = vpop.xlane.xlu0 %3870
    %v3872 = vsel %vm1222, %v3809, 0.0
    %3873 = vadd.xlane.f32.xlu0 %v3872
    %v3874 = vpop.xlane.xlu0 %3873
    %v3875 = vsel %vm1222, %v3811, 0.0
    %3876 = vadd.xlane.f32.xlu0 %v3875
    %v3877 = vpop.xlane.xlu0 %3876
    %v3878 = vsel %vm1222, %v3813, 0.0
    %3879 = vadd.xlane.f32.xlu0 %v3878
    %v3880 = vpop.xlane.xlu0 %3879
    %v3881 = vsel %vm1222, %v3815, 0.0
    %3882 = vadd.xlane.f32.xlu0 %v3881
    %v3883 = vpop.xlane.xlu0 %3882
    %v3884 = vsel %vm1222, %v3817, 0.0
    %3885 = vadd.xlane.f32.xlu0 %v3884
    %v3886 = vpop.xlane.xlu0 %3885
    %v3887 = vsel %vm1222, %v3819, 0.0
    %3888 = vadd.xlane.f32.xlu0 %v3887
    %v3889 = vpop.xlane.xlu0 %3888
    %v3890 = vsel %vm1222, %v3821, 0.0
    %3891 = vadd.xlane.f32.xlu0 %v3890
    %v3892 = vpop.xlane.xlu0 %3891
    %v3893 = vsel %vm1222, %v3823, 0.0
    %3894 = vadd.xlane.f32.xlu0 %v3893
    %v3895 = vpop.xlane.xlu0 %3894
    %v3896 = vrcp.pop %v3826
    %v3897 = vrcp.pop %v3829
    %v3898 = vrcp.pop %v3832
    %v3899 = vrcp.pop %v3835
    %v3900 = vrcp.pop %v3838
    %v3901 = vrcp.pop %v3841
    %v3902 = vrcp.pop %v3844
    %v3903 = vrcp.pop %v3847
    %v3904 = vrcp.pop %v3850
    %v3905 = vrcp.pop %v3853
    %v3906 = vrcp.pop %v3856
    %v3907 = vrcp.pop %v3859
    %v3908 = vrcp.pop %v3862
    %v3909 = vrcp.pop %v3865
    %v3910 = vrcp.pop %v3868
    %v3911 = vrcp.pop %v3871
    %v3912 = vrcp.pop %v3874
    %v3913 = vrcp.pop %v3877
    %v3914 = vrcp.pop %v3880
    %v3915 = vrcp.pop %v3883
    %v3916 = vrcp.pop %v3886
    %v3917 = vrcp.pop %v3889
    %v3918 = vrcp.pop %v3892
    %v3919 = vrcp.pop %v3895
    %v3920 = vmul.f32 %v3777, %v3896
    %v3921 = vmul.f32 %v3779, %v3897
    %v3922 = vmul.f32 %v3781, %v3898
    %v3923 = vmul.f32 %v3783, %v3899
    %v3924 = vmul.f32 %v3785, %v3900
    %v3925 = vmul.f32 %v3787, %v3901
    %v3926 = vmul.f32 %v3789, %v3902
    %v3927 = vmul.f32 %v3791, %v3903
    %v3928 = vmul.f32 %v3793, %v3904
    %v3929 = vmul.f32 %v3795, %v3905
    %v3930 = vmul.f32 %v3797, %v3906
    %v3931 = vmul.f32 %v3799, %v3907
    %v3932 = vmul.f32 %v3801, %v3908
    %v3933 = vmul.f32 %v3803, %v3909
    %v3934 = vmul.f32 %v3805, %v3910
    %v3935 = vmul.f32 %v3807, %v3911
    %v3936 = vmul.f32 %v3809, %v3912
    %v3937 = vmul.f32 %v3811, %v3913
    %v3938 = vmul.f32 %v3813, %v3914
    %v3939 = vmul.f32 %v3815, %v3915
    %v3940 = vmul.f32 %v3817, %v3916
    %v3941 = vmul.f32 %v3819, %v3917
    %v3942 = vmul.f32 %v3821, %v3918
    %v3943 = vmul.f32 %v3823, %v3919
    %v3944 = vpack.c.bf16 %v3921, %v3920
    %v3945 = vpack.c.bf16 %v3922, %v3922
    %v3946 = vpack.c.bf16 %v3924, %v3923
    %v3947 = vpack.c.bf16 %v3925, %v3925
    %v3948 = vpack.c.bf16 %v3927, %v3926
    %v3949 = vpack.c.bf16 %v3928, %v3928
    %v3950 = vpack.c.bf16 %v3930, %v3929
    %v3951 = vpack.c.bf16 %v3931, %v3931
    %v3952 = vpack.c.bf16 %v3933, %v3932
    %v3953 = vpack.c.bf16 %v3934, %v3934
    %v3954 = vpack.c.bf16 %v3936, %v3935
    %v3955 = vpack.c.bf16 %v3937, %v3937
    %v3956 = vpack.c.bf16 %v3939, %v3938
    %v3957 = vpack.c.bf16 %v3940, %v3940
    %v3958 = vpack.c.bf16 %v3942, %v3941
    %v3959 = vpack.c.bf16 %v3943, %v3943
    %v3960 = vpack.c.bf16 %v2954, %v2950
    %v3961 = vpack.c.bf16 %v2960, %v2960
    %v3962 = vpack.c.bf16 %v2970, %v2964
    %v3963 = vpack.c.bf16 %v2974, %v2974
    %v3964 = vpack.c.bf16 %v3069, %v3067
    %v3965 = vpack.c.bf16 %v3071, %v3071
    %v3966 = vpack.c.bf16 %v3075, %v3073
    %v3967 = vpack.c.bf16 %v3077, %v3077
    %v3968 = vpack.c.bf16 %v3087, %v3085
    %v3969 = vpack.c.bf16 %v3089, %v3089
    %v3970 = vpack.c.bf16 %v3093, %v3091
    %v3971 = vpack.c.bf16 %v3095, %v3095
    %v3972 = vpack.c.bf16 %v3105, %v3103
    %v3973 = vpack.c.bf16 %v3107, %v3107
    %v3974 = vpack.c.bf16 %v3111, %v3109
    %v3975 = vpack.c.bf16 %v3113, %v3113
    %v3977 = vsel %vm1222, %v3944, 0
    %v3980 = vsel %vm1222, %v3945, 0
    %v3983 = vsel %vm1525, %v3961, 0
    %3985 = vmatprep.subr.bf16.mxu0 0
    %3986 = vmatpush1.bf16.msra.mxu0 %v3960
    %3987 = vmatprep.subr.bf16.mxu0 0
    %3988 = vmatpush1.bf16.msra.mxu0 %v3983
    %3989 = vmatprep.subr.bf16.mxu0 0
    %3990 = vmatpush1.bf16.msra.mxu0 0
    %3991 = vmatprep.subr.bf16.mxu0 0
    %3992 = vmatpush1.bf16.msra.mxu0 0
    %3993 = vmatprep.subr.bf16.mxu0 0
    %3994 = vmatpush1.bf16.msra.mxu0 0
    %3995 = vmatprep.subr.bf16.mxu0 0
    %3996 = vmatpush1.bf16.msra.mxu0 0
    %3997 = vmatprep.subr.bf16.mxu0 0
    %3998 = vmatpush1.bf16.msra.mxu0 0
    %3999 = vmatprep.subr.bf16.mxu0 0
    %4000 = vmatpush1.bf16.msra.mxu0 0
    %4001 = vmatprep.subr.bf16.mxu0 0
    %4002 = vmatpush1.bf16.msra.mxu0 0
    %4003 = vmatprep.subr.bf16.mxu0 0
    %4004 = vmatpush1.bf16.msra.mxu0 0
    %4005 = vmatprep.subr.bf16.mxu0 0
    %4006 = vmatpush1.bf16.msra.mxu0 0
    %4007 = vmatprep.subr.bf16.mxu0 0
    %4008 = vmatpush1.bf16.msra.mxu0 0
    %4009 = vmatprep.subr.bf16.mxu0 0
    %4010 = vmatpush1.bf16.msra.mxu0 0
    %4011 = vmatprep.subr.bf16.mxu0 0
    %4012 = vmatpush1.bf16.msra.mxu0 0
    %4013 = vmatprep.subr.bf16.mxu0 0
    %4014 = vmatpush1.bf16.msra.mxu0 0
    %4015 = vmatprep.subr.bf16.mxu0 0
    %4016 = vmatpush1.bf16.msra.mxu0 0
    %4017 = vmatprep.mubr.bf16.mxu0 0
    %4018 = vmatmul.mubr.bf16.gmra.mrb[0].mxu0 %v3977
    %v4019 = vpop.f32.mrb[0].mxu0
    %v4020 = vadd.f32 0.0, %v4019
    %v4021 = vpop.f32.mrb[0].mxu0
    %v4022 = vpop.f32.mrb[0].mxu0
    %v4023 = vadd.f32 0.0, %v4022
    %v4024 = vpop.f32.mrb[0].mxu0
    %4025 = vmatprep.mubr.bf16.mxu0 0
    %4026 = vmatmul.mubr.bf16.gmra.mrb[0].mxu0 %v3980
    %v4027 = vpop.f32.mrb[0].mxu0
    %v4028 = vadd.f32 0.0, %v4027
    %v4029 = vpop.f32.mrb[0].mxu0
    %v4030 = vpop.f32.mrb[0].mxu0
    %v4031 = vpop.f32.mrb[0].mxu0
    %4032 = vdwg.mxu0
    %v4034 = vsel %vm1222, %v3946, 0
    %v4037 = vsel %vm1222, %v3947, 0
    %v4040 = vsel %vm1525, %v3963, 0
    %4042 = vmatprep.subr.bf16.mxu0 0
    %4043 = vmatpush1.bf16.msra.mxu0 %v3962
    %4044 = vmatprep.subr.bf16.mxu0 0
    %4045 = vmatpush1.bf16.msra.mxu0 %v4040
    %4046 = vmatprep.subr.bf16.mxu0 0
    %4047 = vmatpush1.bf16.msra.mxu0 0
    %4048 = vmatprep.subr.bf16.mxu0 0
    %4049 = vmatpush1.bf16.msra.mxu0 0
    %4050 = vmatprep.subr.bf16.mxu0 0
    %4051 = vmatpush1.bf16.msra.mxu0 0
    %4052 = vmatprep.subr.bf16.mxu0 0
    %4053 = vmatpush1.bf16.msra.mxu0 0
    %4054 = vmatprep.subr.bf16.mxu0 0
    %4055 = vmatpush1.bf16.msra.mxu0 0
    %4056 = vmatprep.subr.bf16.mxu0 0
    %4057 = vmatpush1.bf16.msra.mxu0 0
    %4058 = vmatprep.subr.bf16.mxu0 0
    %4059 = vmatpush1.bf16.msra.mxu0 0
    %4060 = vmatprep.subr.bf16.mxu0 0
    %4061 = vmatpush1.bf16.msra.mxu0 0
    %4062 = vmatprep.subr.bf16.mxu0 0
    %4063 = vmatpush1.bf16.msra.mxu0 0
    %4064 = vmatprep.subr.bf16.mxu0 0
    %4065 = vmatpush1.bf16.msra.mxu0 0
    %4066 = vmatprep.subr.bf16.mxu0 0
    %4067 = vmatpush1.bf16.msra.mxu0 0
    %4068 = vmatprep.subr.bf16.mxu0 0
    %4069 = vmatpush1.bf16.msra.mxu0 0
    %4070 = vmatprep.subr.bf16.mxu0 0
    %4071 = vmatpush1.bf16.msra.mxu0 0
    %4072 = vmatprep.subr.bf16.mxu0 0
    %4073 = vmatpush1.bf16.msra.mxu0 0
    %4074 = vmatprep.mubr.bf16.mxu0 0
    %4075 = vmatmul.mubr.bf16.gmra.mrb[0].mxu0 %v4034
    %v4076 = vpop.f32.mrb[0].mxu0
    %v4077 = vadd.f32 0.0, %v4076
    %v4078 = vpop.f32.mrb[0].mxu0
    %v4079 = vpop.f32.mrb[0].mxu0
    %v4080 = vadd.f32 0.0, %v4079
    %v4081 = vpop.f32.mrb[0].mxu0
    %4082 = vmatprep.mubr.bf16.mxu0 0
    %4083 = vmatmul.mubr.bf16.gmra.mrb[0].mxu0 %v4037
    %v4084 = vpop.f32.mrb[0].mxu0
    %v4085 = vadd.f32 0.0, %v4084
    %v4086 = vpop.f32.mrb[0].mxu0
    %v4087 = vpop.f32.mrb[0].mxu0
    %v4088 = vpop.f32.mrb[0].mxu0
    %4089 = vdwg.mxu0
    %v4091 = vsel %vm1222, %v3948, 0
    %v4094 = vsel %vm1222, %v3949, 0
    %v4097 = vsel %vm1525, %v3965, 0
    %4099 = vmatprep.subr.bf16.mxu0 0
    %4100 = vmatpush1.bf16.msra.mxu0 %v3964
    %4101 = vmatprep.subr.bf16.mxu0 0
    %4102 = vmatpush1.bf16.msra.mxu0 %v4097
    %4103 = vmatprep.subr.bf16.mxu0 0
    %4104 = vmatpush1.bf16.msra.mxu0 0
    %4105 = vmatprep.subr.bf16.mxu0 0
    %4106 = vmatpush1.bf16.msra.mxu0 0
    %4107 = vmatprep.subr.bf16.mxu0 0
    %4108 = vmatpush1.bf16.msra.mxu0 0
    %4109 = vmatprep.subr.bf16.mxu0 0
    %4110 = vmatpush1.bf16.msra.mxu0 0
    %4111 = vmatprep.subr.bf16.mxu0 0
    %4112 = vmatpush1.bf16.msra.mxu0 0
    %4113 = vmatprep.subr.bf16.mxu0 0
    %4114 = vmatpush1.bf16.msra.mxu0 0
    %4115 = vmatprep.subr.bf16.mxu0 0
    %4116 = vmatpush1.bf16.msra.mxu0 0
    %4117 = vmatprep.subr.bf16.mxu0 0
    %4118 = vmatpush1.bf16.msra.mxu0 0
    %4119 = vmatprep.subr.bf16.mxu0 0
    %4120 = vmatpush1.bf16.msra.mxu0 0
    %4121 = vmatprep.subr.bf16.mxu0 0
    %4122 = vmatpush1.bf16.msra.mxu0 0
    %4123 = vmatprep.subr.bf16.mxu0 0
    %4124 = vmatpush1.bf16.msra.mxu0 0
    %4125 = vmatprep.subr.bf16.mxu0 0
    %4126 = vmatpush1.bf16.msra.mxu0 0
    %4127 = vmatprep.subr.bf16.mxu0 0
    %4128 = vmatpush1.bf16.msra.mxu0 0
    %4129 = vmatprep.subr.bf16.mxu0 0
    %4130 = vmatpush1.bf16.msra.mxu0 0
    %4131 = vmatprep.mubr.bf16.mxu0 0
    %4132 = vmatmul.mubr.bf16.gmra.mrb[0].mxu0 %v4091
    %v4133 = vpop.f32.mrb[0].mxu0
    %v4134 = vadd.f32 0.0, %v4133
    %v4135 = vpop.f32.mrb[0].mxu0
    %v4136 = vpop.f32.mrb[0].mxu0
    %v4137 = vadd.f32 0.0, %v4136
    %v4138 = vpop.f32.mrb[0].mxu0
    %4139 = vmatprep.mubr.bf16.mxu0 0
    %4140 = vmatmul.mubr.bf16.gmra.mrb[0].mxu0 %v4094
    %v4141 = vpop.f32.mrb[0].mxu0
    %v4142 = vadd.f32 0.0, %v4141
    %v4143 = vpop.f32.mrb[0].mxu0
    %v4144 = vpop.f32.mrb[0].mxu0
    %v4145 = vpop.f32.mrb[0].mxu0
    %4146 = vdwg.mxu0
    %v4148 = vsel %vm1222, %v3950, 0
    %v4151 = vsel %vm1222, %v3951, 0
    %v4154 = vsel %vm1525, %v3967, 0
    %4156 = vmatprep.subr.bf16.mxu0 0
    %4157 = vmatpush1.bf16.msra.mxu0 %v3966
    %4158 = vmatprep.subr.bf16.mxu0 0
    %4159 = vmatpush1.bf16.msra.mxu0 %v4154
    %4160 = vmatprep.subr.bf16.mxu0 0
    %4161 = vmatpush1.bf16.msra.mxu0 0
    %4162 = vmatprep.subr.bf16.mxu0 0
    %4163 = vmatpush1.bf16.msra.mxu0 0
    %4164 = vmatprep.subr.bf16.mxu0 0
    %4165 = vmatpush1.bf16.msra.mxu0 0
    %4166 = vmatprep.subr.bf16.mxu0 0
    %4167 = vmatpush1.bf16.msra.mxu0 0
    %4168 = vmatprep.subr.bf16.mxu0 0
    %4169 = vmatpush1.bf16.msra.mxu0 0
    %4170 = vmatprep.subr.bf16.mxu0 0
    %4171 = vmatpush1.bf16.msra.mxu0 0
    %4172 = vmatprep.subr.bf16.mxu0 0
    %4173 = vmatpush1.bf16.msra.mxu0 0
    %4174 = vmatprep.subr.bf16.mxu0 0
    %4175 = vmatpush1.bf16.msra.mxu0 0
    %4176 = vmatprep.subr.bf16.mxu0 0
    %4177 = vmatpush1.bf16.msra.mxu0 0
    %4178 = vmatprep.subr.bf16.mxu0 0
    %4179 = vmatpush1.bf16.msra.mxu0 0
    %4180 = vmatprep.subr.bf16.mxu0 0
    %4181 = vmatpush1.bf16.msra.mxu0 0
    %4182 = vmatprep.subr.bf16.mxu0 0
    %4183 = vmatpush1.bf16.msra.mxu0 0
    %4184 = vmatprep.subr.bf16.mxu0 0
    %4185 = vmatpush1.bf16.msra.mxu0 0
    %4186 = vmatprep.subr.bf16.mxu0 0
    %4187 = vmatpush1.bf16.msra.mxu0 0
    %4188 = vmatprep.mubr.bf16.mxu0 0
    %4189 = vmatmul.mubr.bf16.gmra.mrb[0].mxu0 %v4148
    %v4190 = vpop.f32.mrb[0].mxu0
    %v4191 = vadd.f32 0.0, %v4190
    %v4192 = vpop.f32.mrb[0].mxu0
    %v4193 = vpop.f32.mrb[0].mxu0
    %v4194 = vadd.f32 0.0, %v4193
    %v4195 = vpop.f32.mrb[0].mxu0
    %4196 = vmatprep.mubr.bf16.mxu0 0
    %4197 = vmatmul.mubr.bf16.gmra.mrb[0].mxu0 %v4151
    %v4198 = vpop.f32.mrb[0].mxu0
    %v4199 = vadd.f32 0.0, %v4198
    %v4200 = vpop.f32.mrb[0].mxu0
    %v4201 = vpop.f32.mrb[0].mxu0
    %v4202 = vpop.f32.mrb[0].mxu0
    %4203 = vdwg.mxu0
    %v4205 = vsel %vm1222, %v3952, 0
    %v4208 = vsel %vm1222, %v3953, 0
    %v4211 = vsel %vm1525, %v3969, 0
    %4213 = vmatprep.subr.bf16.mxu0 0
    %4214 = vmatpush1.bf16.msra.mxu0 %v3968
    %4215 = vmatprep.subr.bf16.mxu0 0
    %4216 = vmatpush1.bf16.msra.mxu0 %v4211
    %4217 = vmatprep.subr.bf16.mxu0 0
    %4218 = vmatpush1.bf16.msra.mxu0 0
    %4219 = vmatprep.subr.bf16.mxu0 0
    %4220 = vmatpush1.bf16.msra.mxu0 0
    %4221 = vmatprep.subr.bf16.mxu0 0
    %4222 = vmatpush1.bf16.msra.mxu0 0
    %4223 = vmatprep.subr.bf16.mxu0 0
    %4224 = vmatpush1.bf16.msra.mxu0 0
    %4225 = vmatprep.subr.bf16.mxu0 0
    %4226 = vmatpush1.bf16.msra.mxu0 0
    %4227 = vmatprep.subr.bf16.mxu0 0
    %4228 = vmatpush1.bf16.msra.mxu0 0
    %4229 = vmatprep.subr.bf16.mxu0 0
    %4230 = vmatpush1.bf16.msra.mxu0 0
    %4231 = vmatprep.subr.bf16.mxu0 0
    %4232 = vmatpush1.bf16.msra.mxu0 0
    %4233 = vmatprep.subr.bf16.mxu0 0
    %4234 = vmatpush1.bf16.msra.mxu0 0
    %4235 = vmatprep.subr.bf16.mxu0 0
    %4236 = vmatpush1.bf16.msra.mxu0 0
    %4237 = vmatprep.subr.bf16.mxu0 0
    %4238 = vmatpush1.bf16.msra.mxu0 0
    %4239 = vmatprep.subr.bf16.mxu0 0
    %4240 = vmatpush1.bf16.msra.mxu0 0
    %4241 = vmatprep.subr.bf16.mxu0 0
    %4242 = vmatpush1.bf16.msra.mxu0 0
    %4243 = vmatprep.subr.bf16.mxu0 0
    %4244 = vmatpush1.bf16.msra.mxu0 0
    %4245 = vmatprep.mubr.bf16.mxu0 0
    %4246 = vmatmul.mubr.bf16.gmra.mrb[0].mxu0 %v4205
    %v4247 = vpop.f32.mrb[0].mxu0
    %v4248 = vadd.f32 0.0, %v4247
    %v4249 = vpop.f32.mrb[0].mxu0
    %v4250 = vpop.f32.mrb[0].mxu0
    %v4251 = vadd.f32 0.0, %v4250
    %v4252 = vpop.f32.mrb[0].mxu0
    %4253 = vmatprep.mubr.bf16.mxu0 0
    %4254 = vmatmul.mubr.bf16.gmra.mrb[0].mxu0 %v4208
    %v4255 = vpop.f32.mrb[0].mxu0
    %v4256 = vadd.f32 0.0, %v4255
    %v4257 = vpop.f32.mrb[0].mxu0
    %v4258 = vpop.f32.mrb[0].mxu0
    %v4259 = vpop.f32.mrb[0].mxu0
    %4260 = vdwg.mxu0
    %v4262 = vsel %vm1222, %v3954, 0
    %v4265 = vsel %vm1222, %v3955, 0
    %v4268 = vsel %vm1525, %v3971, 0
    %4270 = vmatprep.subr.bf16.mxu0 0
    %4271 = vmatpush1.bf16.msra.mxu0 %v3970
    %4272 = vmatprep.subr.bf16.mxu0 0
    %4273 = vmatpush1.bf16.msra.mxu0 %v4268
    %4274 = vmatprep.subr.bf16.mxu0 0
    %4275 = vmatpush1.bf16.msra.mxu0 0
    %4276 = vmatprep.subr.bf16.mxu0 0
    %4277 = vmatpush1.bf16.msra.mxu0 0
    %4278 = vmatprep.subr.bf16.mxu0 0
    %4279 = vmatpush1.bf16.msra.mxu0 0
    %4280 = vmatprep.subr.bf16.mxu0 0
    %4281 = vmatpush1.bf16.msra.mxu0 0
    %4282 = vmatprep.subr.bf16.mxu0 0
    %4283 = vmatpush1.bf16.msra.mxu0 0
    %4284 = vmatprep.subr.bf16.mxu0 0
    %4285 = vmatpush1.bf16.msra.mxu0 0
    %4286 = vmatprep.subr.bf16.mxu0 0
    %4287 = vmatpush1.bf16.msra.mxu0 0
    %4288 = vmatprep.subr.bf16.mxu0 0
    %4289 = vmatpush1.bf16.msra.mxu0 0
    %4290 = vmatprep.subr.bf16.mxu0 0
    %4291 = vmatpush1.bf16.msra.mxu0 0
    %4292 = vmatprep.subr.bf16.mxu0 0
    %4293 = vmatpush1.bf16.msra.mxu0 0
    %4294 = vmatprep.subr.bf16.mxu0 0
    %4295 = vmatpush1.bf16.msra.mxu0 0
    %4296 = vmatprep.subr.bf16.mxu0 0
    %4297 = vmatpush1.bf16.msra.mxu0 0
    %4298 = vmatprep.subr.bf16.mxu0 0
    %4299 = vmatpush1.bf16.msra.mxu0 0
    %4300 = vmatprep.subr.bf16.mxu0 0
    %4301 = vmatpush1.bf16.msra.mxu0 0
    %4302 = vmatprep.mubr.bf16.mxu0 0
    %4303 = vmatmul.mubr.bf16.gmra.mrb[0].mxu0 %v4262
    %v4304 = vpop.f32.mrb[0].mxu0
    %v4305 = vadd.f32 0.0, %v4304
    %v4306 = vpop.f32.mrb[0].mxu0
    %v4307 = vpop.f32.mrb[0].mxu0
    %v4308 = vadd.f32 0.0, %v4307
    %v4309 = vpop.f32.mrb[0].mxu0
    %4310 = vmatprep.mubr.bf16.mxu0 0
    %4311 = vmatmul.mubr.bf16.gmra.mrb[0].mxu0 %v4265
    %v4312 = vpop.f32.mrb[0].mxu0
    %v4313 = vadd.f32 0.0, %v4312
    %v4314 = vpop.f32.mrb[0].mxu0
    %v4315 = vpop.f32.mrb[0].mxu0
    %v4316 = vpop.f32.mrb[0].mxu0
    %4317 = vdwg.mxu0
    %v4319 = vsel %vm1222, %v3956, 0
    %v4322 = vsel %vm1222, %v3957, 0
    %v4325 = vsel %vm1525, %v3973, 0
    %4327 = vmatprep.subr.bf16.mxu0 0
    %4328 = vmatpush1.bf16.msra.mxu0 %v3972
    %4329 = vmatprep.subr.bf16.mxu0 0
    %4330 = vmatpush1.bf16.msra.mxu0 %v4325
    %4331 = vmatprep.subr.bf16.mxu0 0
    %4332 = vmatpush1.bf16.msra.mxu0 0
    %4333 = vmatprep.subr.bf16.mxu0 0
    %4334 = vmatpush1.bf16.msra.mxu0 0
    %4335 = vmatprep.subr.bf16.mxu0 0
    %4336 = vmatpush1.bf16.msra.mxu0 0
    %4337 = vmatprep.subr.bf16.mxu0 0
    %4338 = vmatpush1.bf16.msra.mxu0 0
    %4339 = vmatprep.subr.bf16.mxu0 0
    %4340 = vmatpush1.bf16.msra.mxu0 0
    %4341 = vmatprep.subr.bf16.mxu0 0
    %4342 = vmatpush1.bf16.msra.mxu0 0
    %4343 = vmatprep.subr.bf16.mxu0 0
    %4344 = vmatpush1.bf16.msra.mxu0 0
    %4345 = vmatprep.subr.bf16.mxu0 0
    %4346 = vmatpush1.bf16.msra.mxu0 0
    %4347 = vmatprep.subr.bf16.mxu0 0
    %4348 = vmatpush1.bf16.msra.mxu0 0
    %4349 = vmatprep.subr.bf16.mxu0 0
    %4350 = vmatpush1.bf16.msra.mxu0 0
    %4351 = vmatprep.subr.bf16.mxu0 0
    %4352 = vmatpush1.bf16.msra.mxu0 0
    %4353 = vmatprep.subr.bf16.mxu0 0
    %4354 = vmatpush1.bf16.msra.mxu0 0
    %4355 = vmatprep.subr.bf16.mxu0 0
    %4356 = vmatpush1.bf16.msra.mxu0 0
    %4357 = vmatprep.subr.bf16.mxu0 0
    %4358 = vmatpush1.bf16.msra.mxu0 0
    %4359 = vmatprep.mubr.bf16.mxu0 0
    %4360 = vmatmul.mubr.bf16.gmra.mrb[0].mxu0 %v4319
    %v4361 = vpop.f32.mrb[0].mxu0
    %v4362 = vadd.f32 0.0, %v4361
    %v4363 = vpop.f32.mrb[0].mxu0
    %v4364 = vpop.f32.mrb[0].mxu0
    %v4365 = vadd.f32 0.0, %v4364
    %v4366 = vpop.f32.mrb[0].mxu0
    %4367 = vmatprep.mubr.bf16.mxu0 0
    %4368 = vmatmul.mubr.bf16.gmra.mrb[0].mxu0 %v4322
    %v4369 = vpop.f32.mrb[0].mxu0
    %v4370 = vadd.f32 0.0, %v4369
    %v4371 = vpop.f32.mrb[0].mxu0
    %v4372 = vpop.f32.mrb[0].mxu0
    %v4373 = vpop.f32.mrb[0].mxu0
    %4374 = vdwg.mxu0
    %v4376 = vsel %vm1222, %v3958, 0
    %v4379 = vsel %vm1222, %v3959, 0
    %v4382 = vsel %vm1525, %v3975, 0
    %4384 = vmatprep.subr.bf16.mxu0 0
    %4385 = vmatpush1.bf16.msra.mxu0 %v3974
    %4386 = vmatprep.subr.bf16.mxu0 0
    %4387 = vmatpush1.bf16.msra.mxu0 %v4382
    %4388 = vmatprep.subr.bf16.mxu0 0
    %4389 = vmatpush1.bf16.msra.mxu0 0
    %4390 = vmatprep.subr.bf16.mxu0 0
    %4391 = vmatpush1.bf16.msra.mxu0 0
    %4392 = vmatprep.subr.bf16.mxu0 0
    %4393 = vmatpush1.bf16.msra.mxu0 0
    %4394 = vmatprep.subr.bf16.mxu0 0
    %4395 = vmatpush1.bf16.msra.mxu0 0
    %4396 = vmatprep.subr.bf16.mxu0 0
    %4397 = vmatpush1.bf16.msra.mxu0 0
    %4398 = vmatprep.subr.bf16.mxu0 0
    %4399 = vmatpush1.bf16.msra.mxu0 0
    %4400 = vmatprep.subr.bf16.mxu0 0
    %4401 = vmatpush1.bf16.msra.mxu0 0
    %4402 = vmatprep.subr.bf16.mxu0 0
    %4403 = vmatpush1.bf16.msra.mxu0 0
    %4404 = vmatprep.subr.bf16.mxu0 0
    %4405 = vmatpush1.bf16.msra.mxu0 0
    %4406 = vmatprep.subr.bf16.mxu0 0
    %4407 = vmatpush1.bf16.msra.mxu0 0
    %4408 = vmatprep.subr.bf16.mxu0 0
    %4409 = vmatpush1.bf16.msra.mxu0 0
    %4410 = vmatprep.subr.bf16.mxu0 0
    %4411 = vmatpush1.bf16.msra.mxu0 0
    %4412 = vmatprep.subr.bf16.mxu0 0
    %4413 = vmatpush1.bf16.msra.mxu0 0
    %4414 = vmatprep.subr.bf16.mxu0 0
    %4415 = vmatpush1.bf16.msra.mxu0 0
    %4416 = vmatprep.mubr.bf16.mxu0 0
    %4417 = vmatmul.mubr.bf16.gmra.mrb[0].mxu0 %v4376
    %v4418 = vpop.f32.mrb[0].mxu0
    %v4419 = vadd.f32 0.0, %v4418
    %v4420 = vpop.f32.mrb[0].mxu0
    %v4421 = vpop.f32.mrb[0].mxu0
    %v4422 = vadd.f32 0.0, %v4421
    %v4423 = vpop.f32.mrb[0].mxu0
    %4424 = vmatprep.mubr.bf16.mxu0 0
    %4425 = vmatmul.mubr.bf16.gmra.mrb[0].mxu0 %v4379
    %v4426 = vpop.f32.mrb[0].mxu0
    %v4427 = vadd.f32 0.0, %v4426
    %v4428 = vpop.f32.mrb[0].mxu0
    %v4429 = vpop.f32.mrb[0].mxu0
    %v4430 = vpop.f32.mrb[0].mxu0
    %4431 = vdwg.mxu0
    %4438 = vrot.lane.b32.xlu0 %v4134, 16
    %v4439 = vpop.permute.xlu0 %4438
    %4440 = vrot.lane.b32.xlu0 %v4137, 16
    %v4441 = vpop.permute.xlu0 %4440
    %4442 = vrot.lane.b32.xlu0 %v4142, 16
    %v4443 = vpop.permute.xlu0 %4442
    %4444 = vrot.lane.b32.xlu0 %v4191, 16
    %v4445 = vpop.permute.xlu0 %4444
    %4446 = vrot.lane.b32.xlu0 %v4194, 16
    %v4447 = vpop.permute.xlu0 %4446
    %4448 = vrot.lane.b32.xlu0 %v4199, 16
    %v4449 = vpop.permute.xlu0 %4448
    %4462 = vrot.lane.b32.xlu0 %v4248, 32
    %v4463 = vpop.permute.xlu0 %4462
    %4464 = vrot.lane.b32.xlu0 %v4251, 32
    %v4465 = vpop.permute.xlu0 %4464
    %4466 = vrot.lane.b32.xlu0 %v4256, 32
    %v4467 = vpop.permute.xlu0 %4466
    %4468 = vrot.lane.b32.xlu0 %v4305, 32
    %v4469 = vpop.permute.xlu0 %4468
    %4470 = vrot.lane.b32.xlu0 %v4308, 32
    %v4471 = vpop.permute.xlu0 %4470
    %4472 = vrot.lane.b32.xlu0 %v4313, 32
    %v4473 = vpop.permute.xlu0 %4472
    %4486 = vrot.lane.b32.xlu0 %v4362, 48
    %v4487 = vpop.permute.xlu0 %4486
    %4488 = vrot.lane.b32.xlu0 %v4365, 48
    %v4489 = vpop.permute.xlu0 %4488
    %4490 = vrot.lane.b32.xlu0 %v4370, 48
    %v4491 = vpop.permute.xlu0 %4490
    %4492 = vrot.lane.b32.xlu0 %v4419, 48
    %v4493 = vpop.permute.xlu0 %4492
    %4494 = vrot.lane.b32.xlu0 %v4422, 48
    %v4495 = vpop.permute.xlu0 %4494
    %4496 = vrot.lane.b32.xlu0 %v4427, 48
    %v4497 = vpop.permute.xlu0 %4496
    %v4504 = vsel %vm699, %v4020, %v4439
    %v4505 = vsel %vm699, %v4023, %v4441
    %v4506 = vsel %vm699, %v4028, %v4443
    %v4507 = vsel %vm699, %v4077, %v4445
    %v4508 = vsel %vm699, %v4080, %v4447
    %v4509 = vsel %vm699, %v4085, %v4449
    %v4510 = vsel %vm2054, %v4504, %v4463
    %v4511 = vsel %vm2054, %v4505, %v4465
    %v4512 = vsel %vm2054, %v4506, %v4467
    %v4513 = vsel %vm2054, %v4507, %v4469
    %v4514 = vsel %vm2054, %v4508, %v4471
    %v4515 = vsel %vm2054, %v4509, %v4473
    %v4516 = vsel %vm2061, %v4510, %v4487
    %v4517 = vsel %vm2061, %v4511, %v4489
    %v4518 = vsel %vm2061, %v4512, %v4491
    %v4519 = vsel %vm2061, %v4513, %v4493
    %v4520 = vsel %vm2061, %v4514, %v4495
    %v4521 = vsel %vm2061, %v4515, %v4497
    %v4522 = vpack.c.bf16 %v4517, %v4516
    %v4523 = vpack.c.bf16 %v4519, %v4518
    %v4524 = vpack.c.bf16 %v4521, %v4520
    %s4525 = scalar_lea.vmem %s10, 32
    %v4526 = vld [vmem:[%s4525] sm:$0xf]
    %v4527 = vld [vmem:[%s4525 + $0x4] sm:$0xf]
    %v4528 = vld [vmem:[%s4525 + $0x8] sm:$0xf]
    %v4529 = vld [vmem:[%s4525 + $0xc] sm:$0xf]
    %v4530 = vld [vmem:[%s4525 + $0x10] sm:$0xf]
    %v4531 = vld [vmem:[%s4525 + $0x14] sm:$0xf]
    %v4532 = vld [vmem:[%s4525 + $0x18] sm:$0xf]
    %v4533 = vld [vmem:[%s4525 + $0x1c] sm:$0xf]
    %v4542 = vunpack.c.l.b16 %v4526
    %v4543 = vunpack.c.l.b16 %v4527
    %v4544 = vunpack.c.l.b16 %v4528
    %v4545 = vunpack.c.l.b16 %v4529
    %v4546 = vunpack.c.l.b16 %v4530
    %v4547 = vunpack.c.l.b16 %v4531
    %v4548 = vunpack.c.l.b16 %v4532
    %v4549 = vunpack.c.l.b16 %v4533
    %v4550 = vpack.c.b16 %v4543, %v4542
    %v4551 = vpack.c.b16 %v4545, %v4544
    %v4552 = vpack.c.b16 %v4547, %v4546
    %v4553 = vpack.c.b16 %v4549, %v4548
    %v4559 = vsel %vm201, %v4522, 0
    %v4562 = vsel %vm201, %v4523, 0
    %v4565 = vsel %vm201, %v4524, 0
    %4567 = vmatprep.subr.bf16.mxu0 0
    %4568 = vmatpush1.bf16.msra.mxu0 %v4550
    %4569 = vmatprep.subr.bf16.mxu0 0
    %4570 = vmatpush1.bf16.msra.mxu0 %v4551
    %4571 = vmatprep.subr.bf16.mxu0 0
    %4572 = vmatpush1.bf16.msra.mxu0 %v4552
    %4573 = vmatprep.subr.bf16.mxu0 0
    %4574 = vmatpush1.bf16.msra.mxu0 %v4553
    %4575 = vmatprep.subr.bf16.mxu0 0
    %4576 = vmatpush1.bf16.msra.mxu0 0
    %4577 = vmatprep.subr.bf16.mxu0 0
    %4578 = vmatpush1.bf16.msra.mxu0 0
    %4579 = vmatprep.subr.bf16.mxu0 0
    %4580 = vmatpush1.bf16.msra.mxu0 0
    %4581 = vmatprep.subr.bf16.mxu0 0
    %4582 = vmatpush1.bf16.msra.mxu0 0
    %4583 = vmatprep.subr.bf16.mxu0 0
    %4584 = vmatpush1.bf16.msra.mxu0 0
    %4585 = vmatprep.subr.bf16.mxu0 0
    %4586 = vmatpush1.bf16.msra.mxu0 0
    %4587 = vmatprep.subr.bf16.mxu0 0
    %4588 = vmatpush1.bf16.msra.mxu0 0
    %4589 = vmatprep.subr.bf16.mxu0 0
    %4590 = vmatpush1.bf16.msra.mxu0 0
    %4591 = vmatprep.subr.bf16.mxu0 0
    %4592 = vmatpush1.bf16.msra.mxu0 0
    %4593 = vmatprep.subr.bf16.mxu0 0
    %4594 = vmatpush1.bf16.msra.mxu0 0
    %4595 = vmatprep.subr.bf16.mxu0 0
    %4596 = vmatpush1.bf16.msra.mxu0 0
    %4597 = vmatprep.subr.bf16.mxu0 0
    %4598 = vmatpush1.bf16.msra.mxu0 0
    %4599 = vmatprep.mubr.bf16.mxu0 0
    %4600 = vmatmul.mubr.bf16.gmra.mrb[0].mxu0 %v4559
    %v4601 = vpop.f32.mrb[0].mxu0
    %v4602 = vadd.f32 0.0, %v4601
    %v4603 = vpop.f32.mrb[0].mxu0
    %v4604 = vpop.f32.mrb[0].mxu0
    %v4605 = vadd.f32 0.0, %v4604
    %v4606 = vpop.f32.mrb[0].mxu0
    %4607 = vmatprep.mubr.bf16.mxu0 0
    %4608 = vmatmul.mubr.bf16.gmra.mrb[0].mxu0 %v4562
    %v4609 = vpop.f32.mrb[0].mxu0
    %v4610 = vadd.f32 0.0, %v4609
    %v4611 = vpop.f32.mrb[0].mxu0
    %v4612 = vpop.f32.mrb[0].mxu0
    %v4613 = vadd.f32 0.0, %v4612
    %v4614 = vpop.f32.mrb[0].mxu0
    %4615 = vmatprep.mubr.bf16.mxu0 0
    %4616 = vmatmul.mubr.bf16.gmra.mrb[0].mxu0 %v4565
    %v4617 = vpop.f32.mrb[0].mxu0
    %v4618 = vadd.f32 0.0, %v4617
    %v4619 = vpop.f32.mrb[0].mxu0
    %v4620 = vpop.f32.mrb[0].mxu0
    %v4621 = vadd.f32 0.0, %v4620
    %v4622 = vpop.f32.mrb[0].mxu0
    %4623 = vdwg.mxu0
    %v4624 = vadd.f32 %v2727, %v4602
    %v4625 = vadd.f32 %v2728, %v4605
    %v4626 = vadd.f32 %v2729, %v4610
    %v4627 = vadd.f32 %v2730, %v4613
    %v4628 = vadd.f32 %v2731, %v4618
    %v4629 = vadd.f32 %v2732, %v4621
    %s4630 = scalar_lea.vmem %s11, 1
    %v4631 = vld [vmem:[%s4630] sm:$0x1]
    %v4633 = vlaneseq
    %v4634 = vshrl.u32 %v4633, 7
    %v4635 = vsub.s32 0, %v4634
    %v4636 = vrot.slane %v4631, %v4635
    %v4638 = vadd.f32 %v4624, %v4636
    %v4639 = vadd.f32 %v4625, %v4636
    %v4640 = vadd.f32 %v4626, %v4636
    %v4641 = vadd.f32 %v4627, %v4636
    %v4642 = vadd.f32 %v4628, %v4636
    %v4643 = vadd.f32 %v4629, %v4636
    %s4644 = scalar_lea.vmem %s12, 1
    %v4645 = vld [vmem:[%s4644] sm:$0x1]
    %s4646 = scalar_lea.vmem %s13, 1
    %v4647 = vld [vmem:[%s4646] sm:$0x1]
    %v4648 = vsel %vm201, %v4638, 0.0
    %4649 = vadd.xlane.f32.xlu0 %v4648
    %v4650 = vpop.xlane.xlu0 %4649
    %v4651 = vsel %vm201, %v4639, 0.0
    %4652 = vadd.xlane.f32.xlu0 %v4651
    %v4653 = vpop.xlane.xlu0 %4652
    %v4654 = vsel %vm201, %v4640, 0.0
    %4655 = vadd.xlane.f32.xlu0 %v4654
    %v4656 = vpop.xlane.xlu0 %4655
    %v4657 = vsel %vm201, %v4641, 0.0
    %4658 = vadd.xlane.f32.xlu0 %v4657
    %v4659 = vpop.xlane.xlu0 %4658
    %v4660 = vsel %vm201, %v4642, 0.0
    %4661 = vadd.xlane.f32.xlu0 %v4660
    %v4662 = vpop.xlane.xlu0 %4661
    %v4663 = vsel %vm201, %v4643, 0.0
    %4664 = vadd.xlane.f32.xlu0 %v4663
    %v4665 = vpop.xlane.xlu0 %4664
    %v4666 = vmul.f32 %v4650, %v297
    %v4667 = vmul.f32 %v4653, %v297
    %v4668 = vmul.f32 %v4656, %v297
    %v4669 = vmul.f32 %v4659, %v297
    %v4670 = vmul.f32 %v4662, %v297
    %v4671 = vmul.f32 %v4665, %v297
    %v4672 = vsub.f32 %v4638, %v4666
    %v4673 = vsub.f32 %v4639, %v4667
    %v4674 = vsub.f32 %v4640, %v4668
    %v4675 = vsub.f32 %v4641, %v4669
    %v4676 = vsub.f32 %v4642, %v4670
    %v4677 = vsub.f32 %v4643, %v4671
    %v4678 = vmul.f32 %v4672, %v4672
    %v4679 = vmul.f32 %v4673, %v4673
    %v4680 = vmul.f32 %v4674, %v4674
    %v4681 = vmul.f32 %v4675, %v4675
    %v4682 = vmul.f32 %v4676, %v4676
    %v4683 = vmul.f32 %v4677, %v4677
    %v4684 = vsel %vm201, %v4678, 0.0
    %4685 = vadd.xlane.f32.xlu0 %v4684
    %v4686 = vpop.xlane.xlu0 %4685
    %v4687 = vsel %vm201, %v4679, 0.0
    %4688 = vadd.xlane.f32.xlu0 %v4687
    %v4689 = vpop.xlane.xlu0 %4688
    %v4690 = vsel %vm201, %v4680, 0.0
    %4691 = vadd.xlane.f32.xlu0 %v4690
    %v4692 = vpop.xlane.xlu0 %4691
    %v4693 = vsel %vm201, %v4681, 0.0
    %4694 = vadd.xlane.f32.xlu0 %v4693
    %v4695 = vpop.xlane.xlu0 %4694
    %v4696 = vsel %vm201, %v4682, 0.0
    %4697 = vadd.xlane.f32.xlu0 %v4696
    %v4698 = vpop.xlane.xlu0 %4697
    %v4699 = vsel %vm201, %v4683, 0.0
    %4700 = vadd.xlane.f32.xlu0 %v4699
    %v4701 = vpop.xlane.xlu0 %4700
    %v4702 = vmul.f32 %v4686, %v297
    %v4703 = vmul.f32 %v4689, %v297
    %v4704 = vmul.f32 %v4692, %v297
    %v4705 = vmul.f32 %v4695, %v297
    %v4706 = vmul.f32 %v4698, %v297
    %v4707 = vmul.f32 %v4701, %v297
    %v4708 = vadd.f32 %v4702, 1e-05
    %v4709 = vadd.f32 %v4703, 1e-05
    %v4710 = vadd.f32 %v4704, 1e-05
    %v4711 = vadd.f32 %v4705, 1e-05
    %v4712 = vadd.f32 %v4706, 1e-05
    %v4713 = vadd.f32 %v4707, 1e-05
    %v4714 = vrsqrt.pop %v4708
    %v4715 = vrsqrt.pop %v4709
    %v4716 = vrsqrt.pop %v4710
    %v4717 = vrsqrt.pop %v4711
    %v4718 = vrsqrt.pop %v4712
    %v4719 = vrsqrt.pop %v4713
    %v4720 = vmul.f32 %v4672, %v4714
    %v4721 = vmul.f32 %v4673, %v4715
    %v4722 = vmul.f32 %v4674, %v4716
    %v4723 = vmul.f32 %v4675, %v4717
    %v4724 = vmul.f32 %v4676, %v4718
    %v4725 = vmul.f32 %v4677, %v4719
    %v4727 = vlaneseq
    %v4728 = vshrl.u32 %v4727, 7
    %v4729 = vsub.s32 0, %v4728
    %v4730 = vrot.slane %v4645, %v4729
    %v4732 = vmul.f32 %v4720, %v4730
    %v4733 = vmul.f32 %v4721, %v4730
    %v4734 = vmul.f32 %v4722, %v4730
    %v4735 = vmul.f32 %v4723, %v4730
    %v4736 = vmul.f32 %v4724, %v4730
    %v4737 = vmul.f32 %v4725, %v4730
    %v4739 = vlaneseq
    %v4740 = vshrl.u32 %v4739, 7
    %v4741 = vsub.s32 0, %v4740
    %v4742 = vrot.slane %v4647, %v4741
    %v4744 = vadd.f32 %v4732, %v4742
    %v4745 = vadd.f32 %v4733, %v4742
    %v4746 = vadd.f32 %v4734, %v4742
    %v4747 = vadd.f32 %v4735, %v4742
    %v4748 = vadd.f32 %v4736, %v4742
    %v4749 = vadd.f32 %v4737, %v4742
    %v4750 = vpack.c.bf16 %v4745, %v4744
    %v4751 = vpack.c.bf16 %v4747, %v4746
    %v4752 = vpack.c.bf16 %v4749, %v4748
    %s4753 = scalar_lea.vmem %s14, 64
    %v4754 = vld [vmem:[%s4753] sm:$0xff]
    %v4755 = vld [vmem:[%s4753 + $0x8] sm:$0xff]
    %v4756 = vld [vmem:[%s4753 + $0x10] sm:$0xff]
    %v4757 = vld [vmem:[%s4753 + $0x18] sm:$0xff]
    %v4758 = vld [vmem:[%s4753 + $0x20] sm:$0xff]
    %v4759 = vld [vmem:[%s4753 + $0x28] sm:$0xff]
    %v4760 = vld [vmem:[%s4753 + $0x30] sm:$0xff]
    %v4761 = vld [vmem:[%s4753 + $0x38] sm:$0xff]
    %s4762 = scalar_lea.vmem %s15, 2
    %v4763 = vld [vmem:[%s4762] sm:$0x3]
    %v4765 = vlaneseq
    %v4766 = vshrl.u32 %v4765, 7
    %v4767 = vsub.s32 0, %v4766
    %v4768 = vrot.slane %v4763, %v4767
    %v4769 = vlaneseq
    %v4770 = vshrl.u32 %v4769, 7
    %v4771 = vsub.s32 1, %v4770
    %v4772 = vrot.slane %v4763, %v4771
    %v4783 = vunpack.c.l.b16 %v4754
    %v4784 = vunpack.c.h.b16 %v4754
    %v4785 = vunpack.c.l.b16 %v4755
    %v4786 = vunpack.c.h.b16 %v4755
    %v4787 = vunpack.c.l.b16 %v4756
    %v4788 = vunpack.c.h.b16 %v4756
    %v4789 = vunpack.c.l.b16 %v4757
    %v4790 = vunpack.c.h.b16 %v4757
    %v4791 = vunpack.c.l.b16 %v4758
    %v4792 = vunpack.c.h.b16 %v4758
    %v4793 = vunpack.c.l.b16 %v4759
    %v4794 = vunpack.c.h.b16 %v4759
    %v4795 = vunpack.c.l.b16 %v4760
    %v4796 = vunpack.c.h.b16 %v4760
    %v4797 = vunpack.c.l.b16 %v4761
    %v4798 = vunpack.c.h.b16 %v4761
    %v4799 = vpack.c.b16 %v4785, %v4783
    %v4800 = vpack.c.b16 %v4786, %v4784
    %v4801 = vpack.c.b16 %v4789, %v4787
    %v4802 = vpack.c.b16 %v4790, %v4788
    %v4803 = vpack.c.b16 %v4793, %v4791
    %v4804 = vpack.c.b16 %v4794, %v4792
    %v4805 = vpack.c.b16 %v4797, %v4795
    %v4806 = vpack.c.b16 %v4798, %v4796
    %v4816 = vsel %vm201, %v4750, 0
    %v4819 = vsel %vm201, %v4751, 0
    %v4822 = vsel %vm201, %v4752, 0
    %4824 = vmatprep.subr.bf16.mxu0 %v4800
    %4825 = vmatpush1.bf16.msra.mxu0 %v4799
    %4826 = vmatprep.subr.bf16.mxu0 %v4802
    %4827 = vmatpush1.bf16.msra.mxu0 %v4801
    %4828 = vmatprep.subr.bf16.mxu0 %v4804
    %4829 = vmatpush1.bf16.msra.mxu0 %v4803
    %4830 = vmatprep.subr.bf16.mxu0 %v4806
    %4831 = vmatpush1.bf16.msra.mxu0 %v4805
    %4832 = vmatprep.subr.bf16.mxu0 0
    %4833 = vmatpush1.bf16.msra.mxu0 0
    %4834 = vmatprep.subr.bf16.mxu0 0
    %4835 = vmatpush1.bf16.msra.mxu0 0
    %4836 = vmatprep.subr.bf16.mxu0 0
    %4837 = vmatpush1.bf16.msra.mxu0 0
    %4838 = vmatprep.subr.bf16.mxu0 0
    %4839 = vmatpush1.bf16.msra.mxu0 0
    %4840 = vmatprep.subr.bf16.mxu0 0
    %4841 = vmatpush1.bf16.msra.mxu0 0
    %4842 = vmatprep.subr.bf16.mxu0 0
    %4843 = vmatpush1.bf16.msra.mxu0 0
    %4844 = vmatprep.subr.bf16.mxu0 0
    %4845 = vmatpush1.bf16.msra.mxu0 0
    %4846 = vmatprep.subr.bf16.mxu0 0
    %4847 = vmatpush1.bf16.msra.mxu0 0
    %4848 = vmatprep.subr.bf16.mxu0 0
    %4849 = vmatpush1.bf16.msra.mxu0 0
    %4850 = vmatprep.subr.bf16.mxu0 0
    %4851 = vmatpush1.bf16.msra.mxu0 0
    %4852 = vmatprep.subr.bf16.mxu0 0
    %4853 = vmatpush1.bf16.msra.mxu0 0
    %4854 = vmatprep.subr.bf16.mxu0 0
    %4855 = vmatpush1.bf16.msra.mxu0 0
    %4856 = vmatprep.mubr.bf16.mxu0 0
    %4857 = vmatmul.mubr.bf16.gmra.mrb[0].mxu0 %v4816
    %v4858 = vpop.f32.mrb[0].mxu0
    %v4859 = vadd.f32 %v4768, %v4858
    %v4860 = vpop.f32.mrb[0].mxu0
    %v4861 = vadd.f32 %v4772, %v4860
    %v4862 = vpop.f32.mrb[0].mxu0
    %v4863 = vadd.f32 %v4768, %v4862
    %v4864 = vpop.f32.mrb[0].mxu0
    %v4865 = vadd.f32 %v4772, %v4864
    %4866 = vmatprep.mubr.bf16.mxu0 0
    %4867 = vmatmul.mubr.bf16.gmra.mrb[0].mxu0 %v4819
    %v4868 = vpop.f32.mrb[0].mxu0
    %v4869 = vadd.f32 %v4768, %v4868
    %v4870 = vpop.f32.mrb[0].mxu0
    %v4871 = vadd.f32 %v4772, %v4870
    %v4872 = vpop.f32.mrb[0].mxu0
    %v4873 = vadd.f32 %v4768, %v4872
    %v4874 = vpop.f32.mrb[0].mxu0
    %v4875 = vadd.f32 %v4772, %v4874
    %4876 = vmatprep.mubr.bf16.mxu0 0
    %4877 = vmatmul.mubr.bf16.gmra.mrb[0].mxu0 %v4822
    %v4878 = vpop.f32.mrb[0].mxu0
    %v4879 = vadd.f32 %v4768, %v4878
    %v4880 = vpop.f32.mrb[0].mxu0
    %v4881 = vadd.f32 %v4772, %v4880
    %v4882 = vpop.f32.mrb[0].mxu0
    %v4883 = vadd.f32 %v4768, %v4882
    %v4884 = vpop.f32.mrb[0].mxu0
    %v4885 = vadd.f32 %v4772, %v4884
    %4886 = vdwg.mxu0
    %v4887 = vmul.f32 %v4859, 1.702
    %v4888 = vmul.f32 %v4861, 1.702
    %v4889 = vmul.f32 %v4863, 1.702
    %v4890 = vmul.f32 %v4865, 1.702
    %v4891 = vmul.f32 %v4869, 1.702
    %v4892 = vmul.f32 %v4871, 1.702
    %v4893 = vmul.f32 %v4873, 1.702
    %v4894 = vmul.f32 %v4875, 1.702
    %v4895 = vmul.f32 %v4879, 1.702
    %v4896 = vmul.f32 %v4881, 1.702
    %v4897 = vmul.f32 %v4883, 1.702
    %v4898 = vmul.f32 %v4885, 1.702
    %v4899 = vxor.u32 %v4887, 2147483648
    %v4900 = vxor.u32 %v4888, 2147483648
    %v4901 = vxor.u32 %v4889, 2147483648
    %v4902 = vxor.u32 %v4890, 2147483648
    %v4903 = vxor.u32 %v4891, 2147483648
    %v4904 = vxor.u32 %v4892, 2147483648
    %v4905 = vxor.u32 %v4893, 2147483648
    %v4906 = vxor.u32 %v4894, 2147483648
    %v4907 = vxor.u32 %v4895, 2147483648
    %v4908 = vxor.u32 %v4896, 2147483648
    %v4909 = vxor.u32 %v4897, 2147483648
    %v4910 = vxor.u32 %v4898, 2147483648
    %v4911 = vmul.f32 %v4899, 1.442695
    %v4912 = vpow.pop %v4911
    %v4913 = vmul.f32 %v4900, 1.442695
    %v4914 = vpow.pop %v4913
    %v4915 = vmul.f32 %v4901, 1.442695
    %v4916 = vpow.pop %v4915
    %v4917 = vmul.f32 %v4902, 1.442695
    %v4918 = vpow.pop %v4917
    %v4919 = vmul.f32 %v4903, 1.442695
    %v4920 = vpow.pop %v4919
    %v4921 = vmul.f32 %v4904, 1.442695
    %v4922 = vpow.pop %v4921
    %v4923 = vmul.f32 %v4905, 1.442695
    %v4924 = vpow.pop %v4923
    %v4925 = vmul.f32 %v4906, 1.442695
    %v4926 = vpow.pop %v4925
    %v4927 = vmul.f32 %v4907, 1.442695
    %v4928 = vpow.pop %v4927
    %v4929 = vmul.f32 %v4908, 1.442695
    %v4930 = vpow.pop %v4929
    %v4931 = vmul.f32 %v4909, 1.442695
    %v4932 = vpow.pop %v4931
    %v4933 = vmul.f32 %v4910, 1.442695
    %v4934 = vpow.pop %v4933
    %v4935 = vadd.f32 %v4912, 1.0
    %v4936 = vadd.f32 %v4914, 1.0
    %v4937 = vadd.f32 %v4916, 1.0
    %v4938 = vadd.f32 %v4918, 1.0
    %v4939 = vadd.f32 %v4920, 1.0
    %v4940 = vadd.f32 %v4922, 1.0
    %v4941 = vadd.f32 %v4924, 1.0
    %v4942 = vadd.f32 %v4926, 1.0
    %v4943 = vadd.f32 %v4928, 1.0
    %v4944 = vadd.f32 %v4930, 1.0
    %v4945 = vadd.f32 %v4932, 1.0
    %v4946 = vadd.f32 %v4934, 1.0
    %v4947 = vrcp.pop %v4935
    %v4948 = vmul.f32 1.0, %v4947
    %v4949 = vrcp.pop %v4936
    %v4950 = vmul.f32 1.0, %v4949
    %v4951 = vrcp.pop %v4937
    %v4952 = vmul.f32 1.0, %v4951
    %v4953 = vrcp.pop %v4938
    %v4954 = vmul.f32 1.0, %v4953
    %v4955 = vrcp.pop %v4939
    %v4956 = vmul.f32 1.0, %v4955
    %v4957 = vrcp.pop %v4940
    %v4958 = vmul.f32 1.0, %v4957
    %v4959 = vrcp.pop %v4941
    %v4960 = vmul.f32 1.0, %v4959
    %v4961 = vrcp.pop %v4942
    %v4962 = vmul.f32 1.0, %v4961
    %v4963 = vrcp.pop %v4943
    %v4964 = vmul.f32 1.0, %v4963
    %v4965 = vrcp.pop %v4944
    %v4966 = vmul.f32 1.0, %v4965
    %v4967 = vrcp.pop %v4945
    %v4968 = vmul.f32 1.0, %v4967
    %v4969 = vrcp.pop %v4946
    %v4970 = vmul.f32 1.0, %v4969
    %v4971 = vmul.f32 %v4859, %v4948
    %v4972 = vmul.f32 %v4861, %v4950
    %v4973 = vmul.f32 %v4863, %v4952
    %v4974 = vmul.f32 %v4865, %v4954
    %v4975 = vmul.f32 %v4869, %v4956
    %v4976 = vmul.f32 %v4871, %v4958
    %v4977 = vmul.f32 %v4873, %v4960
    %v4978 = vmul.f32 %v4875, %v4962
    %v4979 = vmul.f32 %v4879, %v4964
    %v4980 = vmul.f32 %v4881, %v4966
    %v4981 = vmul.f32 %v4883, %v4968
    %v4982 = vmul.f32 %v4885, %v4970
    %v4983 = vpack.c.bf16 %v4973, %v4971
    %v4984 = vpack.c.bf16 %v4974, %v4972
    %v4985 = vpack.c.bf16 %v4977, %v4975
    %v4986 = vpack.c.bf16 %v4978, %v4976
    %v4987 = vpack.c.bf16 %v4981, %v4979
    %v4988 = vpack.c.bf16 %v4982, %v4980
    %s4989 = scalar_lea.vmem %s16, 128
    %v4990 = vld [vmem:[%s4989] sm:$0xf]
    %v4991 = vld [vmem:[%s4989 + $0x4] sm:$0xf]
    %v4992 = vld [vmem:[%s4989 + $0x8] sm:$0xf]
    %v4993 = vld [vmem:[%s4989 + $0xc] sm:$0xf]
    %v4994 = vld [vmem:[%s4989 + $0x10] sm:$0xf]
    %v4995 = vld [vmem:[%s4989 + $0x14] sm:$0xf]
    %v4996 = vld [vmem:[%s4989 + $0x18] sm:$0xf]
    %v4997 = vld [vmem:[%s4989 + $0x1c] sm:$0xf]
    %v4998 = vld [vmem:[%s4989 + $0x20] sm:$0xf]
    %v4999 = vld [vmem:[%s4989 + $0x24] sm:$0xf]
    %v5000 = vld [vmem:[%s4989 + $0x28] sm:$0xf]
    %v5001 = vld [vmem:[%s4989 + $0x2c] sm:$0xf]
    %v5002 = vld [vmem:[%s4989 + $0x30] sm:$0xf]
    %v5003 = vld [vmem:[%s4989 + $0x34] sm:$0xf]
    %v5004 = vld [vmem:[%s4989 + $0x38] sm:$0xf]
    %v5005 = vld [vmem:[%s4989 + $0x3c] sm:$0xf]
    %v5006 = vld [vmem:[%s4989 + $0x40] sm:$0xf]
    %v5007 = vld [vmem:[%s4989 + $0x44] sm:$0xf]
    %v5008 = vld [vmem:[%s4989 + $0x48] sm:$0xf]
    %v5009 = vld [vmem:[%s4989 + $0x4c] sm:$0xf]
    %v5010 = vld [vmem:[%s4989 + $0x50] sm:$0xf]
    %v5011 = vld [vmem:[%s4989 + $0x54] sm:$0xf]
    %v5012 = vld [vmem:[%s4989 + $0x58] sm:$0xf]
    %v5013 = vld [vmem:[%s4989 + $0x5c] sm:$0xf]
    %v5014 = vld [vmem:[%s4989 + $0x60] sm:$0xf]
    %v5015 = vld [vmem:[%s4989 + $0x64] sm:$0xf]
    %v5016 = vld [vmem:[%s4989 + $0x68] sm:$0xf]
    %v5017 = vld [vmem:[%s4989 + $0x6c] sm:$0xf]
    %v5018 = vld [vmem:[%s4989 + $0x70] sm:$0xf]
    %v5019 = vld [vmem:[%s4989 + $0x74] sm:$0xf]
    %v5020 = vld [vmem:[%s4989 + $0x78] sm:$0xf]
    %v5021 = vld [vmem:[%s4989 + $0x7c] sm:$0xf]
    %v5054 = vunpack.c.l.b16 %v4990
    %v5055 = vunpack.c.l.b16 %v4991
    %v5056 = vunpack.c.l.b16 %v4992
    %v5057 = vunpack.c.l.b16 %v4993
    %v5058 = vunpack.c.l.b16 %v4994
    %v5059 = vunpack.c.l.b16 %v4995
    %v5060 = vunpack.c.l.b16 %v4996
    %v5061 = vunpack.c.l.b16 %v4997
    %v5062 = vunpack.c.l.b16 %v4998
    %v5063 = vunpack.c.l.b16 %v4999
    %v5064 = vunpack.c.l.b16 %v5000
    %v5065 = vunpack.c.l.b16 %v5001
    %v5066 = vunpack.c.l.b16 %v5002
    %v5067 = vunpack.c.l.b16 %v5003
    %v5068 = vunpack.c.l.b16 %v5004
    %v5069 = vunpack.c.l.b16 %v5005
    %v5070 = vunpack.c.l.b16 %v5006
    %v5071 = vunpack.c.l.b16 %v5007
    %v5072 = vunpack.c.l.b16 %v5008
    %v5073 = vunpack.c.l.b16 %v5009
    %v5074 = vunpack.c.l.b16 %v5010
    %v5075 = vunpack.c.l.b16 %v5011
    %v5076 = vunpack.c.l.b16 %v5012
    %v5077 = vunpack.c.l.b16 %v5013
    %v5078 = vunpack.c.l.b16 %v5014
    %v5079 = vunpack.c.l.b16 %v5015
    %v5080 = vunpack.c.l.b16 %v5016
    %v5081 = vunpack.c.l.b16 %v5017
    %v5082 = vunpack.c.l.b16 %v5018
    %v5083 = vunpack.c.l.b16 %v5019
    %v5084 = vunpack.c.l.b16 %v5020
    %v5085 = vunpack.c.l.b16 %v5021
    %v5086 = vpack.c.b16 %v5055, %v5054
    %v5087 = vpack.c.b16 %v5057, %v5056
    %v5088 = vpack.c.b16 %v5059, %v5058
    %v5089 = vpack.c.b16 %v5061, %v5060
    %v5090 = vpack.c.b16 %v5063, %v5062
    %v5091 = vpack.c.b16 %v5065, %v5064
    %v5092 = vpack.c.b16 %v5067, %v5066
    %v5093 = vpack.c.b16 %v5069, %v5068
    %v5094 = vpack.c.b16 %v5071, %v5070
    %v5095 = vpack.c.b16 %v5073, %v5072
    %v5096 = vpack.c.b16 %v5075, %v5074
    %v5097 = vpack.c.b16 %v5077, %v5076
    %v5098 = vpack.c.b16 %v5079, %v5078
    %v5099 = vpack.c.b16 %v5081, %v5080
    %v5100 = vpack.c.b16 %v5083, %v5082
    %v5101 = vpack.c.b16 %v5085, %v5084
    %5118 = vmatprep.subr.bf16.mxu0 0
    %5119 = vmatpush1.bf16.msra.mxu0 %v5086
    %5120 = vmatprep.subr.bf16.mxu0 0
    %5121 = vmatpush1.bf16.msra.mxu0 %v5087
    %5122 = vmatprep.subr.bf16.mxu0 0
    %5123 = vmatpush1.bf16.msra.mxu0 %v5088
    %5124 = vmatprep.subr.bf16.mxu0 0
    %5125 = vmatpush1.bf16.msra.mxu0 %v5089
    %5126 = vmatprep.subr.bf16.mxu0 0
    %5127 = vmatpush1.bf16.msra.mxu0 %v5090
    %5128 = vmatprep.subr.bf16.mxu0 0
    %5129 = vmatpush1.bf16.msra.mxu0 %v5091
    %5130 = vmatprep.subr.bf16.mxu0 0
    %5131 = vmatpush1.bf16.msra.mxu0 %v5092
    %5132 = vmatprep.subr.bf16.mxu0 0
    %5133 = vmatpush1.bf16.msra.mxu0 %v5093
    %5134 = vmatprep.subr.bf16.mxu0 0
    %5135 = vmatpush1.bf16.msra.mxu0 %v5094
    %5136 = vmatprep.subr.bf16.mxu0 0
    %5137 = vmatpush1.bf16.msra.mxu0 %v5095
    %5138 = vmatprep.subr.bf16.mxu0 0
    %5139 = vmatpush1.bf16.msra.mxu0 %v5096
    %5140 = vmatprep.subr.bf16.mxu0 0
    %5141 = vmatpush1.bf16.msra.mxu0 %v5097
    %5142 = vmatprep.subr.bf16.mxu0 0
    %5143 = vmatpush1.bf16.msra.mxu0 %v5098
    %5144 = vmatprep.subr.bf16.mxu0 0
    %5145 = vmatpush1.bf16.msra.mxu0 %v5099
    %5146 = vmatprep.subr.bf16.mxu0 0
    %5147 = vmatpush1.bf16.msra.mxu0 %v5100
    %5148 = vmatprep.subr.bf16.mxu0 0
    %5149 = vmatpush1.bf16.msra.mxu0 %v5101
    %5150 = vmatprep.mubr.bf16.mxu0 %v4984
    %5151 = vmatmul.mubr.bf16.gmra.mrb[0].mxu0 %v4983
    %v5152 = vpop.f32.mrb[0].mxu0
    %v5153 = vadd.f32 0.0, %v5152
    %v5154 = vpop.f32.mrb[0].mxu0
    %v5155 = vpop.f32.mrb[0].mxu0
    %v5156 = vadd.f32 0.0, %v5155
    %v5157 = vpop.f32.mrb[0].mxu0
    %5158 = vmatprep.mubr.bf16.mxu0 %v4986
    %5159 = vmatmul.mubr.bf16.gmra.mrb[0].mxu0 %v4985
    %v5160 = vpop.f32.mrb[0].mxu0
    %v5161 = vadd.f32 0.0, %v5160
    %v5162 = vpop.f32.mrb[0].mxu0
    %v5163 = vpop.f32.mrb[0].mxu0
    %v5164 = vadd.f32 0.0, %v5163
    %v5165 = vpop.f32.mrb[0].mxu0
    %5166 = vmatprep.mubr.bf16.mxu0 %v4988
    %5167 = vmatmul.mubr.bf16.gmra.mrb[0].mxu0 %v4987
    %v5168 = vpop.f32.mrb[0].mxu0
    %v5169 = vadd.f32 0.0, %v5168
    %v5170 = vpop.f32.mrb[0].mxu0
    %v5171 = vpop.f32.mrb[0].mxu0
    %v5172 = vadd.f32 0.0, %v5171
    %v5173 = vpop.f32.mrb[0].mxu0
    %5174 = vdwg.mxu0
    %v5175 = vadd.f32 %v4638, %v5153
    %v5176 = vadd.f32 %v4639, %v5156
    %v5177 = vadd.f32 %v4640, %v5161
    %v5178 = vadd.f32 %v4641, %v5164
    %v5179 = vadd.f32 %v4642, %v5169
    %v5180 = vadd.f32 %v4643, %v5172
    %s5181 = scalar_lea.vmem %s17, 1
    %v5182 = vld [vmem:[%s5181] sm:$0x1]
    %v5184 = vlaneseq
    %v5185 = vshrl.u32 %v5184, 7
    %v5186 = vsub.s32 0, %v5185
    %v5187 = vrot.slane %v5182, %v5186
    %v5189 = vadd.f32 %v5175, %v5187
    %v5190 = vadd.f32 %v5176, %v5187
    %v5191 = vadd.f32 %v5177, %v5187
    %v5192 = vadd.f32 %v5178, %v5187
    %v5193 = vadd.f32 %v5179, %v5187
    %v5194 = vadd.f32 %v5180, %v5187
    %v5195 = vld [vmem:[%s4] sm:$0xff]
    %v5196 = vld [vmem:[%s4 + $0x8] sm:$0xff]
    %v5197 = vld [vmem:[%s4 + $0x10] sm:$0xff]
    %v5198 = vld [vmem:[%s4 + $0x18] sm:$0xff]
    %v5199 = vld [vmem:[%s4 + $0x20] sm:$0xff]
    %v5200 = vld [vmem:[%s4 + $0x28] sm:$0xff]
    %5202 = vset.pattern.permute.xlu0 0
    %5203 = vperm.xlu0 %5202, %v5195
    %v5204 = vpop.permute.xlu0 %5203
    %5207 = vset.pattern.permute.xlu0 0
    %5208 = vperm.xlu0 %5207, %v5196
    %v5209 = vpop.permute.xlu0 %5208
    %5212 = vset.pattern.permute.xlu0 0
    %5213 = vperm.xlu0 %5212, %v5197
    %v5214 = vpop.permute.xlu0 %5213
    %5217 = vset.pattern.permute.xlu0 0
    %5218 = vperm.xlu0 %5217, %v5198
    %v5219 = vpop.permute.xlu0 %5218
    %5222 = vset.pattern.permute.xlu0 0
    %5223 = vperm.xlu0 %5222, %v5199
    %v5224 = vpop.permute.xlu0 %5223
    %5227 = vset.pattern.permute.xlu0 0
    %5228 = vperm.xlu0 %5227, %v5200
    %v5229 = vpop.permute.xlu0 %5228
    %v5231 = vmul.f32 %v5189, %v5204
    %v5232 = vmul.f32 %v5190, %v5209
    %v5233 = vmul.f32 %v5191, %v5214
    %v5234 = vmul.f32 %v5192, %v5219
    %v5235 = vmul.f32 %v5193, %v5224
    %v5236 = vmul.f32 %v5194, %v5229
    %v5237 = vsel %vm201, %v5231, 0.0
    %v5238 = vsel %vm201, %v5232, 0.0
    %v5239 = vadd.f32 %v5237, %v5238
    %v5240 = vsel %vm201, %v5233, 0.0
    %v5241 = vadd.f32 %v5239, %v5240
    %v5242 = vrot.slane %v5241, 4
    %v5243 = vadd.f32 %v5241, %v5242
    %v5244 = vrot.slane %v5243, 2
    %v5245 = vadd.f32 %v5243, %v5244
    %v5246 = vrot.slane %v5245, 1
    %v5247 = vadd.f32 %v5245, %v5246
    %v5248 = vsel %vm201, %v5234, 0.0
    %v5249 = vsel %vm201, %v5235, 0.0
    %v5250 = vadd.f32 %v5248, %v5249
    %v5251 = vsel %vm201, %v5236, 0.0
    %v5252 = vadd.f32 %v5250, %v5251
    %v5253 = vrot.slane %v5252, 4
    %v5254 = vadd.f32 %v5252, %v5253
    %v5255 = vrot.slane %v5254, 2
    %v5256 = vadd.f32 %v5254, %v5255
    %v5257 = vrot.slane %v5256, 1
    %v5258 = vadd.f32 %v5256, %v5257
    %v5259 = vld [vmem:[%s18] sm:$0x1]
    %v5260 = vld [vmem:[%s19] sm:$0x1]
    %vm5263 = vcmask 1041409
    %v5264 = vsel %vm5263, %v5258, %v5247
    %vm5266 = vcmask 517120
    %v5267 = vsel %vm5266, %v5264, 0.0
    %5268 = vadd.xlane.f32.xlu0 %v5267
    %v5269 = vpop.xlane.xlu0 %5268
    %v5270 = vmul.f32 %v5269, %v297
    %v5272 = vrot.slane %v5270, 1
    %v5275 = vsub.f32 %v5247, %v5270
    %v5276 = vsub.f32 %v5258, %v5272
    %v5277 = vmul.f32 %v5275, %v5275
    %v5278 = vmul.f32 %v5276, %v5276
    %v5281 = vrot.slane %v5278, 7
    %v5282 = vsel %vm5263, %v5281, %v5277
    %v5284 = vsel %vm5266, %v5282, 0.0
    %5285 = vadd.xlane.f32.xlu0 %v5284
    %v5286 = vpop.xlane.xlu0 %5285
    %v5287 = vmul.f32 %v5286, %v297
    %v5288 = vadd.f32 %v5287, 1e-05
    %v5289 = vrsqrt.pop %v5288
    %v5291 = vrot.slane %v5289, 1
    %v5294 = vmul.f32 %v5275, %v5289
    %v5295 = vmul.f32 %v5276, %v5291
    %v5297 = vlaneseq
    %v5298 = vshrl.u32 %v5297, 7
    %v5299 = vsub.s32 0, %v5298
    %v5300 = vrot.slane %v5259, %v5299
    %v5302 = vmul.f32 %v5294, %v5300
    %v5303 = vmul.f32 %v5295, %v5300
    %v5305 = vlaneseq
    %v5306 = vshrl.u32 %v5305, 7
    %v5307 = vsub.s32 0, %v5306
    %v5308 = vrot.slane %v5260, %v5307
    %v5310 = vadd.f32 %v5302, %v5308
    %v5311 = vadd.f32 %v5303, %v5308
    %v5312 = vpack.c.bf16 %v5310, %v5310
    %v5313 = vpack.c.bf16 %v5311, %v5311
    %v5314 = vld [vmem:[%s20] sm:$0xf]
    %v5315 = vld [vmem:[%s20 + $0x4] sm:$0xf]
    %v5316 = vld [vmem:[%s20 + $0x8] sm:$0xf]
    %v5317 = vld [vmem:[%s20 + $0xc] sm:$0xf]
    %v5318 = vld [vmem:[%s20 + $0x10] sm:$0xf]
    %v5319 = vld [vmem:[%s20 + $0x14] sm:$0xf]
    %v5320 = vld [vmem:[%s20 + $0x18] sm:$0xf]
    %v5321 = vld [vmem:[%s20 + $0x1c] sm:$0xf]
    %v5324 = vunpack.c.l.b16 %v5312
    %v5325 = vunpack.c.l.b16 %v5313
    %v5326 = vrot.slane %v5325, 7
    %v5327 = vsel %vm5263, %v5326, %v5324
    %v5328 = vpack.c.b16 %v5327, %v5327
    %v5337 = vunpack.c.l.b16 %v5314
    %v5338 = vunpack.c.l.b16 %v5315
    %v5339 = vunpack.c.l.b16 %v5316
    %v5340 = vunpack.c.l.b16 %v5317
    %v5341 = vunpack.c.l.b16 %v5318
    %v5342 = vunpack.c.l.b16 %v5319
    %v5343 = vunpack.c.l.b16 %v5320
    %v5344 = vunpack.c.l.b16 %v5321
    %v5345 = vpack.c.b16 %v5338, %v5337
    %v5346 = vpack.c.b16 %v5340, %v5339
    %v5347 = vpack.c.b16 %v5342, %v5341
    %v5348 = vpack.c.b16 %v5344, %v5343
    %v5354 = vsel %vm201, %v5328, 0
    %5356 = vmatprep.subr.bf16.mxu0 0
    %5357 = vmatpush1.bf16.msra.mxu0 %v5345
    %5358 = vmatprep.subr.bf16.mxu0 0
    %5359 = vmatpush1.bf16.msra.mxu0 %v5346
    %5360 = vmatprep.subr.bf16.mxu0 0
    %5361 = vmatpush1.bf16.msra.mxu0 %v5347
    %5362 = vmatprep.subr.bf16.mxu0 0
    %5363 = vmatpush1.bf16.msra.mxu0 %v5348
    %5364 = vmatprep.subr.bf16.mxu0 0
    %5365 = vmatpush1.bf16.msra.mxu0 0
    %5366 = vmatprep.subr.bf16.mxu0 0
    %5367 = vmatpush1.bf16.msra.mxu0 0
    %5368 = vmatprep.subr.bf16.mxu0 0
    %5369 = vmatpush1.bf16.msra.mxu0 0
    %5370 = vmatprep.subr.bf16.mxu0 0
    %5371 = vmatpush1.bf16.msra.mxu0 0
    %5372 = vmatprep.subr.bf16.mxu0 0
    %5373 = vmatpush1.bf16.msra.mxu0 0
    %5374 = vmatprep.subr.bf16.mxu0 0
    %5375 = vmatpush1.bf16.msra.mxu0 0
    %5376 = vmatprep.subr.bf16.mxu0 0
    %5377 = vmatpush1.bf16.msra.mxu0 0
    %5378 = vmatprep.subr.bf16.mxu0 0
    %5379 = vmatpush1.bf16.msra.mxu0 0
    %5380 = vmatprep.subr.bf16.mxu0 0
    %5381 = vmatpush1.bf16.msra.mxu0 0
    %5382 = vmatprep.subr.bf16.mxu0 0
    %5383 = vmatpush1.bf16.msra.mxu0 0
    %5384 = vmatprep.subr.bf16.mxu0 0
    %5385 = vmatpush1.bf16.msra.mxu0 0
    %5386 = vmatprep.subr.bf16.mxu0 0
    %5387 = vmatpush1.bf16.msra.mxu0 0
    %5388 = vmatprep.mubr.bf16.mxu0 0
    %5389 = vmatmul.mubr.bf16.gmra.mrb[0].mxu0 %v5354
    %v5390 = vpop.f32.mrb[0].mxu0
    %v5391 = vadd.f32 0.0, %v5390
    %v5392 = vpop.f32.mrb[0].mxu0
    %v5393 = vpop.f32.mrb[0].mxu0
    %v5394 = vpop.f32.mrb[0].mxu0
    %5395 = vdwg.mxu0
    %v5396 = vld [vmem:[%s5] sm:$0x3]
    %v5397 = vlaneseq
    %v5398 = vshrl.u32 %v5397, 7
    %v5399 = vsub.s32 0, %v5398
    %v5400 = vrot.slane %v5396, %v5399
    %5402 = vbcast.lane.b32.xlu0 %v5400, 256
    %v5403 = vpop.permute.xlu0 %5402
    %v5404 = vlaneseq
    %v5405 = vshrl.u32 %v5404, 7
    %v5406 = vsub.s32 1, %v5405
    %v5407 = vrot.slane %v5396, %v5406
    %5409 = vbcast.lane.b32.xlu0 %v5407, 256
    %v5410 = vpop.permute.xlu0 %5409
    %v5411 = vmul.f32 %v5403, %v5391
    %v5412 = vmul.f32 %v5410, %v5391
    %vm5413 = vcmask 254976
    %v5414 = vsel %vm5413, %v5411, 0.0
    %v5415 = vrot.slane %v5414, 4
    %v5416 = vadd.f32 %v5414, %v5415
    %v5417 = vrot.slane %v5416, 2
    %v5418 = vadd.f32 %v5416, %v5417
    %v5419 = vrot.slane %v5418, 1
    %v5420 = vadd.f32 %v5418, %v5419
    %v5421 = vsel %vm5413, %v5412, 0.0
    %v5422 = vrot.slane %v5421, 4
    %v5423 = vadd.f32 %v5421, %v5422
    %v5424 = vrot.slane %v5423, 2
    %v5425 = vadd.f32 %v5423, %v5424
    %v5426 = vrot.slane %v5425, 1
    %v5427 = vadd.f32 %v5425, %v5426
    %v5430 = vsel %vm5263, %v5427, %v5420
    %5432 = vst.msk [vmem:[#allocation5] sm:$0x3] %vm5413, %v5430
    // Predicated region
    $region90: #{tpu_custom_call.1} parent=1 // pred_check
      _
    $region91: #{tpu_custom_call.1} parent=1 // pred_check_branch
      %5434 = sbr.rel (0) target = $region93
    $region92: #{tpu_custom_call.1} parent=1 // pred_region
      %s5436 = ssub.s32 32, 32
      %5437 = vsyncadd [#allocation4], %s5436
      %s5439 = sshll.u32 [#allocation5], 4
      %s5440 = int_to_ptr.vmem [resolvable:$true] %s5439
      %5442 = dma.vmem_to_hbm [thread:$0]  %s5440, 32, %s21, [#allocation4]
    $region93: #{tpu_custom_call.1} parent=1 // pred_fallthru
      _
    // Predicated region
    $region94: #{tpu_custom_call.1} parent=1 // pred_check
      _
    $region95: #{tpu_custom_call.1} parent=1 // pred_check_branch
      %5444 = sbr.rel (0) target = $region97
    $region96: #{tpu_custom_call.1} parent=1 // pred_region
      %5445 = dma.done [#allocation4], 32
    $region97: #{tpu_custom_call.1} parent=1 // pred_fallthru
      _
    %5446 = vsyncpa [#allocation3], 1
    %5447 = vsyncpa [#allocation4], 1

</llo_original>
